<compile_context>
chip_gen: v7x
topology: tpu7x:2x2x1
jax: 0.10.0
libtpu: 0.0.40
codegen_flags: <defaults>
</compile_context>

<pallas_src>
import jax
import jax.numpy as jnp
from jax.experimental import pallas as pl
from jax.experimental.pallas import tpu as pltpu


# ----------------------------------------------------------------------------
# Kernel
# ----------------------------------------------------------------------------
def make_kernel(stage, has_proj, NB, H, W, Cinp, Cmidp, Coutp):
    has_pre = stage in (2, 3)      # explicit BN+ReLU on x
    has_post = (stage == 3)        # explicit BN+ReLU on (out + shortcut)
    has_b3 = (stage == 0)          # bn3 folded into conv3 (bias kept)
    P = NB * H * W
    bf16 = jnp.bfloat16
    f32 = jnp.float32

    def kernel(*refs):
        it = iter(refs)
        x_ref = next(it)                        # (NB, H, W, Cinp)     bf16
        w1_ref = next(it)                       # (Cinp, Cmidp)        bf16
        w2_ref = next(it)                       # (9*Cmidp, Cmidp)     bf16 (im2col)
        w3_ref = next(it)                       # (Cmidp, Coutp)       bf16
        wp_ref = next(it) if has_proj else None
        b1_ref = next(it)                       # (1, Cmidp) f32
        b2_ref = next(it)                       # (1, Cmidp) f32
        b3_ref = next(it) if has_b3 else None   # (1, Coutp) f32
        pre_s_ref = next(it) if has_pre else None
        pre_t_ref = next(it) if has_pre else None
        post_s_ref = next(it) if has_post else None
        post_t_ref = next(it) if has_post else None
        o_ref = next(it)                        # (NB, H, W, Coutp) bf16

        # ---- stage-dependent pre-activation straight off the bf16 input ----
        if has_pre:                             # stages 2/3: relu(bn1(x))
            a = jnp.maximum(x_ref[...].astype(f32) * pre_s_ref[...]
                            + pre_t_ref[...], 0.0).astype(bf16)
        elif stage == 1:                        # stage 1: relu(x)
            a = jnp.maximum(x_ref[...], 0)
        else:                                   # stage 0: x
            a = x_ref[...]

        # ---- conv1 (1x1, BN scale folded into w1, shift as bias) + relu -----
        h1 = jnp.dot(a.reshape(P, Cinp), w1_ref[...],
                     preferred_element_type=f32) + b1_ref[...]
        h1 = jnp.maximum(h1, 0.0).astype(bf16).reshape(NB, H, W, Cmidp)

        # ---- exact SAME zero padding of conv2's input (per image) -----------
        zrow = jnp.zeros((NB, 1, W, Cmidp), bf16)
        h1p = jnp.concatenate([zrow, h1, zrow], axis=1)            # (NB, H+2, W, C)
        zcol = jnp.zeros((NB, H + 2, 1, Cmidp), bf16)
        sh_m = jnp.concatenate([zcol, h1p[:, :, :W - 1, :]], axis=2)   # tap x-1
        sh_p = jnp.concatenate([h1p[:, :, 1:, :], zcol], axis=2)       # tap x+1
        shifted = (sh_m, h1p, sh_p)

        # ---- conv2 (3x3 SAME) as ONE im2col matmul, K = 9*Cmidp --------------
        taps = [shifted[dx][:, dy:dy + H, :, :].reshape(P, Cmidp)
                for dy in range(3) for dx in range(3)]
        a2col = jnp.concatenate(taps, axis=1)                      # (P, 9*Cmidp)
        h2 = jnp.dot(a2col, w2_ref[...], preferred_element_type=f32) + b2_ref[...]
        h2 = jnp.maximum(h2, 0.0).astype(bf16)

        # ---- conv3 (1x1) (+ folded bn3 shift for stage 0) ---------------------
        h3 = jnp.dot(h2, w3_ref[...], preferred_element_type=f32)
        if has_b3:
            h3 = h3 + b3_ref[...]

        # ---- shortcut (re-read input at point of use; raw x, not pre-act) ----
        xc = x_ref[...].reshape(P, Cinp)
        if has_proj:
            sc = jnp.dot(xc, wp_ref[...], preferred_element_type=f32)
        else:
            sc = xc.astype(f32)                                    # Cinp == Coutp

        out = h3 + sc
        if has_post:                            # stage 3: relu(bn4(out))
            out = jnp.maximum(out * post_s_ref[...] + post_t_ref[...], 0.0)

        o_ref[...] = out.reshape(NB, H, W, Coutp).astype(o_ref.dtype)

    return kernel


# ----------------------------------------------------------------------------
# Wrapper: layout, stride subsampling, BN folding, channel/lane padding,
#          batch folding, BlockSpecs.
# ----------------------------------------------------------------------------
def _round_up(c, m=128):
    return ((c + m - 1) // m) * m


def _pad_axis(a, axis, target):
    pad = target - a.shape[axis]
    if pad == 0:
        return a
    widths = [(0, 0)] * a.ndim
    widths[axis] = (0, pad)
    return jnp.pad(a, widths)


def improved_block_pallas(x_nchw, params, stage, stride=1):
    w1, w2, w3, wp = params['w1'], params['w2'], params['w3'], params['wproj']
    bn = params['bn']

    # ---- fold inference-BN scale into the conv that feeds it ----------------
    if stage in (0, 1):
        pre = None
        s1, t1 = bn[0]          # BN after conv1
        s2, t2 = bn[1]          # BN after conv2
    else:
        pre = bn[0]             # BN on x (before ReLU + conv1) — stays explicit
        s1, t1 = bn[1]
        s2, t2 = bn[2]
    w1f = w1 * s1[None, :]
    w2f = w2 * s2[None, None, None, :]
    if stage == 0:
        s3, t3 = bn[2]          # BN after conv3
        w3f = w3 * s3[None, :]
        b3 = t3
    else:
        w3f = w3
        b3 = None
    post = bn[3] if stage == 3 else None        # BN after residual add — explicit

    # ---- NCHW -> NHWC, stride via spatial subsampling (exact for 1x1 convs) --
    x = jnp.transpose(x_nchw, (0, 2, 3, 1)).astype(jnp.float32)
    if stride != 1:
        x = x[:, ::stride, ::stride, :]
    N, H, W, Cin = x.shape
    Cmid = w1.shape[1]
    Cout = w3.shape[1]
    has_proj = wp is not None
    Cinp, Cmidp, Coutp = _round_up(Cin), _round_up(Cmid), _round_up(Cout)

    # ---- lane-pad channels to 128; bf16 matmul operands ----------------------
    x = _pad_axis(x, 3, Cinp).astype(jnp.bfloat16)
    w1p = _pad_axis(_pad_axis(w1f, 0, Cinp), 1, Cmidp).astype(jnp.bfloat16)
    w2p = _pad_axis(_pad_axis(w2f, 2, Cmidp), 3, Cmidp
                    ).reshape(9 * Cmidp, Cmidp).astype(jnp.bfloat16)   # im2col weight
    w3p = _pad_axis(_pad_axis(w3f, 0, Cmidp), 1, Coutp).astype(jnp.bfloat16)
    wpp = (_pad_axis(_pad_axis(wp, 0, Cinp), 1, Coutp).astype(jnp.bfloat16)
           if has_proj else None)
    b1 = _pad_axis(t1.reshape(1, Cmid), 1, Cmidp).astype(jnp.float32)
    b2 = _pad_axis(t2.reshape(1, Cmid), 1, Cmidp).astype(jnp.float32)
    b3p = (_pad_axis(b3.reshape(1, Cout), 1, Coutp).astype(jnp.float32)
           if b3 is not None else None)
    prep = (tuple(_pad_axis(v.reshape(1, Cin), 1, Cinp).astype(jnp.float32)
                  for v in pre) if pre is not None else None)
    postp = (tuple(_pad_axis(v.reshape(1, Cout), 1, Coutp).astype(jnp.float32)
                   for v in post) if post is not None else None)

    # ---- batch folding: bigger flattened-M matmuls, but keep >= 2 grid steps --
    # ---- (pipelining / v7x megacore) whenever the batch allows it -------------
    NB = 1
    for cand in range(2, N + 1):
        if N % cand:
            continue
        if N >= 2 and N // cand < 2:
            break
        if cand * H * W > 2048:                        # M beyond ~2048 buys nothing
            break
        if cand * H * W * (2 * Cinp + 2 * Coutp + 26 * Cmidp) > (24 << 20):
            break                                      # stay well inside 32 MiB VMEM
        NB = cand
    G = N // NB

    inputs = [x, w1p, w2p, w3p]
    if has_proj:
        inputs.append(wpp)
    inputs += [b1, b2]
    if b3p is not None:
        inputs.append(b3p)
    if prep is not None:
        inputs += [prep[0], prep[1]]
    if postp is not None:
        inputs += [postp[0], postp[1]]

    kernel = make_kernel(stage, has_proj, NB, H, W, Cinp, Cmidp, Coutp)

    def call(single_buffer_weights):
        def const_spec(shape):
            nd = len(shape)

            def idx(g):
                return (0,) * nd

            if single_buffer_weights:
                return pl.BlockSpec(shape, idx, pipeline_mode=pl.Buffered(1))
            return pl.BlockSpec(shape, idx)

        in_specs = [pl.BlockSpec((NB, H, W, Cinp), lambda g: (g, 0, 0, 0))]
        in_specs += [const_spec(a.shape) for a in inputs[1:]]

        return pl.pallas_call(
            kernel,
            out_shape=jax.ShapeDtypeStruct((N, H, W, Coutp), jnp.bfloat16),
            grid=(G,),
            in_specs=in_specs,
            out_specs=pl.BlockSpec((NB, H, W, Coutp), lambda g: (g, 0, 0, 0)),
            compiler_params=pltpu.CompilerParams(
                dimension_semantics=("parallel",),
                vmem_limit_bytes=32 * 1024 * 1024,
            ),
        )(*inputs)

    try:
        # single-buffer the grid-invariant weight/bias operands
        out_padded = jax.block_until_ready(call(True))
    except Exception:
        # fallback if pl.Buffered(1) is not supported by this JAX version
        out_padded = jax.block_until_ready(call(False))

    # channel slice -> NCHW -> f32 at the very end (single fused epilogue pass)
    return jnp.transpose(out_padded[..., :Cout], (0, 3, 1, 2)).astype(jnp.float32)


# ----------------------------------------------------------------------------
# Deterministic parameter init (mirrors nn.Module.__init__ shapes)
# ----------------------------------------------------------------------------
def init_params(in_f, out_f, stage, stride, key):
    mid = int(out_f / 4)
    k1, k2, k3, k4 = jax.random.split(key, 4)
    params = {
        'w1': 0.1 * jax.random.normal(k1, (in_f, mid), jnp.float32),       # conv1 1x1
        'w2': 0.1 * jax.random.normal(k2, (3, 3, mid, mid), jnp.float32),  # conv2 3x3 (HWIO)
        'w3': 0.1 * jax.random.normal(k3, (mid, out_f), jnp.float32),      # conv3 1x1
        'wproj': (0.1 * jax.random.normal(k4, (in_f, out_f), jnp.float32)
                  if (stride != 1 or in_f != out_f) else None),
    }
    bn_channels = {0: [mid, mid, out_f],
                   1: [mid, mid],
                   2: [in_f, mid, mid],
                   3: [in_f, mid, mid, out_f]}[stage]
    eps = 1e-5
    bn = []
    for c in bn_channels:
        gamma = 1.0 + 0.05 * jnp.arange(c, dtype=jnp.float32)
        beta = 0.02 * jnp.arange(c, dtype=jnp.float32) - 0.1
        mean = 0.01 * jnp.arange(c, dtype=jnp.float32)
        var = 1.0 + 0.03 * jnp.arange(c, dtype=jnp.float32)
        scale = gamma / jnp.sqrt(var + eps)
        shift = beta - mean * scale
        bn.append((scale, shift))
    params['bn'] = bn
    return params


# ----------------------------------------------------------------------------
# Pure-JAX reference (faithful to the PyTorch forward, eval-mode BN, f32)
# ----------------------------------------------------------------------------
def improved_block_reference(x_nchw, params, stage, stride=1):
    x = jnp.transpose(x_nchw, (0, 2, 3, 1)).astype(jnp.float32)
    w1, w2, w3, wp = params['w1'], params['w2'], params['w3'], params['wproj']
    relu = jax.nn.relu

    def bn(v, k):
        s, b = params['bn'][k]
        return v * s + b

    def c1(v, w, s=1):
        vv = v[:, ::s, ::s, :] if s != 1 else v
        return jnp.einsum('nhwc,cd->nhwd', vv, w)

    def c3(v, w):
        return jax.lax.conv_general_dilated(
            v, w, window_strides=(1, 1), padding='SAME',
            dimension_numbers=('NHWC', 'HWIO', 'NHWC'))

    if stage == 0:
        sc = c1(x, wp, stride) if wp is not None else x
        h = c1(x, w1, stride)
        h = c3(relu(bn(h, 0)), w2)
        h = c1(relu(bn(h, 1)), w3)
        out = bn(h, 2) + sc
    elif stage == 1:
        pre = relu(x)
        sc = c1(x, wp, stride) if wp is not None else x
        h = c1(pre, w1, stride)
        h = c3(relu(bn(h, 0)), w2)
        h = c1(relu(bn(h, 1)), w3)
        out = h + sc
    else:
        pre = relu(bn(x, 0))
        sc = c1(x, wp, stride) if wp is not None else x
        h = c1(pre, w1, stride)
        h = c3(relu(bn(h, 1)), w2)
        h = c1(relu(bn(h, 2)), w3)
        out = h + sc
        if stage == 3:
            out = relu(bn(out, 3))
    return jnp.transpose(out, (0, 3, 1, 2))


if __name__ == "__main__":
    key = jax.random.PRNGKey(0)
    kx, kp = jax.random.split(key)
    N = 2

    #            Cin  Cout  H   W   stride  stage
    configs = [(8,  16, 16, 16, 1, 0),
               (8,  16, 16, 16, 1, 1),
               (8,  16, 16, 16, 1, 2),
               (8,  16, 16, 16, 1, 3),
               (16, 16, 16, 16, 1, 1),   # identity shortcut (no projection)
               (8,  16, 32, 32, 2, 3)]   # strided block with projection

    for (Cin, Cout, H, W, stride, stage) in configs:
        x = jax.random.normal(kx, (N, Cin, H, W), jnp.float32)   # NCHW, as in PyTorch
        params = init_params(Cin, Cout, stage, stride, kp)

        out = jax.block_until_ready(improved_block_pallas(x, params, stage, stride))
        ref = improved_block_reference(x, params, stage, stride)

        assert out.shape == ref.shape, (stage, out.shape, ref.shape)
        err = float(jnp.max(jnp.abs(out - ref)))
        assert jnp.allclose(out, ref, atol=5e-2, rtol=5e-2), \
            f"stage {stage} stride {stride} Cin {Cin}: max abs err {err}"

    print("KERNEL_OK")
</pallas_src>

<mosaic_0001>
module attributes {stable_mosaic.version = 11 : i64} {
  func.func @kernel(%arg0: i32, %arg1: memref<1x16x16x128xbf16, #tpu.memory_space<vmem>>, %arg2: memref<128x128xbf16, #tpu.memory_space<vmem>>, %arg3: memref<1152x128xbf16, #tpu.memory_space<vmem>>, %arg4: memref<128x128xbf16, #tpu.memory_space<vmem>>, %arg5: memref<128x128xbf16, #tpu.memory_space<vmem>>, %arg6: memref<1x128xf32, #tpu.memory_space<vmem>>, %arg7: memref<1x128xf32, #tpu.memory_space<vmem>>, %arg8: memref<1x128xf32, #tpu.memory_space<vmem>>, %arg9: memref<1x16x16x128xbf16, #tpu.memory_space<vmem>>) attributes {dimension_semantics = [#tpu.dimension_semantics<parallel>], iteration_bounds = array<i64: 2>, scalar_prefetch = 0 : i64, scratch_operands = 0 : i64, tpu.core_type = #tpu.core_type<tc>, window_params = [{transform_indices = @transform_0, window_bounds = array<i64: 1, 16, 16, 128>}, {pipeline_mode = #tpu.pipeline_mode<synchronous>, transform_indices = @transform_1, window_bounds = array<i64: 128, 128>}, {pipeline_mode = #tpu.pipeline_mode<synchronous>, transform_indices = @transform_2, window_bounds = array<i64: 1152, 128>}, {pipeline_mode = #tpu.pipeline_mode<synchronous>, transform_indices = @transform_3, window_bounds = array<i64: 128, 128>}, {pipeline_mode = #tpu.pipeline_mode<synchronous>, transform_indices = @transform_4, window_bounds = array<i64: 128, 128>}, {pipeline_mode = #tpu.pipeline_mode<synchronous>, transform_indices = @transform_5, window_bounds = array<i64: 1, 128>}, {pipeline_mode = #tpu.pipeline_mode<synchronous>, transform_indices = @transform_6, window_bounds = array<i64: 1, 128>}, {pipeline_mode = #tpu.pipeline_mode<synchronous>, transform_indices = @transform_7, window_bounds = array<i64: 1, 128>}, {transform_indices = @transform_8, window_bounds = array<i64: 1, 16, 16, 128>}]} {
    %c0 = arith.constant 0 : index
    %c0_0 = arith.constant 0 : index
    %c0_1 = arith.constant 0 : index
    %c0_2 = arith.constant 0 : index
    %0 = vector.load %arg1[%c0, %c0_0, %c0_1, %c0_2] : memref<1x16x16x128xbf16, #tpu.memory_space<vmem>>, vector<1x16x16x128xbf16>
    %1 = vector.shape_cast %0 : vector<1x16x16x128xbf16> to vector<256x128xbf16>
    %c0_3 = arith.constant 0 : index
    %c0_4 = arith.constant 0 : index
    %2 = vector.load %arg2[%c0_3, %c0_4] : memref<128x128xbf16, #tpu.memory_space<vmem>>, vector<128x128xbf16>
    %cst = arith.constant dense<0.000000e+00> : vector<256x128xf32>
    %3 = tpu.matmul %1, %2, %cst {dimension_numbers = #tpu.dot_dimension_numbers<[1], [0], [0], [1], [0, 0, 1, 1], [], []>} : vector<256x128xbf16>, vector<128x128xbf16>, vector<256x128xf32> -> vector<256x128xf32>
    %c0_5 = arith.constant 0 : index
    %c0_6 = arith.constant 0 : index
    %4 = vector.load %arg6[%c0_5, %c0_6] : memref<1x128xf32, #tpu.memory_space<vmem>>, vector<1x128xf32>
    %5 = vector.broadcast %4 : vector<1x128xf32> to vector<256x128xf32>
    %6 = arith.addf %3, %5 : vector<256x128xf32>
    %cst_7 = arith.constant 0.000000e+00 : f32
    %7 = vector.broadcast %cst_7 : f32 to vector<256x128xf32>
    %8 = arith.maximumf %6, %7 : vector<256x128xf32>
    %9 = arith.truncf %8 : vector<256x128xf32> to vector<256x128xbf16>
    %10 = vector.shape_cast %9 : vector<256x128xbf16> to vector<1x16x16x128xbf16>
    %cst_8 = arith.constant 0.000000e+00 : bf16
    %11 = vector.broadcast %cst_8 : bf16 to vector<1x1x16x128xbf16>
    %12 = tpu.concatenate %11, %10, %11 in 1 : vector<1x1x16x128xbf16>, vector<1x16x16x128xbf16>, vector<1x1x16x128xbf16> -> vector<1x18x16x128xbf16>
    %cst_9 = arith.constant 0.000000e+00 : bf16
    %13 = vector.broadcast %cst_9 : bf16 to vector<1x18x1x128xbf16>
    %14 = vector.extract_strided_slice %12 {offsets = [0, 0, 0, 0], sizes = [1, 18, 15, 128], strides = [1, 1, 1, 1]} : vector<1x18x16x128xbf16> to vector<1x18x15x128xbf16>
    %15 = tpu.concatenate %13, %14 in 2 : vector<1x18x1x128xbf16>, vector<1x18x15x128xbf16> -> vector<1x18x16x128xbf16>
    %16 = vector.extract_strided_slice %12 {offsets = [0, 0, 1, 0], sizes = [1, 18, 15, 128], strides = [1, 1, 1, 1]} : vector<1x18x16x128xbf16> to vector<1x18x15x128xbf16>
    %17 = tpu.concatenate %16, %13 in 2 : vector<1x18x15x128xbf16>, vector<1x18x1x128xbf16> -> vector<1x18x16x128xbf16>
    %18 = vector.extract_strided_slice %15 {offsets = [0, 0, 0, 0], sizes = [1, 16, 16, 128], strides = [1, 1, 1, 1]} : vector<1x18x16x128xbf16> to vector<1x16x16x128xbf16>
    %19 = vector.shape_cast %18 : vector<1x16x16x128xbf16> to vector<256x128xbf16>
    %20 = vector.extract_strided_slice %12 {offsets = [0, 0, 0, 0], sizes = [1, 16, 16, 128], strides = [1, 1, 1, 1]} : vector<1x18x16x128xbf16> to vector<1x16x16x128xbf16>
    %21 = vector.shape_cast %20 : vector<1x16x16x128xbf16> to vector<256x128xbf16>
    %22 = vector.extract_strided_slice %17 {offsets = [0, 0, 0, 0], sizes = [1, 16, 16, 128], strides = [1, 1, 1, 1]} : vector<1x18x16x128xbf16> to vector<1x16x16x128xbf16>
    %23 = vector.shape_cast %22 : vector<1x16x16x128xbf16> to vector<256x128xbf16>
    %24 = vector.extract_strided_slice %15 {offsets = [0, 1, 0, 0], sizes = [1, 16, 16, 128], strides = [1, 1, 1, 1]} : vector<1x18x16x128xbf16> to vector<1x16x16x128xbf16>
    %25 = vector.shape_cast %24 : vector<1x16x16x128xbf16> to vector<256x128xbf16>
    %26 = vector.extract_strided_slice %12 {offsets = [0, 1, 0, 0], sizes = [1, 16, 16, 128], strides = [1, 1, 1, 1]} : vector<1x18x16x128xbf16> to vector<1x16x16x128xbf16>
    %27 = vector.shape_cast %26 : vector<1x16x16x128xbf16> to vector<256x128xbf16>
    %28 = vector.extract_strided_slice %17 {offsets = [0, 1, 0, 0], sizes = [1, 16, 16, 128], strides = [1, 1, 1, 1]} : vector<1x18x16x128xbf16> to vector<1x16x16x128xbf16>
    %29 = vector.shape_cast %28 : vector<1x16x16x128xbf16> to vector<256x128xbf16>
    %30 = vector.extract_strided_slice %15 {offsets = [0, 2, 0, 0], sizes = [1, 16, 16, 128], strides = [1, 1, 1, 1]} : vector<1x18x16x128xbf16> to vector<1x16x16x128xbf16>
    %31 = vector.shape_cast %30 : vector<1x16x16x128xbf16> to vector<256x128xbf16>
    %32 = vector.extract_strided_slice %12 {offsets = [0, 2, 0, 0], sizes = [1, 16, 16, 128], strides = [1, 1, 1, 1]} : vector<1x18x16x128xbf16> to vector<1x16x16x128xbf16>
    %33 = vector.shape_cast %32 : vector<1x16x16x128xbf16> to vector<256x128xbf16>
    %34 = vector.extract_strided_slice %17 {offsets = [0, 2, 0, 0], sizes = [1, 16, 16, 128], strides = [1, 1, 1, 1]} : vector<1x18x16x128xbf16> to vector<1x16x16x128xbf16>
    %35 = vector.shape_cast %34 : vector<1x16x16x128xbf16> to vector<256x128xbf16>
    %36 = tpu.concatenate %19, %21, %23, %25, %27, %29, %31, %33, %35 in 1 : vector<256x128xbf16>, vector<256x128xbf16>, vector<256x128xbf16>, vector<256x128xbf16>, vector<256x128xbf16>, vector<256x128xbf16>, vector<256x128xbf16>, vector<256x128xbf16>, vector<256x128xbf16> -> vector<256x1152xbf16>
    %c0_10 = arith.constant 0 : index
    %c0_11 = arith.constant 0 : index
    %37 = vector.load %arg3[%c0_10, %c0_11] : memref<1152x128xbf16, #tpu.memory_space<vmem>>, vector<1152x128xbf16>
    %cst_12 = arith.constant dense<0.000000e+00> : vector<256x128xf32>
    %38 = tpu.matmul %36, %37, %cst_12 {dimension_numbers = #tpu.dot_dimension_numbers<[1], [0], [0], [1], [0, 0, 1, 1], [], []>} : vector<256x1152xbf16>, vector<1152x128xbf16>, vector<256x128xf32> -> vector<256x128xf32>
    %c0_13 = arith.constant 0 : index
    %c0_14 = arith.constant 0 : index
    %39 = vector.load %arg7[%c0_13, %c0_14] : memref<1x128xf32, #tpu.memory_space<vmem>>, vector<1x128xf32>
    %40 = vector.broadcast %39 : vector<1x128xf32> to vector<256x128xf32>
    %41 = arith.addf %38, %40 : vector<256x128xf32>
    %cst_15 = arith.constant 0.000000e+00 : f32
    %42 = vector.broadcast %cst_15 : f32 to vector<256x128xf32>
    %43 = arith.maximumf %41, %42 : vector<256x128xf32>
    %44 = arith.truncf %43 : vector<256x128xf32> to vector<256x128xbf16>
    %c0_16 = arith.constant 0 : index
    %c0_17 = arith.constant 0 : index
    %45 = vector.load %arg4[%c0_16, %c0_17] : memref<128x128xbf16, #tpu.memory_space<vmem>>, vector<128x128xbf16>
    %cst_18 = arith.constant dense<0.000000e+00> : vector<256x128xf32>
    %46 = tpu.matmul %44, %45, %cst_18 {dimension_numbers = #tpu.dot_dimension_numbers<[1], [0], [0], [1], [0, 0, 1, 1], [], []>} : vector<256x128xbf16>, vector<128x128xbf16>, vector<256x128xf32> -> vector<256x128xf32>
    %c0_19 = arith.constant 0 : index
    %c0_20 = arith.constant 0 : index
    %47 = vector.load %arg8[%c0_19, %c0_20] : memref<1x128xf32, #tpu.memory_space<vmem>>, vector<1x128xf32>
    %48 = vector.broadcast %47 : vector<1x128xf32> to vector<256x128xf32>
    %49 = arith.addf %46, %48 : vector<256x128xf32>
    %c0_21 = arith.constant 0 : index
    %c0_22 = arith.constant 0 : index
    %c0_23 = arith.constant 0 : index
    %c0_24 = arith.constant 0 : index
    %50 = vector.load %arg1[%c0_21, %c0_22, %c0_23, %c0_24] : memref<1x16x16x128xbf16, #tpu.memory_space<vmem>>, vector<1x16x16x128xbf16>
    %51 = vector.shape_cast %50 : vector<1x16x16x128xbf16> to vector<256x128xbf16>
    %c0_25 = arith.constant 0 : index
    %c0_26 = arith.constant 0 : index
    %52 = vector.load %arg5[%c0_25, %c0_26] : memref<128x128xbf16, #tpu.memory_space<vmem>>, vector<128x128xbf16>
    %cst_27 = arith.constant dense<0.000000e+00> : vector<256x128xf32>
    %53 = tpu.matmul %51, %52, %cst_27 {dimension_numbers = #tpu.dot_dimension_numbers<[1], [0], [0], [1], [0, 0, 1, 1], [], []>} : vector<256x128xbf16>, vector<128x128xbf16>, vector<256x128xf32> -> vector<256x128xf32>
    %54 = arith.addf %49, %53 : vector<256x128xf32>
    %55 = vector.shape_cast %54 : vector<256x128xf32> to vector<1x16x16x128xf32>
    %56 = arith.truncf %55 : vector<1x16x16x128xf32> to vector<1x16x16x128xbf16>
    %c0_28 = arith.constant 0 : index
    %c0_29 = arith.constant 0 : index
    %c0_30 = arith.constant 0 : index
    %c0_31 = arith.constant 0 : index
    %57 = vector.load %arg9[%c0_28, %c0_29, %c0_30, %c0_31] : memref<1x16x16x128xbf16, #tpu.memory_space<vmem>>, vector<1x16x16x128xbf16>
    tpu.vector_store %arg9[%c0_28, %c0_29, %c0_30, %c0_31], %56 {strides = array<i32>} : memref<1x16x16x128xbf16, #tpu.memory_space<vmem>>, vector<1x16x16x128xbf16>,
    return
  }
  func.func @transform_0(%arg0: i32) -> (i32, i32, i32, i32) {
    %c0_i32 = arith.constant 0 : i32
    %c0_i32_0 = arith.constant 0 : i32
    %c0_i32_1 = arith.constant 0 : i32
    %c0_i32_2 = arith.constant 0 : i32
    return %arg0, %c0_i32, %c0_i32_0, %c0_i32_1 : i32, i32, i32, i32
  }
  func.func @transform_1(%arg0: i32) -> (i32, i32) {
    %c0_i32 = arith.constant 0 : i32
    %c0_i32_0 = arith.constant 0 : i32
    %c0_i32_1 = arith.constant 0 : i32
    return %c0_i32, %c0_i32_0 : i32, i32
  }
  func.func @transform_2(%arg0: i32) -> (i32, i32) {
    %c0_i32 = arith.constant 0 : i32
    %c0_i32_0 = arith.constant 0 : i32
    %c0_i32_1 = arith.constant 0 : i32
    return %c0_i32, %c0_i32_0 : i32, i32
  }
  func.func @transform_3(%arg0: i32) -> (i32, i32) {
    %c0_i32 = arith.constant 0 : i32
    %c0_i32_0 = arith.constant 0 : i32
    %c0_i32_1 = arith.constant 0 : i32
    return %c0_i32, %c0_i32_0 : i32, i32
  }
  func.func @transform_4(%arg0: i32) -> (i32, i32) {
    %c0_i32 = arith.constant 0 : i32
    %c0_i32_0 = arith.constant 0 : i32
    %c0_i32_1 = arith.constant 0 : i32
    return %c0_i32, %c0_i32_0 : i32, i32
  }
  func.func @transform_5(%arg0: i32) -> (i32, i32) {
    %c0_i32 = arith.constant 0 : i32
    %c0_i32_0 = arith.constant 0 : i32
    %c0_i32_1 = arith.constant 0 : i32
    return %c0_i32, %c0_i32_0 : i32, i32
  }
  func.func @transform_6(%arg0: i32) -> (i32, i32) {
    %c0_i32 = arith.constant 0 : i32
    %c0_i32_0 = arith.constant 0 : i32
    %c0_i32_1 = arith.constant 0 : i32
    return %c0_i32, %c0_i32_0 : i32, i32
  }
  func.func @transform_7(%arg0: i32) -> (i32, i32) {
    %c0_i32 = arith.constant 0 : i32
    %c0_i32_0 = arith.constant 0 : i32
    %c0_i32_1 = arith.constant 0 : i32
    return %c0_i32, %c0_i32_0 : i32, i32
  }
  func.func @transform_8(%arg0: i32) -> (i32, i32, i32, i32) {
    %c0_i32 = arith.constant 0 : i32
    %c0_i32_0 = arith.constant 0 : i32
    %c0_i32_1 = arith.constant 0 : i32
    %c0_i32_2 = arith.constant 0 : i32
    return %arg0, %c0_i32, %c0_i32_0, %c0_i32_1 : i32, i32, i32, i32
  }
}

module attributes {stable_mosaic.version = 11 : i64} {
  func.func @kernel(%arg0: i32, %arg1: memref<1x16x16x128xbf16, #tpu.memory_space<vmem>>, %arg2: memref<128x128xbf16, #tpu.memory_space<vmem>>, %arg3: memref<1152x128xbf16, #tpu.memory_space<vmem>>, %arg4: memref<128x128xbf16, #tpu.memory_space<vmem>>, %arg5: memref<128x128xbf16, #tpu.memory_space<vmem>>, %arg6: memref<1x128xf32, #tpu.memory_space<vmem>>, %arg7: memref<1x128xf32, #tpu.memory_space<vmem>>, %arg8: memref<1x128xf32, #tpu.memory_space<vmem>>, %arg9: memref<1x16x16x128xbf16, #tpu.memory_space<vmem>>) attributes {dimension_semantics = [#tpu.dimension_semantics<parallel>], iteration_bounds = array<i64: 2>, scalar_prefetch = 0 : i64, scratch_operands = 0 : i64, tpu.core_type = #tpu.core_type<tc>, window_params = [{transform_indices = @transform_0, window_bounds = array<i64: 1, 16, 16, 128>}, {pipeline_mode = #tpu.pipeline_mode<synchronous>, transform_indices = @transform_1, window_bounds = array<i64: 128, 128>}, {pipeline_mode = #tpu.pipeline_mode<synchronous>, transform_indices = @transform_2, window_bounds = array<i64: 1152, 128>}, {pipeline_mode = #tpu.pipeline_mode<synchronous>, transform_indices = @transform_3, window_bounds = array<i64: 128, 128>}, {pipeline_mode = #tpu.pipeline_mode<synchronous>, transform_indices = @transform_4, window_bounds = array<i64: 128, 128>}, {pipeline_mode = #tpu.pipeline_mode<synchronous>, transform_indices = @transform_5, window_bounds = array<i64: 1, 128>}, {pipeline_mode = #tpu.pipeline_mode<synchronous>, transform_indices = @transform_6, window_bounds = array<i64: 1, 128>}, {pipeline_mode = #tpu.pipeline_mode<synchronous>, transform_indices = @transform_7, window_bounds = array<i64: 1, 128>}, {transform_indices = @transform_8, window_bounds = array<i64: 1, 16, 16, 128>}]} {
    %c0 = arith.constant 0 : index
    %c0_0 = arith.constant 0 : index
    %c0_1 = arith.constant 0 : index
    %c0_2 = arith.constant 0 : index
    %0 = vector.load %arg1[%c0, %c0_0, %c0_1, %c0_2] : memref<1x16x16x128xbf16, #tpu.memory_space<vmem>>, vector<1x16x16x128xbf16>
    %1 = vector.shape_cast %0 : vector<1x16x16x128xbf16> to vector<256x128xbf16>
    %c0_3 = arith.constant 0 : index
    %c0_4 = arith.constant 0 : index
    %2 = vector.load %arg2[%c0_3, %c0_4] : memref<128x128xbf16, #tpu.memory_space<vmem>>, vector<128x128xbf16>
    %cst = arith.constant dense<0.000000e+00> : vector<256x128xf32>
    %3 = tpu.matmul %1, %2, %cst {dimension_numbers = #tpu.dot_dimension_numbers<[1], [0], [0], [1], [0, 0, 1, 1], [], []>} : vector<256x128xbf16>, vector<128x128xbf16>, vector<256x128xf32> -> vector<256x128xf32>
    %c0_5 = arith.constant 0 : index
    %c0_6 = arith.constant 0 : index
    %4 = vector.load %arg6[%c0_5, %c0_6] : memref<1x128xf32, #tpu.memory_space<vmem>>, vector<1x128xf32>
    %5 = vector.broadcast %4 : vector<1x128xf32> to vector<256x128xf32>
    %6 = arith.addf %3, %5 : vector<256x128xf32>
    %cst_7 = arith.constant 0.000000e+00 : f32
    %7 = vector.broadcast %cst_7 : f32 to vector<256x128xf32>
    %8 = arith.maximumf %6, %7 : vector<256x128xf32>
    %9 = arith.truncf %8 : vector<256x128xf32> to vector<256x128xbf16>
    %10 = vector.shape_cast %9 : vector<256x128xbf16> to vector<1x16x16x128xbf16>
    %cst_8 = arith.constant 0.000000e+00 : bf16
    %11 = vector.broadcast %cst_8 : bf16 to vector<1x1x16x128xbf16>
    %12 = tpu.concatenate %11, %10, %11 in 1 : vector<1x1x16x128xbf16>, vector<1x16x16x128xbf16>, vector<1x1x16x128xbf16> -> vector<1x18x16x128xbf16>
    %cst_9 = arith.constant 0.000000e+00 : bf16
    %13 = vector.broadcast %cst_9 : bf16 to vector<1x18x1x128xbf16>
    %14 = vector.extract_strided_slice %12 {offsets = [0, 0, 0, 0], sizes = [1, 18, 15, 128], strides = [1, 1, 1, 1]} : vector<1x18x16x128xbf16> to vector<1x18x15x128xbf16>
    %15 = tpu.concatenate %13, %14 in 2 : vector<1x18x1x128xbf16>, vector<1x18x15x128xbf16> -> vector<1x18x16x128xbf16>
    %16 = vector.extract_strided_slice %12 {offsets = [0, 0, 1, 0], sizes = [1, 18, 15, 128], strides = [1, 1, 1, 1]} : vector<1x18x16x128xbf16> to vector<1x18x15x128xbf16>
    %17 = tpu.concatenate %16, %13 in 2 : vector<1x18x15x128xbf16>, vector<1x18x1x128xbf16> -> vector<1x18x16x128xbf16>
    %18 = vector.extract_strided_slice %15 {offsets = [0, 0, 0, 0], sizes = [1, 16, 16, 128], strides = [1, 1, 1, 1]} : vector<1x18x16x128xbf16> to vector<1x16x16x128xbf16>
    %19 = vector.shape_cast %18 : vector<1x16x16x128xbf16> to vector<256x128xbf16>
    %20 = vector.extract_strided_slice %12 {offsets = [0, 0, 0, 0], sizes = [1, 16, 16, 128], strides = [1, 1, 1, 1]} : vector<1x18x16x128xbf16> to vector<1x16x16x128xbf16>
    %21 = vector.shape_cast %20 : vector<1x16x16x128xbf16> to vector<256x128xbf16>
    %22 = vector.extract_strided_slice %17 {offsets = [0, 0, 0, 0], sizes = [1, 16, 16, 128], strides = [1, 1, 1, 1]} : vector<1x18x16x128xbf16> to vector<1x16x16x128xbf16>
    %23 = vector.shape_cast %22 : vector<1x16x16x128xbf16> to vector<256x128xbf16>
    %24 = vector.extract_strided_slice %15 {offsets = [0, 1, 0, 0], sizes = [1, 16, 16, 128], strides = [1, 1, 1, 1]} : vector<1x18x16x128xbf16> to vector<1x16x16x128xbf16>
    %25 = vector.shape_cast %24 : vector<1x16x16x128xbf16> to vector<256x128xbf16>
    %26 = vector.extract_strided_slice %12 {offsets = [0, 1, 0, 0], sizes = [1, 16, 16, 128], strides = [1, 1, 1, 1]} : vector<1x18x16x128xbf16> to vector<1x16x16x128xbf16>
    %27 = vector.shape_cast %26 : vector<1x16x16x128xbf16> to vector<256x128xbf16>
    %28 = vector.extract_strided_slice %17 {offsets = [0, 1, 0, 0], sizes = [1, 16, 16, 128], strides = [1, 1, 1, 1]} : vector<1x18x16x128xbf16> to vector<1x16x16x128xbf16>
    %29 = vector.shape_cast %28 : vector<1x16x16x128xbf16> to vector<256x128xbf16>
    %30 = vector.extract_strided_slice %15 {offsets = [0, 2, 0, 0], sizes = [1, 16, 16, 128], strides = [1, 1, 1, 1]} : vector<1x18x16x128xbf16> to vector<1x16x16x128xbf16>
    %31 = vector.shape_cast %30 : vector<1x16x16x128xbf16> to vector<256x128xbf16>
    %32 = vector.extract_strided_slice %12 {offsets = [0, 2, 0, 0], sizes = [1, 16, 16, 128], strides = [1, 1, 1, 1]} : vector<1x18x16x128xbf16> to vector<1x16x16x128xbf16>
    %33 = vector.shape_cast %32 : vector<1x16x16x128xbf16> to vector<256x128xbf16>
    %34 = vector.extract_strided_slice %17 {offsets = [0, 2, 0, 0], sizes = [1, 16, 16, 128], strides = [1, 1, 1, 1]} : vector<1x18x16x128xbf16> to vector<1x16x16x128xbf16>
    %35 = vector.shape_cast %34 : vector<1x16x16x128xbf16> to vector<256x128xbf16>
    %36 = tpu.concatenate %19, %21, %23, %25, %27, %29, %31, %33, %35 in 1 : vector<256x128xbf16>, vector<256x128xbf16>, vector<256x128xbf16>, vector<256x128xbf16>, vector<256x128xbf16>, vector<256x128xbf16>, vector<256x128xbf16>, vector<256x128xbf16>, vector<256x128xbf16> -> vector<256x1152xbf16>
    %c0_10 = arith.constant 0 : index
    %c0_11 = arith.constant 0 : index
    %37 = vector.load %arg3[%c0_10, %c0_11] : memref<1152x128xbf16, #tpu.memory_space<vmem>>, vector<1152x128xbf16>
    %cst_12 = arith.constant dense<0.000000e+00> : vector<256x128xf32>
    %38 = tpu.matmul %36, %37, %cst_12 {dimension_numbers = #tpu.dot_dimension_numbers<[1], [0], [0], [1], [0, 0, 1, 1], [], []>} : vector<256x1152xbf16>, vector<1152x128xbf16>, vector<256x128xf32> -> vector<256x128xf32>
    %c0_13 = arith.constant 0 : index
    %c0_14 = arith.constant 0 : index
    %39 = vector.load %arg7[%c0_13, %c0_14] : memref<1x128xf32, #tpu.memory_space<vmem>>, vector<1x128xf32>
    %40 = vector.broadcast %39 : vector<1x128xf32> to vector<256x128xf32>
    %41 = arith.addf %38, %40 : vector<256x128xf32>
    %cst_15 = arith.constant 0.000000e+00 : f32
    %42 = vector.broadcast %cst_15 : f32 to vector<256x128xf32>
    %43 = arith.maximumf %41, %42 : vector<256x128xf32>
    %44 = arith.truncf %43 : vector<256x128xf32> to vector<256x128xbf16>
    %c0_16 = arith.constant 0 : index
    %c0_17 = arith.constant 0 : index
    %45 = vector.load %arg4[%c0_16, %c0_17] : memref<128x128xbf16, #tpu.memory_space<vmem>>, vector<128x128xbf16>
    %cst_18 = arith.constant dense<0.000000e+00> : vector<256x128xf32>
    %46 = tpu.matmul %44, %45, %cst_18 {dimension_numbers = #tpu.dot_dimension_numbers<[1], [0], [0], [1], [0, 0, 1, 1], [], []>} : vector<256x128xbf16>, vector<128x128xbf16>, vector<256x128xf32> -> vector<256x128xf32>
    %c0_19 = arith.constant 0 : index
    %c0_20 = arith.constant 0 : index
    %47 = vector.load %arg8[%c0_19, %c0_20] : memref<1x128xf32, #tpu.memory_space<vmem>>, vector<1x128xf32>
    %48 = vector.broadcast %47 : vector<1x128xf32> to vector<256x128xf32>
    %49 = arith.addf %46, %48 : vector<256x128xf32>
    %c0_21 = arith.constant 0 : index
    %c0_22 = arith.constant 0 : index
    %c0_23 = arith.constant 0 : index
    %c0_24 = arith.constant 0 : index
    %50 = vector.load %arg1[%c0_21, %c0_22, %c0_23, %c0_24] : memref<1x16x16x128xbf16, #tpu.memory_space<vmem>>, vector<1x16x16x128xbf16>
    %51 = vector.shape_cast %50 : vector<1x16x16x128xbf16> to vector<256x128xbf16>
    %c0_25 = arith.constant 0 : index
    %c0_26 = arith.constant 0 : index
    %52 = vector.load %arg5[%c0_25, %c0_26] : memref<128x128xbf16, #tpu.memory_space<vmem>>, vector<128x128xbf16>
    %cst_27 = arith.constant dense<0.000000e+00> : vector<256x128xf32>
    %53 = tpu.matmul %51, %52, %cst_27 {dimension_numbers = #tpu.dot_dimension_numbers<[1], [0], [0], [1], [0, 0, 1, 1], [], []>} : vector<256x128xbf16>, vector<128x128xbf16>, vector<256x128xf32> -> vector<256x128xf32>
    %54 = arith.addf %49, %53 : vector<256x128xf32>
    %55 = vector.shape_cast %54 : vector<256x128xf32> to vector<1x16x16x128xf32>
    %56 = arith.truncf %55 : vector<1x16x16x128xf32> to vector<1x16x16x128xbf16>
    %c0_28 = arith.constant 0 : index
    %c0_29 = arith.constant 0 : index
    %c0_30 = arith.constant 0 : index
    %c0_31 = arith.constant 0 : index
    %57 = vector.load %arg9[%c0_28, %c0_29, %c0_30, %c0_31] : memref<1x16x16x128xbf16, #tpu.memory_space<vmem>>, vector<1x16x16x128xbf16>
    tpu.vector_store %arg9[%c0_28, %c0_29, %c0_30, %c0_31], %56 {strides = array<i32>} : memref<1x16x16x128xbf16, #tpu.memory_space<vmem>>, vector<1x16x16x128xbf16>,
    return
  }
  func.func @transform_0(%arg0: i32) -> (i32, i32, i32, i32) {
    %c0_i32 = arith.constant 0 : i32
    %c0_i32_0 = arith.constant 0 : i32
    %c0_i32_1 = arith.constant 0 : i32
    %c0_i32_2 = arith.constant 0 : i32
    return %arg0, %c0_i32, %c0_i32_0, %c0_i32_1 : i32, i32, i32, i32
  }
  func.func @transform_1(%arg0: i32) -> (i32, i32) {
    %c0_i32 = arith.constant 0 : i32
    %c0_i32_0 = arith.constant 0 : i32
    %c0_i32_1 = arith.constant 0 : i32
    return %c0_i32, %c0_i32_0 : i32, i32
  }
  func.func @transform_2(%arg0: i32) -> (i32, i32) {
    %c0_i32 = arith.constant 0 : i32
    %c0_i32_0 = arith.constant 0 : i32
    %c0_i32_1 = arith.constant 0 : i32
    return %c0_i32, %c0_i32_0 : i32, i32
  }
  func.func @transform_3(%arg0: i32) -> (i32, i32) {
    %c0_i32 = arith.constant 0 : i32
    %c0_i32_0 = arith.constant 0 : i32
    %c0_i32_1 = arith.constant 0 : i32
    return %c0_i32, %c0_i32_0 : i32, i32
  }
  func.func @transform_4(%arg0: i32) -> (i32, i32) {
    %c0_i32 = arith.constant 0 : i32
    %c0_i32_0 = arith.constant 0 : i32
    %c0_i32_1 = arith.constant 0 : i32
    return %c0_i32, %c0_i32_0 : i32, i32
  }
  func.func @transform_5(%arg0: i32) -> (i32, i32) {
    %c0_i32 = arith.constant 0 : i32
    %c0_i32_0 = arith.constant 0 : i32
    %c0_i32_1 = arith.constant 0 : i32
    return %c0_i32, %c0_i32_0 : i32, i32
  }
  func.func @transform_6(%arg0: i32) -> (i32, i32) {
    %c0_i32 = arith.constant 0 : i32
    %c0_i32_0 = arith.constant 0 : i32
    %c0_i32_1 = arith.constant 0 : i32
    return %c0_i32, %c0_i32_0 : i32, i32
  }
  func.func @transform_7(%arg0: i32) -> (i32, i32) {
    %c0_i32 = arith.constant 0 : i32
    %c0_i32_0 = arith.constant 0 : i32
    %c0_i32_1 = arith.constant 0 : i32
    return %c0_i32, %c0_i32_0 : i32, i32
  }
  func.func @transform_8(%arg0: i32) -> (i32, i32, i32, i32) {
    %c0_i32 = arith.constant 0 : i32
    %c0_i32_0 = arith.constant 0 : i32
    %c0_i32_1 = arith.constant 0 : i32
    %c0_i32_2 = arith.constant 0 : i32
    return %arg0, %c0_i32, %c0_i32_0, %c0_i32_1 : i32, i32, i32, i32
  }
}

</mosaic_0001>

<llo_original>
// kernel: tpu_custom_call.1
$region0: #{tpu_custom_call.1}
  #allocation0 [shape = 'u32[]', space=smem, size = 0x4, offset = 0x4, fixed_abs, tag = 'smem constant byte address 0x4 - core index']
  #allocation1 [shape = 'u32[144,128]{1,0:T(1,128)}', space=vmem, size = 0x12000, scoped, tag = 'internal scratch']
  %s0 = inlined_call_operand.hbm [shape: bf16[2,16,16,128], index: 0, kind: input, shape index: {}]
  %s1 = inlined_call_operand.hbm [shape: bf16[128,128], index: 1, kind: input, shape index: {}]
  %s2 = inlined_call_operand.hbm [shape: bf16[1152,128], index: 2, kind: input, shape index: {}]
  %s3 = inlined_call_operand.hbm [shape: bf16[128,128], index: 3, kind: input, shape index: {}]
  %s4 = inlined_call_operand.hbm [shape: bf16[128,128], index: 4, kind: input, shape index: {}]
  %s5 = inlined_call_operand.vmem [shape: f32[1,128], index: 5, kind: input, shape index: {}]
  %s6 = inlined_call_operand.vmem [shape: f32[1,128], index: 6, kind: input, shape index: {}]
  %s7 = inlined_call_operand.vmem [shape: f32[1,128], index: 7, kind: input, shape index: {}]
  %s8 = inlined_call_operand.hbm [shape: bf16[2,16,16,128], index: 8, kind: output, shape index: {}]
  %s9 = sld [smem:[#allocation0]]
  $region85: #{tpu_custom_call.1} parent=0
    _
  %s11 = ssub.s32 1, %s9
  %s12 = scalar_select 0, %s11, %s9
  $region1: #{tpu_custom_call.1} parent=0
    #allocation2 [shape = 'u8[131072]{0}', space=vmem, size = 0x20000, scoped, tag = 'input window, operand 0']
    #allocation3 [shape = 's32[2]{0}', space=sflag, size = 0x8, scoped, tag = 'scoped memory for tpu_custom_call.1']
    #allocation4 [shape = 's32[2]{0}', space=sflag, size = 0x8, scoped, tag = 'scoped memory for tpu_custom_call.1']
    #allocation5 [shape = 'u8[32768]{0}', space=vmem, size = 0x8000, scoped, tag = 'input window, operand 1, single buffered']
    #allocation6 [shape = 's32[1]{0}', space=sflag, size = 0x4, scoped, tag = 'scoped memory for tpu_custom_call.1']
    #allocation7 [shape = 'u8[294912]{0}', space=vmem, size = 0x48000, scoped, tag = 'input window, operand 2, single buffered']
    #allocation8 [shape = 'u8[32768]{0}', space=vmem, size = 0x8000, scoped, tag = 'input window, operand 3, single buffered']
    #allocation9 [shape = 's32[1]{0}', space=sflag, size = 0x4, scoped, tag = 'scoped memory for tpu_custom_call.1']
    #allocation10 [shape = 'u8[32768]{0}', space=vmem, size = 0x8000, scoped, tag = 'input window, operand 4, single buffered']
    #allocation11 [shape = 'u8[131072]{0}', space=vmem, size = 0x20000, scoped, tag = 'output window, operand 0']
    %13 = vsyncpa [#allocation3], 0
    %s14 = scalar_lea.sflag [#allocation3], 1
    %15 = vsyncpa %s14, 0
    %16 = vsyncpa [#allocation6], 0
    %17 = vsyncpa [#allocation9], 0
    %18 = vsyncpa [#allocation4], 0
    %s19 = scalar_lea.sflag [#allocation4], 1
    %20 = vsyncpa %s19, 0
    loop: start=0, step=1, limit=4
    $region2: #{tpu_custom_call.1} parent=1 // loop_pre_header
      _
    $region3: #{tpu_custom_call.1} parent=1 // loop_header
      %s22 = sphi 0, %s26
      %p23 = scmp.ge.s32.totalorder %s22, 4
      %s32 = sphi 0, %s34
      %s35 = sphi 0, %s32
      %s36 = sphi 0, %s35
      %s52 = sphi 0, %s36
      %s56 = sphi 0, %s56
      %s58 = sphi 0, %s56
      %s59 = sphi 0, %s58
      %s73 = sphi 0, %s59
      %s77 = sphi 0, %s77
      %s79 = sphi 0, %s77
      %s80 = sphi 0, %s79
      %s94 = sphi 0, %s80
      %s98 = sphi 0, %s98
      %s100 = sphi 0, %s98
      %s101 = sphi 0, %s100
      %s115 = sphi 0, %s101
      %s119 = sphi 0, %s119
      %s121 = sphi 0, %s119
      %s122 = sphi 0, %s121
      %s136 = sphi 0, %s122
      %s140 = sphi 0, %s140
      %s142 = sphi 0, %s140
      %s143 = sphi 0, %s142
      %s157 = sphi 0, %s143
      %s161 = sphi 0, %s161
      %s163 = sphi 0, %s161
      %s164 = sphi 0, %s163
      %s178 = sphi 0, %s164
      %s182 = sphi 0, %s182
      %s184 = sphi 0, %s182
      %s185 = sphi 0, %s184
      %s199 = sphi 0, %s185
      %s205 = sphi 0, %s207
      %s208 = sphi 0, %s205
      %s209 = sphi 0, %s208
      %s225 = sphi 0, %s209
    $region4: #{tpu_custom_call.1} parent=1 // loop_header_branch
      %25 = sbr.rel (%p23) target = $region8
    $region5: #{tpu_custom_call.1} parent=1 // loop_body
      %s27 = ssub.s32 %s22, 1
      %s28 = ssub.s32 %s22, 2
      %s29 = sadd.s32 %s22, 1
      %s30 = ssub.s32 %s22, %s29
      %p31 = scmp.eq.s32.totalorder %s30, 0
      %s33 = sadd.s32 %s32, 1
      %s34 = scalar_select %p31, %s32, %s33
      %p37 = pneg %p31
      %p38 = scmp.eq.s32.totalorder %s22, 1
      %p39 = por %p37, %p38
      %p40 = scmp.ne.s32.totalorder %s32, %s35
      %p41 = scmp.eq.s32.totalorder %s22, 0
      %p42 = por %p40, %p41
      %p43 = scmp.ne.s32.totalorder %s32, %s35
      %p44 = scmp.eq.s32.totalorder %s27, 1
      %p45 = por %p43, %p44
      %p46 = scmp.ne.s32.totalorder %s35, %s36
      %p47 = scmp.eq.s32.totalorder %s27, 0
      %p48 = por %p46, %p47
      %p49 = scmp.ne.s32.totalorder %s35, %s36
      %p50 = scmp.eq.s32.totalorder %s28, 1
      %p51 = por %p49, %p50
      %p53 = scmp.ne.s32.totalorder %s36, %s52
      %p54 = scmp.eq.s32.totalorder %s28, 0
      %p55 = por %p53, %p54
      %s57 = sadd.s32 %s56, 1
      %p60 = scmp.eq.s32.totalorder %s22, 1
      %p61 = scmp.ne.s32.totalorder %s56, %s58
      %p62 = scmp.eq.s32.totalorder %s22, 0
      %p63 = por %p61, %p62
      %p64 = scmp.ne.s32.totalorder %s56, %s58
      %p65 = scmp.eq.s32.totalorder %s27, 1
      %p66 = por %p64, %p65
      %p67 = scmp.ne.s32.totalorder %s58, %s59
      %p68 = scmp.eq.s32.totalorder %s27, 0
      %p69 = por %p67, %p68
      %p70 = scmp.ne.s32.totalorder %s58, %s59
      %p71 = scmp.eq.s32.totalorder %s28, 1
      %p72 = por %p70, %p71
      %p74 = scmp.ne.s32.totalorder %s59, %s73
      %p75 = scmp.eq.s32.totalorder %s28, 0
      %p76 = por %p74, %p75
      %s78 = sadd.s32 %s77, 1
      %p81 = scmp.eq.s32.totalorder %s22, 1
      %p82 = scmp.ne.s32.totalorder %s77, %s79
      %p83 = scmp.eq.s32.totalorder %s22, 0
      %p84 = por %p82, %p83
      %p85 = scmp.ne.s32.totalorder %s77, %s79
      %p86 = scmp.eq.s32.totalorder %s27, 1
      %p87 = por %p85, %p86
      %p88 = scmp.ne.s32.totalorder %s79, %s80
      %p89 = scmp.eq.s32.totalorder %s27, 0
      %p90 = por %p88, %p89
      %p91 = scmp.ne.s32.totalorder %s79, %s80
      %p92 = scmp.eq.s32.totalorder %s28, 1
      %p93 = por %p91, %p92
      %p95 = scmp.ne.s32.totalorder %s80, %s94
      %p96 = scmp.eq.s32.totalorder %s28, 0
      %p97 = por %p95, %p96
      %s99 = sadd.s32 %s98, 1
      %p102 = scmp.eq.s32.totalorder %s22, 1
      %p103 = scmp.ne.s32.totalorder %s98, %s100
      %p104 = scmp.eq.s32.totalorder %s22, 0
      %p105 = por %p103, %p104
      %p106 = scmp.ne.s32.totalorder %s98, %s100
      %p107 = scmp.eq.s32.totalorder %s27, 1
      %p108 = por %p106, %p107
      %p109 = scmp.ne.s32.totalorder %s100, %s101
      %p110 = scmp.eq.s32.totalorder %s27, 0
      %p111 = por %p109, %p110
      %p112 = scmp.ne.s32.totalorder %s100, %s101
      %p113 = scmp.eq.s32.totalorder %s28, 1
      %p114 = por %p112, %p113
      %p116 = scmp.ne.s32.totalorder %s101, %s115
      %p117 = scmp.eq.s32.totalorder %s28, 0
      %p118 = por %p116, %p117
      %s120 = sadd.s32 %s119, 1
      %p123 = scmp.eq.s32.totalorder %s22, 1
      %p124 = scmp.ne.s32.totalorder %s119, %s121
      %p125 = scmp.eq.s32.totalorder %s22, 0
      %p126 = por %p124, %p125
      %p127 = scmp.ne.s32.totalorder %s119, %s121
      %p128 = scmp.eq.s32.totalorder %s27, 1
      %p129 = por %p127, %p128
      %p130 = scmp.ne.s32.totalorder %s121, %s122
      %p131 = scmp.eq.s32.totalorder %s27, 0
      %p132 = por %p130, %p131
      %p133 = scmp.ne.s32.totalorder %s121, %s122
      %p134 = scmp.eq.s32.totalorder %s28, 1
      %p135 = por %p133, %p134
      %p137 = scmp.ne.s32.totalorder %s122, %s136
      %p138 = scmp.eq.s32.totalorder %s28, 0
      %p139 = por %p137, %p138
      %s141 = sadd.s32 %s140, 1
      %p144 = scmp.eq.s32.totalorder %s22, 1
      %p145 = scmp.ne.s32.totalorder %s140, %s142
      %p146 = scmp.eq.s32.totalorder %s22, 0
      %p147 = por %p145, %p146
      %p148 = scmp.ne.s32.totalorder %s140, %s142
      %p149 = scmp.eq.s32.totalorder %s27, 1
      %p150 = por %p148, %p149
      %p151 = scmp.ne.s32.totalorder %s142, %s143
      %p152 = scmp.eq.s32.totalorder %s27, 0
      %p153 = por %p151, %p152
      %p154 = scmp.ne.s32.totalorder %s142, %s143
      %p155 = scmp.eq.s32.totalorder %s28, 1
      %p156 = por %p154, %p155
      %p158 = scmp.ne.s32.totalorder %s143, %s157
      %p159 = scmp.eq.s32.totalorder %s28, 0
      %p160 = por %p158, %p159
      %s162 = sadd.s32 %s161, 1
      %p165 = scmp.eq.s32.totalorder %s22, 1
      %p166 = scmp.ne.s32.totalorder %s161, %s163
      %p167 = scmp.eq.s32.totalorder %s22, 0
      %p168 = por %p166, %p167
      %p169 = scmp.ne.s32.totalorder %s161, %s163
      %p170 = scmp.eq.s32.totalorder %s27, 1
      %p171 = por %p169, %p170
      %p172 = scmp.ne.s32.totalorder %s163, %s164
      %p173 = scmp.eq.s32.totalorder %s27, 0
      %p174 = por %p172, %p173
      %p175 = scmp.ne.s32.totalorder %s163, %s164
      %p176 = scmp.eq.s32.totalorder %s28, 1
      %p177 = por %p175, %p176
      %p179 = scmp.ne.s32.totalorder %s164, %s178
      %p180 = scmp.eq.s32.totalorder %s28, 0
      %p181 = por %p179, %p180
      %s183 = sadd.s32 %s182, 1
      %p186 = scmp.eq.s32.totalorder %s22, 1
      %p187 = scmp.ne.s32.totalorder %s182, %s184
      %p188 = scmp.eq.s32.totalorder %s22, 0
      %p189 = por %p187, %p188
      %p190 = scmp.ne.s32.totalorder %s182, %s184
      %p191 = scmp.eq.s32.totalorder %s27, 1
      %p192 = por %p190, %p191
      %p193 = scmp.ne.s32.totalorder %s184, %s185
      %p194 = scmp.eq.s32.totalorder %s27, 0
      %p195 = por %p193, %p194
      %p196 = scmp.ne.s32.totalorder %s184, %s185
      %p197 = scmp.eq.s32.totalorder %s28, 1
      %p198 = por %p196, %p197
      %p200 = scmp.ne.s32.totalorder %s185, %s199
      %p201 = scmp.eq.s32.totalorder %s28, 0
      %p202 = por %p200, %p201
      %s203 = ssub.s32 %s22, %s29
      %p204 = scmp.eq.s32.totalorder %s203, 0
      %s206 = sadd.s32 %s205, 1
      %s207 = scalar_select %p204, %s205, %s206
      %p210 = pneg %p204
      %p211 = scmp.eq.s32.totalorder %s22, 1
      %p212 = por %p210, %p211
      %p213 = scmp.ne.s32.totalorder %s205, %s208
      %p214 = scmp.eq.s32.totalorder %s22, 0
      %p215 = por %p213, %p214
      %p216 = scmp.ne.s32.totalorder %s205, %s208
      %p217 = scmp.eq.s32.totalorder %s27, 1
      %p218 = por %p216, %p217
      %p219 = scmp.ne.s32.totalorder %s208, %s209
      %p220 = scmp.eq.s32.totalorder %s27, 0
      %p221 = por %p219, %p220
      %p222 = scmp.ne.s32.totalorder %s208, %s209
      %p223 = scmp.eq.s32.totalorder %s28, 1
      %p224 = por %p222, %p223
      %p226 = scmp.ne.s32.totalorder %s209, %s225
      %p227 = scmp.eq.s32.totalorder %s28, 0
      %p228 = por %p226, %p227
      %p229 = scmp.le.s32.totalorder 1, %s22
      %p230 = scmp.lt.s32.totalorder %s22, 3
      %p231 = pnand %p229, %p230
      %p232 = pneg %p231
      // Predicated region
      $region9: #{tpu_custom_call.1} parent=5 // pred_check
        _
      $region10: #{tpu_custom_call.1} parent=5 // pred_check_branch
        %234 = sbr.rel (%p231) target = $region12
      $region11: #{tpu_custom_call.1} parent=5 // pred_region
        %s235 = ssub.s32 %s22, 1
        // Predicated region
        $region13: #{tpu_custom_call.1} parent=11 // pred_check
          %p236 = pneg %p69
        $region14: #{tpu_custom_call.1} parent=11 // pred_check_branch
          %238 = sbr.rel (%p236) target = $region16
        $region15: #{tpu_custom_call.1} parent=11 // pred_region
          %s240 = ssub.s32 1024, 1024
          %241 = vsyncadd [#allocation6], %s240
          %s242 = sshll.u32 [#allocation5], 4
          %s243 = int_to_ptr.vmem [resolvable:$true] %s242
          %248 = dma.hbm_to_vmem [thread:$0]  %s1, 1024, %s243, [#allocation6], 64, 64, 4
        $region16: #{tpu_custom_call.1} parent=11 // pred_fallthru
          _
        // Predicated region
        $region17: #{tpu_custom_call.1} parent=11 // pred_check
          %p249 = pneg %p90
        $region18: #{tpu_custom_call.1} parent=11 // pred_check_branch
          %251 = sbr.rel (%p249) target = $region20
        $region19: #{tpu_custom_call.1} parent=11 // pred_region
          %s253 = ssub.s32 9216, 9216
          %254 = vsyncadd [#allocation6], %s253
          %s255 = sshll.u32 [#allocation7], 4
          %s256 = int_to_ptr.vmem [resolvable:$true] %s255
          %261 = dma.hbm_to_vmem [thread:$0]  %s2, 9216, %s256, [#allocation6], 64, 64, 4
        $region20: #{tpu_custom_call.1} parent=11 // pred_fallthru
          _
        // Predicated region
        $region21: #{tpu_custom_call.1} parent=11 // pred_check
          %p262 = pneg %p111
        $region22: #{tpu_custom_call.1} parent=11 // pred_check_branch
          %264 = sbr.rel (%p262) target = $region24
        $region23: #{tpu_custom_call.1} parent=11 // pred_region
          %s266 = ssub.s32 1024, 1024
          %267 = vsyncadd [#allocation9], %s266
          %s268 = sshll.u32 [#allocation8], 4
          %s269 = int_to_ptr.vmem [resolvable:$true] %s268
          %274 = dma.hbm_to_vmem [thread:$0]  %s3, 1024, %s269, [#allocation9], 64, 64, 4
        $region24: #{tpu_custom_call.1} parent=11 // pred_fallthru
          _
        // Predicated region
        $region25: #{tpu_custom_call.1} parent=11 // pred_check
          %p275 = pneg %p132
        $region26: #{tpu_custom_call.1} parent=11 // pred_check_branch
          %277 = sbr.rel (%p275) target = $region28
        $region27: #{tpu_custom_call.1} parent=11 // pred_region
          %s279 = ssub.s32 1024, 1024
          %280 = vsyncadd [#allocation9], %s279
          %s281 = sshll.u32 [#allocation10], 4
          %s282 = int_to_ptr.vmem [resolvable:$true] %s281
          %287 = dma.hbm_to_vmem [thread:$0]  %s4, 1024, %s282, [#allocation9], 64, 64, 4
        $region28: #{tpu_custom_call.1} parent=11 // pred_fallthru
          _
        // Predicated region
        $region29: #{tpu_custom_call.1} parent=11 // pred_check
          %p288 = pneg %p153
        $region30: #{tpu_custom_call.1} parent=11 // pred_check_branch
          %290 = sbr.rel (%p288) target = $region32
        $region31: #{tpu_custom_call.1} parent=11 // pred_region
          _
        $region32: #{tpu_custom_call.1} parent=11 // pred_fallthru
          _
        // Predicated region
        $region33: #{tpu_custom_call.1} parent=11 // pred_check
          %p291 = pneg %p174
        $region34: #{tpu_custom_call.1} parent=11 // pred_check_branch
          %293 = sbr.rel (%p291) target = $region36
        $region35: #{tpu_custom_call.1} parent=11 // pred_region
          _
        $region36: #{tpu_custom_call.1} parent=11 // pred_fallthru
          _
        // Predicated region
        $region37: #{tpu_custom_call.1} parent=11 // pred_check
          %p294 = pneg %p195
        $region38: #{tpu_custom_call.1} parent=11 // pred_check_branch
          %296 = sbr.rel (%p294) target = $region40
        $region39: #{tpu_custom_call.1} parent=11 // pred_region
          _
        $region40: #{tpu_custom_call.1} parent=11 // pred_fallthru
          _
      $region12: #{tpu_custom_call.1} parent=5 // pred_fallthru
        _
      %p297 = scmp.lt.s32.totalorder %s22, 2
      // Predicated region
      $region41: #{tpu_custom_call.1} parent=5 // pred_check
        %p298 = pneg %p297
      $region42: #{tpu_custom_call.1} parent=5 // pred_check_branch
        %300 = sbr.rel (%p298) target = $region44
      $region43: #{tpu_custom_call.1} parent=5 // pred_region
        // Predicated region
        $region45: #{tpu_custom_call.1} parent=43 // pred_check
          %p301 = pneg %p42
        $region46: #{tpu_custom_call.1} parent=43 // pred_check_branch
          %303 = sbr.rel (%p301) target = $region48
        $region47: #{tpu_custom_call.1} parent=43 // pred_region
          %s304 = sand.u32 %s32, 1
          %s305 = scalar_lea.sflag [#allocation3], %s304
          %s306 = sand.u32 %s32, 1
          %s307 = smul.addr %s306, 128
          %s308 = scalar_lea.vmem [#allocation2], %s307
          %s310 = ssub.s32 2048, 2048
          %311 = vsyncadd %s305, %s310
          %s312 = smul.addr %s22, 32
          %s313 = smul.addr %s312, 64
          %s314 = scalar_lea.hbm %s0, %s313
          %s315 = sshll.u32 %s308, 4
          %s316 = int_to_ptr.vmem [resolvable:$true] %s315
          %321 = dma.hbm_to_vmem [thread:$0]  %s314, 2048, %s316, %s305, 64, 64, 4
        $region48: #{tpu_custom_call.1} parent=43 // pred_fallthru
          _
      $region44: #{tpu_custom_call.1} parent=5 // pred_fallthru
        _
      %p322 = scmp.le.s32.totalorder 1, %s22
      %p323 = scmp.lt.s32.totalorder %s22, 3
      %p324 = pnand %p322, %p323
      %p325 = pneg %p324
      // Predicated region
      $region49: #{tpu_custom_call.1} parent=5 // pred_check
        _
      $region50: #{tpu_custom_call.1} parent=5 // pred_check_branch
        %327 = sbr.rel (%p324) target = $region52
      $region51: #{tpu_custom_call.1} parent=5 // pred_region
        %s328 = ssub.s32 %s22, 1
        %s329 = sand.u32 %s35, 1
        %s330 = scalar_lea.sflag [#allocation3], %s329
        %s331 = sand.u32 %s35, 1
        %s332 = smul.addr %s331, 128
        %s333 = scalar_lea.vmem [#allocation2], %s332
        // Predicated region
        $region53: #{tpu_custom_call.1} parent=51 // pred_check
          %p334 = pneg %p48
        $region54: #{tpu_custom_call.1} parent=51 // pred_check_branch
          %336 = sbr.rel (%p334) target = $region56
        $region55: #{tpu_custom_call.1} parent=51 // pred_region
          %337 = dma.done %s330, 2048
        $region56: #{tpu_custom_call.1} parent=51 // pred_fallthru
          _
        // Predicated region
        $region57: #{tpu_custom_call.1} parent=51 // pred_check
          %p338 = pneg %p69
        $region58: #{tpu_custom_call.1} parent=51 // pred_check_branch
          %340 = sbr.rel (%p338) target = $region60
        $region59: #{tpu_custom_call.1} parent=51 // pred_region
          %341 = dma.done [#allocation6], 1024
        $region60: #{tpu_custom_call.1} parent=51 // pred_fallthru
          _
        // Predicated region
        $region61: #{tpu_custom_call.1} parent=51 // pred_check
          %p342 = pneg %p90
        $region62: #{tpu_custom_call.1} parent=51 // pred_check_branch
          %344 = sbr.rel (%p342) target = $region64
        $region63: #{tpu_custom_call.1} parent=51 // pred_region
          %345 = dma.done [#allocation6], 9216
        $region64: #{tpu_custom_call.1} parent=51 // pred_fallthru
          _
        // Predicated region
        $region65: #{tpu_custom_call.1} parent=51 // pred_check
          %p346 = pneg %p111
        $region66: #{tpu_custom_call.1} parent=51 // pred_check_branch
          %348 = sbr.rel (%p346) target = $region68
        $region67: #{tpu_custom_call.1} parent=51 // pred_region
          %349 = dma.done [#allocation9], 1024
        $region68: #{tpu_custom_call.1} parent=51 // pred_fallthru
          _
        // Predicated region
        $region69: #{tpu_custom_call.1} parent=51 // pred_check
          %p350 = pneg %p132
        $region70: #{tpu_custom_call.1} parent=51 // pred_check_branch
          %352 = sbr.rel (%p350) target = $region72
        $region71: #{tpu_custom_call.1} parent=51 // pred_region
          %353 = dma.done [#allocation9], 1024
        $region72: #{tpu_custom_call.1} parent=51 // pred_fallthru
          _
        %s354 = sand.u32 %s35, 1
        %s355 = scalar_lea.sflag [#allocation3], %s354
        %s356 = sand.u32 %s35, 1
        %s357 = smul.addr %s356, 128
        %s358 = scalar_lea.vmem [#allocation2], %s357
        %p359 = pneg %p48
        %p360 = pneg %p45
        %p361 = pneg %p69
        %p362 = pneg %p66
        %p363 = pneg %p90
        %p364 = pneg %p87
        %p365 = pneg %p111
        %p366 = pneg %p108
        %p367 = pneg %p132
        %p368 = pneg %p129
        %p369 = pneg %p153
        %p370 = pneg %p150
        %p371 = pneg %p174
        %p372 = pneg %p171
        %p373 = pneg %p195
        %p374 = pneg %p192
        %p375 = pneg %p221
        %p376 = pneg %p218
        %s377 = sand.u32 %s208, 1
        %s378 = scalar_lea.sflag [#allocation4], %s377
        %s379 = sand.u32 %s208, 1
        %s380 = smul.addr %s379, 128
        %s381 = scalar_lea.vmem [#allocation11], %s380
        %v383 = vld [vmem:[%s333] sm:$0xf]
        %v384 = vld [vmem:[%s333 + $0x4] sm:$0xf]
        %v385 = vld [vmem:[%s333 + $0x8] sm:$0xf]
        %v386 = vld [vmem:[%s333 + $0xc] sm:$0xf]
        %v387 = vld [vmem:[%s333 + $0x10] sm:$0xf]
        %v388 = vld [vmem:[%s333 + $0x14] sm:$0xf]
        %v389 = vld [vmem:[%s333 + $0x18] sm:$0xf]
        %v390 = vld [vmem:[%s333 + $0x1c] sm:$0xf]
        %v391 = vld [vmem:[%s333 + $0x20] sm:$0xf]
        %v392 = vld [vmem:[%s333 + $0x24] sm:$0xf]
        %v393 = vld [vmem:[%s333 + $0x28] sm:$0xf]
        %v394 = vld [vmem:[%s333 + $0x2c] sm:$0xf]
        %v395 = vld [vmem:[%s333 + $0x30] sm:$0xf]
        %v396 = vld [vmem:[%s333 + $0x34] sm:$0xf]
        %v397 = vld [vmem:[%s333 + $0x38] sm:$0xf]
        %v398 = vld [vmem:[%s333 + $0x3c] sm:$0xf]
        %v399 = vld [vmem:[%s333 + $0x40] sm:$0xf]
        %v400 = vld [vmem:[%s333 + $0x44] sm:$0xf]
        %v401 = vld [vmem:[%s333 + $0x48] sm:$0xf]
        %v402 = vld [vmem:[%s333 + $0x4c] sm:$0xf]
        %v403 = vld [vmem:[%s333 + $0x50] sm:$0xf]
        %v404 = vld [vmem:[%s333 + $0x54] sm:$0xf]
        %v405 = vld [vmem:[%s333 + $0x58] sm:$0xf]
        %v406 = vld [vmem:[%s333 + $0x5c] sm:$0xf]
        %v407 = vld [vmem:[%s333 + $0x60] sm:$0xf]
        %v408 = vld [vmem:[%s333 + $0x64] sm:$0xf]
        %v409 = vld [vmem:[%s333 + $0x68] sm:$0xf]
        %v410 = vld [vmem:[%s333 + $0x6c] sm:$0xf]
        %v411 = vld [vmem:[%s333 + $0x70] sm:$0xf]
        %v412 = vld [vmem:[%s333 + $0x74] sm:$0xf]
        %v413 = vld [vmem:[%s333 + $0x78] sm:$0xf]
        %v414 = vld [vmem:[%s333 + $0x7c] sm:$0xf]
        %v415 = vld [vmem:[#allocation5] sm:$0xf]
        %v416 = vld [vmem:[#allocation5 + $0x4] sm:$0xf]
        %v417 = vld [vmem:[#allocation5 + $0x8] sm:$0xf]
        %v418 = vld [vmem:[#allocation5 + $0xc] sm:$0xf]
        %v419 = vld [vmem:[#allocation5 + $0x10] sm:$0xf]
        %v420 = vld [vmem:[#allocation5 + $0x14] sm:$0xf]
        %v421 = vld [vmem:[#allocation5 + $0x18] sm:$0xf]
        %v422 = vld [vmem:[#allocation5 + $0x1c] sm:$0xf]
        %v423 = vld [vmem:[#allocation5 + $0x20] sm:$0xf]
        %v424 = vld [vmem:[#allocation5 + $0x24] sm:$0xf]
        %v425 = vld [vmem:[#allocation5 + $0x28] sm:$0xf]
        %v426 = vld [vmem:[#allocation5 + $0x2c] sm:$0xf]
        %v427 = vld [vmem:[#allocation5 + $0x30] sm:$0xf]
        %v428 = vld [vmem:[#allocation5 + $0x34] sm:$0xf]
        %v429 = vld [vmem:[#allocation5 + $0x38] sm:$0xf]
        %v430 = vld [vmem:[#allocation5 + $0x3c] sm:$0xf]
        %v431 = vld [vmem:[%s5] sm:$0x1]
        %v433 = vlaneseq
        %v434 = vshrl.u32 %v433, 7
        %v435 = vsub.s32 0, %v434
        %v436 = vrot.slane %v431, %v435
        %v470 = vunpack.c.l.b16 %v383
        %v471 = vunpack.c.l.b16 %v384
        %v472 = vunpack.c.l.b16 %v385
        %v473 = vunpack.c.l.b16 %v386
        %v474 = vunpack.c.l.b16 %v387
        %v475 = vunpack.c.l.b16 %v388
        %v476 = vunpack.c.l.b16 %v389
        %v477 = vunpack.c.l.b16 %v390
        %v478 = vunpack.c.l.b16 %v391
        %v479 = vunpack.c.l.b16 %v392
        %v480 = vunpack.c.l.b16 %v393
        %v481 = vunpack.c.l.b16 %v394
        %v482 = vunpack.c.l.b16 %v395
        %v483 = vunpack.c.l.b16 %v396
        %v484 = vunpack.c.l.b16 %v397
        %v485 = vunpack.c.l.b16 %v398
        %v486 = vunpack.c.l.b16 %v399
        %v487 = vunpack.c.l.b16 %v400
        %v488 = vunpack.c.l.b16 %v401
        %v489 = vunpack.c.l.b16 %v402
        %v490 = vunpack.c.l.b16 %v403
        %v491 = vunpack.c.l.b16 %v404
        %v492 = vunpack.c.l.b16 %v405
        %v493 = vunpack.c.l.b16 %v406
        %v494 = vunpack.c.l.b16 %v407
        %v495 = vunpack.c.l.b16 %v408
        %v496 = vunpack.c.l.b16 %v409
        %v497 = vunpack.c.l.b16 %v410
        %v498 = vunpack.c.l.b16 %v411
        %v499 = vunpack.c.l.b16 %v412
        %v500 = vunpack.c.l.b16 %v413
        %v501 = vunpack.c.l.b16 %v414
        %v502 = vpack.c.b16 %v471, %v470
        %v503 = vpack.c.b16 %v473, %v472
        %v504 = vpack.c.b16 %v475, %v474
        %v505 = vpack.c.b16 %v477, %v476
        %v506 = vpack.c.b16 %v479, %v478
        %v507 = vpack.c.b16 %v481, %v480
        %v508 = vpack.c.b16 %v483, %v482
        %v509 = vpack.c.b16 %v485, %v484
        %v510 = vpack.c.b16 %v487, %v486
        %v511 = vpack.c.b16 %v489, %v488
        %v512 = vpack.c.b16 %v491, %v490
        %v513 = vpack.c.b16 %v493, %v492
        %v514 = vpack.c.b16 %v495, %v494
        %v515 = vpack.c.b16 %v497, %v496
        %v516 = vpack.c.b16 %v499, %v498
        %v517 = vpack.c.b16 %v501, %v500
        %v550 = vunpack.c.l.b16 %v415
        %v551 = vunpack.c.l.b16 %v416
        %v552 = vunpack.c.l.b16 %v417
        %v553 = vunpack.c.l.b16 %v418
        %v554 = vunpack.c.l.b16 %v419
        %v555 = vunpack.c.l.b16 %v420
        %v556 = vunpack.c.l.b16 %v421
        %v557 = vunpack.c.l.b16 %v422
        %v558 = vunpack.c.l.b16 %v423
        %v559 = vunpack.c.l.b16 %v424
        %v560 = vunpack.c.l.b16 %v425
        %v561 = vunpack.c.l.b16 %v426
        %v562 = vunpack.c.l.b16 %v427
        %v563 = vunpack.c.l.b16 %v428
        %v564 = vunpack.c.l.b16 %v429
        %v565 = vunpack.c.l.b16 %v430
        %v566 = vpack.c.b16 %v551, %v550
        %v567 = vpack.c.b16 %v553, %v552
        %v568 = vpack.c.b16 %v555, %v554
        %v569 = vpack.c.b16 %v557, %v556
        %v570 = vpack.c.b16 %v559, %v558
        %v571 = vpack.c.b16 %v561, %v560
        %v572 = vpack.c.b16 %v563, %v562
        %v573 = vpack.c.b16 %v565, %v564
        %582 = vmatprep.subr.bf16.mxu0 0
        %583 = vmatpush1.bf16.msra.mxu0 %v566
        %584 = vmatprep.subr.bf16.mxu0 0
        %585 = vmatpush1.bf16.msra.mxu0 %v567
        %586 = vmatprep.subr.bf16.mxu0 0
        %587 = vmatpush1.bf16.msra.mxu0 %v568
        %588 = vmatprep.subr.bf16.mxu0 0
        %589 = vmatpush1.bf16.msra.mxu0 %v569
        %590 = vmatprep.subr.bf16.mxu0 0
        %591 = vmatpush1.bf16.msra.mxu0 %v570
        %592 = vmatprep.subr.bf16.mxu0 0
        %593 = vmatpush1.bf16.msra.mxu0 %v571
        %594 = vmatprep.subr.bf16.mxu0 0
        %595 = vmatpush1.bf16.msra.mxu0 %v572
        %596 = vmatprep.subr.bf16.mxu0 0
        %597 = vmatpush1.bf16.msra.mxu0 %v573
        %598 = vmatprep.subr.bf16.mxu0 0
        %599 = vmatpush1.bf16.msra.mxu0 0
        %600 = vmatprep.subr.bf16.mxu0 0
        %601 = vmatpush1.bf16.msra.mxu0 0
        %602 = vmatprep.subr.bf16.mxu0 0
        %603 = vmatpush1.bf16.msra.mxu0 0
        %604 = vmatprep.subr.bf16.mxu0 0
        %605 = vmatpush1.bf16.msra.mxu0 0
        %606 = vmatprep.subr.bf16.mxu0 0
        %607 = vmatpush1.bf16.msra.mxu0 0
        %608 = vmatprep.subr.bf16.mxu0 0
        %609 = vmatpush1.bf16.msra.mxu0 0
        %610 = vmatprep.subr.bf16.mxu0 0
        %611 = vmatpush1.bf16.msra.mxu0 0
        %612 = vmatprep.subr.bf16.mxu0 0
        %613 = vmatpush1.bf16.msra.mxu0 0
        %614 = vmatprep.mubr.bf16.mxu0 0
        %615 = vmatmul.mubr.bf16.gmra.mrb[0].mxu0 %v502
        %v616 = vpop.f32.mrb[0].mxu0
        %v617 = vadd.f32 %v436, %v616
        %v618 = vpop.f32.mrb[0].mxu0
        %v619 = vpop.f32.mrb[0].mxu0
        %v620 = vadd.f32 %v436, %v619
        %v621 = vpop.f32.mrb[0].mxu0
        %622 = vmatprep.mubr.bf16.mxu0 0
        %623 = vmatmul.mubr.bf16.gmra.mrb[0].mxu0 %v503
        %v624 = vpop.f32.mrb[0].mxu0
        %v625 = vadd.f32 %v436, %v624
        %v626 = vpop.f32.mrb[0].mxu0
        %v627 = vpop.f32.mrb[0].mxu0
        %v628 = vadd.f32 %v436, %v627
        %v629 = vpop.f32.mrb[0].mxu0
        %630 = vmatprep.mubr.bf16.mxu0 0
        %631 = vmatmul.mubr.bf16.gmra.mrb[0].mxu0 %v504
        %v632 = vpop.f32.mrb[0].mxu0
        %v633 = vadd.f32 %v436, %v632
        %v634 = vpop.f32.mrb[0].mxu0
        %v635 = vpop.f32.mrb[0].mxu0
        %v636 = vadd.f32 %v436, %v635
        %v637 = vpop.f32.mrb[0].mxu0
        %638 = vmatprep.mubr.bf16.mxu0 0
        %639 = vmatmul.mubr.bf16.gmra.mrb[0].mxu0 %v505
        %v640 = vpop.f32.mrb[0].mxu0
        %v641 = vadd.f32 %v436, %v640
        %v642 = vpop.f32.mrb[0].mxu0
        %v643 = vpop.f32.mrb[0].mxu0
        %v644 = vadd.f32 %v436, %v643
        %v645 = vpop.f32.mrb[0].mxu0
        %646 = vmatprep.mubr.bf16.mxu0 0
        %647 = vmatmul.mubr.bf16.gmra.mrb[0].mxu0 %v506
        %v648 = vpop.f32.mrb[0].mxu0
        %v649 = vadd.f32 %v436, %v648
        %v650 = vpop.f32.mrb[0].mxu0
        %v651 = vpop.f32.mrb[0].mxu0
        %v652 = vadd.f32 %v436, %v651
        %v653 = vpop.f32.mrb[0].mxu0
        %654 = vmatprep.mubr.bf16.mxu0 0
        %655 = vmatmul.mubr.bf16.gmra.mrb[0].mxu0 %v507
        %v656 = vpop.f32.mrb[0].mxu0
        %v657 = vadd.f32 %v436, %v656
        %v658 = vpop.f32.mrb[0].mxu0
        %v659 = vpop.f32.mrb[0].mxu0
        %v660 = vadd.f32 %v436, %v659
        %v661 = vpop.f32.mrb[0].mxu0
        %662 = vmatprep.mubr.bf16.mxu0 0
        %663 = vmatmul.mubr.bf16.gmra.mrb[0].mxu0 %v508
        %v664 = vpop.f32.mrb[0].mxu0
        %v665 = vadd.f32 %v436, %v664
        %v666 = vpop.f32.mrb[0].mxu0
        %v667 = vpop.f32.mrb[0].mxu0
        %v668 = vadd.f32 %v436, %v667
        %v669 = vpop.f32.mrb[0].mxu0
        %670 = vmatprep.mubr.bf16.mxu0 0
        %671 = vmatmul.mubr.bf16.gmra.mrb[0].mxu0 %v509
        %v672 = vpop.f32.mrb[0].mxu0
        %v673 = vadd.f32 %v436, %v672
        %v674 = vpop.f32.mrb[0].mxu0
        %v675 = vpop.f32.mrb[0].mxu0
        %v676 = vadd.f32 %v436, %v675
        %v677 = vpop.f32.mrb[0].mxu0
        %678 = vmatprep.mubr.bf16.mxu0 0
        %679 = vmatmul.mubr.bf16.gmra.mrb[0].mxu0 %v510
        %v680 = vpop.f32.mrb[0].mxu0
        %v681 = vadd.f32 %v436, %v680
        %v682 = vpop.f32.mrb[0].mxu0
        %v683 = vpop.f32.mrb[0].mxu0
        %v684 = vadd.f32 %v436, %v683
        %v685 = vpop.f32.mrb[0].mxu0
        %686 = vmatprep.mubr.bf16.mxu0 0
        %687 = vmatmul.mubr.bf16.gmra.mrb[0].mxu0 %v511
        %v688 = vpop.f32.mrb[0].mxu0
        %v689 = vadd.f32 %v436, %v688
        %v690 = vpop.f32.mrb[0].mxu0
        %v691 = vpop.f32.mrb[0].mxu0
        %v692 = vadd.f32 %v436, %v691
        %v693 = vpop.f32.mrb[0].mxu0
        %694 = vmatprep.mubr.bf16.mxu0 0
        %695 = vmatmul.mubr.bf16.gmra.mrb[0].mxu0 %v512
        %v696 = vpop.f32.mrb[0].mxu0
        %v697 = vadd.f32 %v436, %v696
        %v698 = vpop.f32.mrb[0].mxu0
        %v699 = vpop.f32.mrb[0].mxu0
        %v700 = vadd.f32 %v436, %v699
        %v701 = vpop.f32.mrb[0].mxu0
        %702 = vmatprep.mubr.bf16.mxu0 0
        %703 = vmatmul.mubr.bf16.gmra.mrb[0].mxu0 %v513
        %v704 = vpop.f32.mrb[0].mxu0
        %v705 = vadd.f32 %v436, %v704
        %v706 = vpop.f32.mrb[0].mxu0
        %v707 = vpop.f32.mrb[0].mxu0
        %v708 = vadd.f32 %v436, %v707
        %v709 = vpop.f32.mrb[0].mxu0
        %710 = vmatprep.mubr.bf16.mxu0 0
        %711 = vmatmul.mubr.bf16.gmra.mrb[0].mxu0 %v514
        %v712 = vpop.f32.mrb[0].mxu0
        %v713 = vadd.f32 %v436, %v712
        %v714 = vpop.f32.mrb[0].mxu0
        %v715 = vpop.f32.mrb[0].mxu0
        %v716 = vadd.f32 %v436, %v715
        %v717 = vpop.f32.mrb[0].mxu0
        %718 = vmatprep.mubr.bf16.mxu0 0
        %719 = vmatmul.mubr.bf16.gmra.mrb[0].mxu0 %v515
        %v720 = vpop.f32.mrb[0].mxu0
        %v721 = vadd.f32 %v436, %v720
        %v722 = vpop.f32.mrb[0].mxu0
        %v723 = vpop.f32.mrb[0].mxu0
        %v724 = vadd.f32 %v436, %v723
        %v725 = vpop.f32.mrb[0].mxu0
        %726 = vmatprep.mubr.bf16.mxu0 0
        %727 = vmatmul.mubr.bf16.gmra.mrb[0].mxu0 %v516
        %v728 = vpop.f32.mrb[0].mxu0
        %v729 = vadd.f32 %v436, %v728
        %v730 = vpop.f32.mrb[0].mxu0
        %v731 = vpop.f32.mrb[0].mxu0
        %v732 = vadd.f32 %v436, %v731
        %v733 = vpop.f32.mrb[0].mxu0
        %734 = vmatprep.mubr.bf16.mxu0 0
        %735 = vmatmul.mubr.bf16.gmra.mrb[0].mxu0 %v517
        %v736 = vpop.f32.mrb[0].mxu0
        %v737 = vadd.f32 %v436, %v736
        %v738 = vpop.f32.mrb[0].mxu0
        %v739 = vpop.f32.mrb[0].mxu0
        %v740 = vadd.f32 %v436, %v739
        %v741 = vpop.f32.mrb[0].mxu0
        %742 = vdwg.mxu0
        %v743 = vmax.f32 %v617, 0.0
        %v744 = vmax.f32 %v620, 0.0
        %v745 = vmax.f32 %v625, 0.0
        %v746 = vmax.f32 %v628, 0.0
        %v747 = vmax.f32 %v633, 0.0
        %v748 = vmax.f32 %v636, 0.0
        %v749 = vmax.f32 %v641, 0.0
        %v750 = vmax.f32 %v644, 0.0
        %v751 = vmax.f32 %v649, 0.0
        %v752 = vmax.f32 %v652, 0.0
        %v753 = vmax.f32 %v657, 0.0
        %v754 = vmax.f32 %v660, 0.0
        %v755 = vmax.f32 %v665, 0.0
        %v756 = vmax.f32 %v668, 0.0
        %v757 = vmax.f32 %v673, 0.0
        %v758 = vmax.f32 %v676, 0.0
        %v759 = vmax.f32 %v681, 0.0
        %v760 = vmax.f32 %v684, 0.0
        %v761 = vmax.f32 %v689, 0.0
        %v762 = vmax.f32 %v692, 0.0
        %v763 = vmax.f32 %v697, 0.0
        %v764 = vmax.f32 %v700, 0.0
        %v765 = vmax.f32 %v705, 0.0
        %v766 = vmax.f32 %v708, 0.0
        %v767 = vmax.f32 %v713, 0.0
        %v768 = vmax.f32 %v716, 0.0
        %v769 = vmax.f32 %v721, 0.0
        %v770 = vmax.f32 %v724, 0.0
        %v771 = vmax.f32 %v729, 0.0
        %v772 = vmax.f32 %v732, 0.0
        %v773 = vmax.f32 %v737, 0.0
        %v774 = vmax.f32 %v740, 0.0
        %v775 = vpack.c.bf16 %v744, %v743
        %v776 = vpack.c.bf16 %v746, %v745
        %v777 = vpack.c.bf16 %v748, %v747
        %v778 = vpack.c.bf16 %v750, %v749
        %v779 = vpack.c.bf16 %v752, %v751
        %v780 = vpack.c.bf16 %v754, %v753
        %v781 = vpack.c.bf16 %v756, %v755
        %v782 = vpack.c.bf16 %v758, %v757
        %v783 = vpack.c.bf16 %v760, %v759
        %v784 = vpack.c.bf16 %v762, %v761
        %v785 = vpack.c.bf16 %v764, %v763
        %v786 = vpack.c.bf16 %v766, %v765
        %v787 = vpack.c.bf16 %v768, %v767
        %v788 = vpack.c.bf16 %v770, %v769
        %v789 = vpack.c.bf16 %v772, %v771
        %v790 = vpack.c.bf16 %v774, %v773
        %v792 = vshrl.u32 0, 16
        %v794 = vrot.slane %v792, 7
        %v795 = vshll.u32 0, 16
        %v797 = vor.u32 %v794, %v795
        %v799 = vshrl.u32 %v775, 16
        %v801 = vrot.slane %v799, 7
        %v802 = vshll.u32 %v775, 16
        %v804 = vor.u32 %v801, %v802
        %v806 = vshrl.u32 %v776, 16
        %v808 = vrot.slane %v806, 7
        %v809 = vshll.u32 %v776, 16
        %v811 = vor.u32 %v808, %v809
        %v813 = vshrl.u32 %v777, 16
        %v815 = vrot.slane %v813, 7
        %v816 = vshll.u32 %v777, 16
        %v818 = vor.u32 %v815, %v816
        %v820 = vshrl.u32 %v778, 16
        %v822 = vrot.slane %v820, 7
        %v823 = vshll.u32 %v778, 16
        %v825 = vor.u32 %v822, %v823
        %v827 = vshrl.u32 %v779, 16
        %v829 = vrot.slane %v827, 7
        %v830 = vshll.u32 %v779, 16
        %v832 = vor.u32 %v829, %v830
        %v834 = vshrl.u32 %v780, 16
        %v836 = vrot.slane %v834, 7
        %v837 = vshll.u32 %v780, 16
        %v839 = vor.u32 %v836, %v837
        %v841 = vshrl.u32 %v781, 16
        %v843 = vrot.slane %v841, 7
        %v844 = vshll.u32 %v781, 16
        %v846 = vor.u32 %v843, %v844
        %v848 = vshrl.u32 %v782, 16
        %v850 = vrot.slane %v848, 7
        %v851 = vshll.u32 %v782, 16
        %v853 = vor.u32 %v850, %v851
        %v855 = vshrl.u32 %v783, 16
        %v857 = vrot.slane %v855, 7
        %v858 = vshll.u32 %v783, 16
        %v860 = vor.u32 %v857, %v858
        %v862 = vshrl.u32 %v784, 16
        %v864 = vrot.slane %v862, 7
        %v865 = vshll.u32 %v784, 16
        %v867 = vor.u32 %v864, %v865
        %v869 = vshrl.u32 %v785, 16
        %v871 = vrot.slane %v869, 7
        %v872 = vshll.u32 %v785, 16
        %v874 = vor.u32 %v871, %v872
        %v876 = vshrl.u32 %v786, 16
        %v878 = vrot.slane %v876, 7
        %v879 = vshll.u32 %v786, 16
        %v881 = vor.u32 %v878, %v879
        %v883 = vshrl.u32 %v787, 16
        %v885 = vrot.slane %v883, 7
        %v886 = vshll.u32 %v787, 16
        %v888 = vor.u32 %v885, %v886
        %v890 = vshrl.u32 %v788, 16
        %v892 = vrot.slane %v890, 7
        %v893 = vshll.u32 %v788, 16
        %v895 = vor.u32 %v892, %v893
        %v897 = vshrl.u32 %v789, 16
        %v899 = vrot.slane %v897, 7
        %v900 = vshll.u32 %v789, 16
        %v902 = vor.u32 %v899, %v900
        %v904 = vshrl.u32 %v790, 16
        %v906 = vrot.slane %v904, 7
        %v907 = vshll.u32 %v790, 16
        %v909 = vor.u32 %v906, %v907
        %vm927 = vcmask 1040384
        %vm928 = vsmask.f32 256
        %vm929 = vmand %vm927, %vm928
        %v930 = vsel %vm929, 0, %v797
        %v931 = vsel %vm929, 0, %v804
        %v932 = vsel %vm929, 0, %v811
        %v933 = vsel %vm929, 0, %v818
        %v934 = vsel %vm929, 0, %v825
        %v935 = vsel %vm929, 0, %v832
        %v936 = vsel %vm929, 0, %v839
        %v937 = vsel %vm929, 0, %v846
        %v938 = vsel %vm929, 0, %v853
        %v939 = vsel %vm929, 0, %v860
        %v940 = vsel %vm929, 0, %v867
        %v941 = vsel %vm929, 0, %v874
        %v942 = vsel %vm929, 0, %v881
        %v943 = vsel %vm929, 0, %v888
        %v944 = vsel %vm929, 0, %v895
        %v945 = vsel %vm929, 0, %v902
        %v946 = vsel %vm929, 0, %v909
        %v947 = vrot.slane %v795, 1
        %v948 = vor.u32 %v792, %v947
        %v949 = vrot.slane %v802, 1
        %v950 = vor.u32 %v799, %v949
        %v951 = vrot.slane %v809, 1
        %v952 = vor.u32 %v806, %v951
        %v953 = vrot.slane %v816, 1
        %v954 = vor.u32 %v813, %v953
        %v955 = vrot.slane %v823, 1
        %v956 = vor.u32 %v820, %v955
        %v957 = vrot.slane %v830, 1
        %v958 = vor.u32 %v827, %v957
        %v959 = vrot.slane %v837, 1
        %v960 = vor.u32 %v834, %v959
        %v961 = vrot.slane %v844, 1
        %v962 = vor.u32 %v841, %v961
        %v963 = vrot.slane %v851, 1
        %v964 = vor.u32 %v848, %v963
        %v965 = vrot.slane %v858, 1
        %v966 = vor.u32 %v855, %v965
        %v967 = vrot.slane %v865, 1
        %v968 = vor.u32 %v862, %v967
        %v969 = vrot.slane %v872, 1
        %v970 = vor.u32 %v869, %v969
        %v971 = vrot.slane %v879, 1
        %v972 = vor.u32 %v876, %v971
        %v973 = vrot.slane %v886, 1
        %v974 = vor.u32 %v883, %v973
        %v975 = vrot.slane %v893, 1
        %v976 = vor.u32 %v890, %v975
        %v977 = vrot.slane %v900, 1
        %v978 = vor.u32 %v897, %v977
        %v979 = vrot.slane %v907, 1
        %v980 = vor.u32 %v904, %v979
        %vm998 = vcmask 1047552
        %vm999 = vsmask.f32 7424
        %vm1000 = vmand %vm998, %vm999
        %v1001 = vsel %vm1000, %v948, 0
        %v1002 = vsel %vm1000, %v950, 0
        %v1003 = vsel %vm1000, %v952, 0
        %v1004 = vsel %vm1000, %v954, 0
        %v1005 = vsel %vm1000, %v956, 0
        %v1006 = vsel %vm1000, %v958, 0
        %v1007 = vsel %vm1000, %v960, 0
        %v1008 = vsel %vm1000, %v962, 0
        %v1009 = vsel %vm1000, %v964, 0
        %v1010 = vsel %vm1000, %v966, 0
        %v1011 = vsel %vm1000, %v968, 0
        %v1012 = vsel %vm1000, %v970, 0
        %v1013 = vsel %vm1000, %v972, 0
        %v1014 = vsel %vm1000, %v974, 0
        %v1015 = vsel %vm1000, %v976, 0
        %v1016 = vsel %vm1000, %v978, 0
        %v1017 = vsel %vm1000, %v980, 0
        %v1018 = vld [vmem:[#allocation7] sm:$0xf]
        %v1019 = vld [vmem:[#allocation7 + $0x4] sm:$0xf]
        %v1020 = vld [vmem:[#allocation7 + $0x8] sm:$0xf]
        %v1021 = vld [vmem:[#allocation7 + $0xc] sm:$0xf]
        %v1022 = vld [vmem:[#allocation7 + $0x10] sm:$0xf]
        %v1023 = vld [vmem:[#allocation7 + $0x14] sm:$0xf]
        %v1024 = vld [vmem:[#allocation7 + $0x18] sm:$0xf]
        %v1025 = vld [vmem:[#allocation7 + $0x1c] sm:$0xf]
        %v1026 = vld [vmem:[#allocation7 + $0x20] sm:$0xf]
        %v1027 = vld [vmem:[#allocation7 + $0x24] sm:$0xf]
        %v1028 = vld [vmem:[#allocation7 + $0x28] sm:$0xf]
        %v1029 = vld [vmem:[#allocation7 + $0x2c] sm:$0xf]
        %v1030 = vld [vmem:[#allocation7 + $0x30] sm:$0xf]
        %v1031 = vld [vmem:[#allocation7 + $0x34] sm:$0xf]
        %v1032 = vld [vmem:[#allocation7 + $0x38] sm:$0xf]
        %v1033 = vld [vmem:[#allocation7 + $0x3c] sm:$0xf]
        %v1034 = vld [vmem:[#allocation7 + $0x40] sm:$0xf]
        %v1035 = vld [vmem:[#allocation7 + $0x44] sm:$0xf]
        %v1036 = vld [vmem:[#allocation7 + $0x48] sm:$0xf]
        %v1037 = vld [vmem:[#allocation7 + $0x4c] sm:$0xf]
        %v1038 = vld [vmem:[#allocation7 + $0x50] sm:$0xf]
        %v1039 = vld [vmem:[#allocation7 + $0x54] sm:$0xf]
        %v1040 = vld [vmem:[#allocation7 + $0x58] sm:$0xf]
        %v1041 = vld [vmem:[#allocation7 + $0x5c] sm:$0xf]
        %v1042 = vld [vmem:[#allocation7 + $0x60] sm:$0xf]
        %v1043 = vld [vmem:[#allocation7 + $0x64] sm:$0xf]
        %v1044 = vld [vmem:[#allocation7 + $0x68] sm:$0xf]
        %v1045 = vld [vmem:[#allocation7 + $0x6c] sm:$0xf]
        %v1046 = vld [vmem:[#allocation7 + $0x70] sm:$0xf]
        %v1047 = vld [vmem:[#allocation7 + $0x74] sm:$0xf]
        %v1048 = vld [vmem:[#allocation7 + $0x78] sm:$0xf]
        %v1049 = vld [vmem:[#allocation7 + $0x7c] sm:$0xf]
        %v1050 = vld [vmem:[#allocation7 + $0x80] sm:$0xf]
        %v1051 = vld [vmem:[#allocation7 + $0x84] sm:$0xf]
        %v1052 = vld [vmem:[#allocation7 + $0x88] sm:$0xf]
        %v1053 = vld [vmem:[#allocation7 + $0x8c] sm:$0xf]
        %v1054 = vld [vmem:[#allocation7 + $0x90] sm:$0xf]
        %v1055 = vld [vmem:[#allocation7 + $0x94] sm:$0xf]
        %v1056 = vld [vmem:[#allocation7 + $0x98] sm:$0xf]
        %v1057 = vld [vmem:[#allocation7 + $0x9c] sm:$0xf]
        %v1058 = vld [vmem:[#allocation7 + $0xa0] sm:$0xf]
        %v1059 = vld [vmem:[#allocation7 + $0xa4] sm:$0xf]
        %v1060 = vld [vmem:[#allocation7 + $0xa8] sm:$0xf]
        %v1061 = vld [vmem:[#allocation7 + $0xac] sm:$0xf]
        %v1062 = vld [vmem:[#allocation7 + $0xb0] sm:$0xf]
        %v1063 = vld [vmem:[#allocation7 + $0xb4] sm:$0xf]
        %v1064 = vld [vmem:[#allocation7 + $0xb8] sm:$0xf]
        %v1065 = vld [vmem:[#allocation7 + $0xbc] sm:$0xf]
        %v1066 = vld [vmem:[#allocation7 + $0xc0] sm:$0xf]
        %v1067 = vld [vmem:[#allocation7 + $0xc4] sm:$0xf]
        %v1068 = vld [vmem:[#allocation7 + $0xc8] sm:$0xf]
        %v1069 = vld [vmem:[#allocation7 + $0xcc] sm:$0xf]
        %v1070 = vld [vmem:[#allocation7 + $0xd0] sm:$0xf]
        %v1071 = vld [vmem:[#allocation7 + $0xd4] sm:$0xf]
        %v1072 = vld [vmem:[#allocation7 + $0xd8] sm:$0xf]
        %v1073 = vld [vmem:[#allocation7 + $0xdc] sm:$0xf]
        %v1074 = vld [vmem:[#allocation7 + $0xe0] sm:$0xf]
        %v1075 = vld [vmem:[#allocation7 + $0xe4] sm:$0xf]
        %v1076 = vld [vmem:[#allocation7 + $0xe8] sm:$0xf]
        %v1077 = vld [vmem:[#allocation7 + $0xec] sm:$0xf]
        %v1078 = vld [vmem:[#allocation7 + $0xf0] sm:$0xf]
        %v1079 = vld [vmem:[#allocation7 + $0xf4] sm:$0xf]
        %v1080 = vld [vmem:[#allocation7 + $0xf8] sm:$0xf]
        %v1081 = vld [vmem:[#allocation7 + $0xfc] sm:$0xf]
        %v1082 = vld [vmem:[#allocation7 + $0x100] sm:$0xf]
        %v1083 = vld [vmem:[#allocation7 + $0x104] sm:$0xf]
        %v1084 = vld [vmem:[#allocation7 + $0x108] sm:$0xf]
        %v1085 = vld [vmem:[#allocation7 + $0x10c] sm:$0xf]
        %v1086 = vld [vmem:[#allocation7 + $0x110] sm:$0xf]
        %v1087 = vld [vmem:[#allocation7 + $0x114] sm:$0xf]
        %v1088 = vld [vmem:[#allocation7 + $0x118] sm:$0xf]
        %v1089 = vld [vmem:[#allocation7 + $0x11c] sm:$0xf]
        %v1090 = vld [vmem:[#allocation7 + $0x120] sm:$0xf]
        %v1091 = vld [vmem:[#allocation7 + $0x124] sm:$0xf]
        %v1092 = vld [vmem:[#allocation7 + $0x128] sm:$0xf]
        %v1093 = vld [vmem:[#allocation7 + $0x12c] sm:$0xf]
        %v1094 = vld [vmem:[#allocation7 + $0x130] sm:$0xf]
        %v1095 = vld [vmem:[#allocation7 + $0x134] sm:$0xf]
        %v1096 = vld [vmem:[#allocation7 + $0x138] sm:$0xf]
        %v1097 = vld [vmem:[#allocation7 + $0x13c] sm:$0xf]
        %v1098 = vld [vmem:[#allocation7 + $0x140] sm:$0xf]
        %v1099 = vld [vmem:[#allocation7 + $0x144] sm:$0xf]
        %v1100 = vld [vmem:[#allocation7 + $0x148] sm:$0xf]
        %v1101 = vld [vmem:[#allocation7 + $0x14c] sm:$0xf]
        %v1102 = vld [vmem:[#allocation7 + $0x150] sm:$0xf]
        %v1103 = vld [vmem:[#allocation7 + $0x154] sm:$0xf]
        %v1104 = vld [vmem:[#allocation7 + $0x158] sm:$0xf]
        %v1105 = vld [vmem:[#allocation7 + $0x15c] sm:$0xf]
        %v1106 = vld [vmem:[#allocation7 + $0x160] sm:$0xf]
        %v1107 = vld [vmem:[#allocation7 + $0x164] sm:$0xf]
        %v1108 = vld [vmem:[#allocation7 + $0x168] sm:$0xf]
        %v1109 = vld [vmem:[#allocation7 + $0x16c] sm:$0xf]
        %v1110 = vld [vmem:[#allocation7 + $0x170] sm:$0xf]
        %v1111 = vld [vmem:[#allocation7 + $0x174] sm:$0xf]
        %v1112 = vld [vmem:[#allocation7 + $0x178] sm:$0xf]
        %v1113 = vld [vmem:[#allocation7 + $0x17c] sm:$0xf]
        %v1114 = vld [vmem:[#allocation7 + $0x180] sm:$0xf]
        %v1115 = vld [vmem:[#allocation7 + $0x184] sm:$0xf]
        %v1116 = vld [vmem:[#allocation7 + $0x188] sm:$0xf]
        %v1117 = vld [vmem:[#allocation7 + $0x18c] sm:$0xf]
        %v1118 = vld [vmem:[#allocation7 + $0x190] sm:$0xf]
        %v1119 = vld [vmem:[#allocation7 + $0x194] sm:$0xf]
        %v1120 = vld [vmem:[#allocation7 + $0x198] sm:$0xf]
        %v1121 = vld [vmem:[#allocation7 + $0x19c] sm:$0xf]
        %v1122 = vld [vmem:[#allocation7 + $0x1a0] sm:$0xf]
        %v1123 = vld [vmem:[#allocation7 + $0x1a4] sm:$0xf]
        %v1124 = vld [vmem:[#allocation7 + $0x1a8] sm:$0xf]
        %v1125 = vld [vmem:[#allocation7 + $0x1ac] sm:$0xf]
        %v1126 = vld [vmem:[#allocation7 + $0x1b0] sm:$0xf]
        %v1127 = vld [vmem:[#allocation7 + $0x1b4] sm:$0xf]
        %v1128 = vld [vmem:[#allocation7 + $0x1b8] sm:$0xf]
        %v1129 = vld [vmem:[#allocation7 + $0x1bc] sm:$0xf]
        %v1130 = vld [vmem:[#allocation7 + $0x1c0] sm:$0xf]
        %v1131 = vld [vmem:[#allocation7 + $0x1c4] sm:$0xf]
        %v1132 = vld [vmem:[#allocation7 + $0x1c8] sm:$0xf]
        %v1133 = vld [vmem:[#allocation7 + $0x1cc] sm:$0xf]
        %v1134 = vld [vmem:[#allocation7 + $0x1d0] sm:$0xf]
        %v1135 = vld [vmem:[#allocation7 + $0x1d4] sm:$0xf]
        %v1136 = vld [vmem:[#allocation7 + $0x1d8] sm:$0xf]
        %v1137 = vld [vmem:[#allocation7 + $0x1dc] sm:$0xf]
        %v1138 = vld [vmem:[#allocation7 + $0x1e0] sm:$0xf]
        %v1139 = vld [vmem:[#allocation7 + $0x1e4] sm:$0xf]
        %v1140 = vld [vmem:[#allocation7 + $0x1e8] sm:$0xf]
        %v1141 = vld [vmem:[#allocation7 + $0x1ec] sm:$0xf]
        %v1142 = vld [vmem:[#allocation7 + $0x1f0] sm:$0xf]
        %v1143 = vld [vmem:[#allocation7 + $0x1f4] sm:$0xf]
        %v1144 = vld [vmem:[#allocation7 + $0x1f8] sm:$0xf]
        %v1145 = vld [vmem:[#allocation7 + $0x1fc] sm:$0xf]
        %v1146 = vld [vmem:[#allocation7 + $0x200] sm:$0xf]
        %v1147 = vld [vmem:[#allocation7 + $0x204] sm:$0xf]
        %v1148 = vld [vmem:[#allocation7 + $0x208] sm:$0xf]
        %v1149 = vld [vmem:[#allocation7 + $0x20c] sm:$0xf]
        %v1150 = vld [vmem:[#allocation7 + $0x210] sm:$0xf]
        %v1151 = vld [vmem:[#allocation7 + $0x214] sm:$0xf]
        %v1152 = vld [vmem:[#allocation7 + $0x218] sm:$0xf]
        %v1153 = vld [vmem:[#allocation7 + $0x21c] sm:$0xf]
        %v1154 = vld [vmem:[#allocation7 + $0x220] sm:$0xf]
        %v1155 = vld [vmem:[#allocation7 + $0x224] sm:$0xf]
        %v1156 = vld [vmem:[#allocation7 + $0x228] sm:$0xf]
        %v1157 = vld [vmem:[#allocation7 + $0x22c] sm:$0xf]
        %v1158 = vld [vmem:[#allocation7 + $0x230] sm:$0xf]
        %v1159 = vld [vmem:[#allocation7 + $0x234] sm:$0xf]
        %v1160 = vld [vmem:[#allocation7 + $0x238] sm:$0xf]
        %v1161 = vld [vmem:[#allocation7 + $0x23c] sm:$0xf]
        %v1162 = vld [vmem:[%s6] sm:$0x1]
        %v1164 = vlaneseq
        %v1165 = vshrl.u32 %v1164, 7
        %v1166 = vsub.s32 0, %v1165
        %v1167 = vrot.slane %v1162, %v1166
        %v1313 = vunpack.c.l.b16 %v1018
        %v1314 = vunpack.c.l.b16 %v1019
        %v1315 = vunpack.c.l.b16 %v1020
        %v1316 = vunpack.c.l.b16 %v1021
        %v1317 = vunpack.c.l.b16 %v1022
        %v1318 = vunpack.c.l.b16 %v1023
        %v1319 = vunpack.c.l.b16 %v1024
        %v1320 = vunpack.c.l.b16 %v1025
        %v1321 = vunpack.c.l.b16 %v1026
        %v1322 = vunpack.c.l.b16 %v1027
        %v1323 = vunpack.c.l.b16 %v1028
        %v1324 = vunpack.c.l.b16 %v1029
        %v1325 = vunpack.c.l.b16 %v1030
        %v1326 = vunpack.c.l.b16 %v1031
        %v1327 = vunpack.c.l.b16 %v1032
        %v1328 = vunpack.c.l.b16 %v1033
        %v1329 = vunpack.c.l.b16 %v1034
        %v1330 = vunpack.c.l.b16 %v1035
        %v1331 = vunpack.c.l.b16 %v1036
        %v1332 = vunpack.c.l.b16 %v1037
        %v1333 = vunpack.c.l.b16 %v1038
        %v1334 = vunpack.c.l.b16 %v1039
        %v1335 = vunpack.c.l.b16 %v1040
        %v1336 = vunpack.c.l.b16 %v1041
        %v1337 = vunpack.c.l.b16 %v1042
        %v1338 = vunpack.c.l.b16 %v1043
        %v1339 = vunpack.c.l.b16 %v1044
        %v1340 = vunpack.c.l.b16 %v1045
        %v1341 = vunpack.c.l.b16 %v1046
        %v1342 = vunpack.c.l.b16 %v1047
        %v1343 = vunpack.c.l.b16 %v1048
        %v1344 = vunpack.c.l.b16 %v1049
        %v1345 = vunpack.c.l.b16 %v1050
        %v1346 = vunpack.c.l.b16 %v1051
        %v1347 = vunpack.c.l.b16 %v1052
        %v1348 = vunpack.c.l.b16 %v1053
        %v1349 = vunpack.c.l.b16 %v1054
        %v1350 = vunpack.c.l.b16 %v1055
        %v1351 = vunpack.c.l.b16 %v1056
        %v1352 = vunpack.c.l.b16 %v1057
        %v1353 = vunpack.c.l.b16 %v1058
        %v1354 = vunpack.c.l.b16 %v1059
        %v1355 = vunpack.c.l.b16 %v1060
        %v1356 = vunpack.c.l.b16 %v1061
        %v1357 = vunpack.c.l.b16 %v1062
        %v1358 = vunpack.c.l.b16 %v1063
        %v1359 = vunpack.c.l.b16 %v1064
        %v1360 = vunpack.c.l.b16 %v1065
        %v1361 = vunpack.c.l.b16 %v1066
        %v1362 = vunpack.c.l.b16 %v1067
        %v1363 = vunpack.c.l.b16 %v1068
        %v1364 = vunpack.c.l.b16 %v1069
        %v1365 = vunpack.c.l.b16 %v1070
        %v1366 = vunpack.c.l.b16 %v1071
        %v1367 = vunpack.c.l.b16 %v1072
        %v1368 = vunpack.c.l.b16 %v1073
        %v1369 = vunpack.c.l.b16 %v1074
        %v1370 = vunpack.c.l.b16 %v1075
        %v1371 = vunpack.c.l.b16 %v1076
        %v1372 = vunpack.c.l.b16 %v1077
        %v1373 = vunpack.c.l.b16 %v1078
        %v1374 = vunpack.c.l.b16 %v1079
        %v1375 = vunpack.c.l.b16 %v1080
        %v1376 = vunpack.c.l.b16 %v1081
        %v1377 = vunpack.c.l.b16 %v1082
        %v1378 = vunpack.c.l.b16 %v1083
        %v1379 = vunpack.c.l.b16 %v1084
        %v1380 = vunpack.c.l.b16 %v1085
        %v1381 = vunpack.c.l.b16 %v1086
        %v1382 = vunpack.c.l.b16 %v1087
        %v1383 = vunpack.c.l.b16 %v1088
        %v1384 = vunpack.c.l.b16 %v1089
        %v1385 = vunpack.c.l.b16 %v1090
        %v1386 = vunpack.c.l.b16 %v1091
        %v1387 = vunpack.c.l.b16 %v1092
        %v1388 = vunpack.c.l.b16 %v1093
        %v1389 = vunpack.c.l.b16 %v1094
        %v1390 = vunpack.c.l.b16 %v1095
        %v1391 = vunpack.c.l.b16 %v1096
        %v1392 = vunpack.c.l.b16 %v1097
        %v1393 = vunpack.c.l.b16 %v1098
        %v1394 = vunpack.c.l.b16 %v1099
        %v1395 = vunpack.c.l.b16 %v1100
        %v1396 = vunpack.c.l.b16 %v1101
        %v1397 = vunpack.c.l.b16 %v1102
        %v1398 = vunpack.c.l.b16 %v1103
        %v1399 = vunpack.c.l.b16 %v1104
        %v1400 = vunpack.c.l.b16 %v1105
        %v1401 = vunpack.c.l.b16 %v1106
        %v1402 = vunpack.c.l.b16 %v1107
        %v1403 = vunpack.c.l.b16 %v1108
        %v1404 = vunpack.c.l.b16 %v1109
        %v1405 = vunpack.c.l.b16 %v1110
        %v1406 = vunpack.c.l.b16 %v1111
        %v1407 = vunpack.c.l.b16 %v1112
        %v1408 = vunpack.c.l.b16 %v1113
        %v1409 = vunpack.c.l.b16 %v1114
        %v1410 = vunpack.c.l.b16 %v1115
        %v1411 = vunpack.c.l.b16 %v1116
        %v1412 = vunpack.c.l.b16 %v1117
        %v1413 = vunpack.c.l.b16 %v1118
        %v1414 = vunpack.c.l.b16 %v1119
        %v1415 = vunpack.c.l.b16 %v1120
        %v1416 = vunpack.c.l.b16 %v1121
        %v1417 = vunpack.c.l.b16 %v1122
        %v1418 = vunpack.c.l.b16 %v1123
        %v1419 = vunpack.c.l.b16 %v1124
        %v1420 = vunpack.c.l.b16 %v1125
        %v1421 = vunpack.c.l.b16 %v1126
        %v1422 = vunpack.c.l.b16 %v1127
        %v1423 = vunpack.c.l.b16 %v1128
        %v1424 = vunpack.c.l.b16 %v1129
        %v1425 = vunpack.c.l.b16 %v1130
        %v1426 = vunpack.c.l.b16 %v1131
        %v1427 = vunpack.c.l.b16 %v1132
        %v1428 = vunpack.c.l.b16 %v1133
        %v1429 = vunpack.c.l.b16 %v1134
        %v1430 = vunpack.c.l.b16 %v1135
        %v1431 = vunpack.c.l.b16 %v1136
        %v1432 = vunpack.c.l.b16 %v1137
        %v1433 = vunpack.c.l.b16 %v1138
        %v1434 = vunpack.c.l.b16 %v1139
        %v1435 = vunpack.c.l.b16 %v1140
        %v1436 = vunpack.c.l.b16 %v1141
        %v1437 = vunpack.c.l.b16 %v1142
        %v1438 = vunpack.c.l.b16 %v1143
        %v1439 = vunpack.c.l.b16 %v1144
        %v1440 = vunpack.c.l.b16 %v1145
        %v1441 = vunpack.c.l.b16 %v1146
        %v1442 = vunpack.c.l.b16 %v1147
        %v1443 = vunpack.c.l.b16 %v1148
        %v1444 = vunpack.c.l.b16 %v1149
        %v1445 = vunpack.c.l.b16 %v1150
        %v1446 = vunpack.c.l.b16 %v1151
        %v1447 = vunpack.c.l.b16 %v1152
        %v1448 = vunpack.c.l.b16 %v1153
        %v1449 = vunpack.c.l.b16 %v1154
        %v1450 = vunpack.c.l.b16 %v1155
        %v1451 = vunpack.c.l.b16 %v1156
        %v1452 = vunpack.c.l.b16 %v1157
        %v1453 = vunpack.c.l.b16 %v1158
        %v1454 = vunpack.c.l.b16 %v1159
        %v1455 = vunpack.c.l.b16 %v1160
        %v1456 = vunpack.c.l.b16 %v1161
        %v1457 = vpack.c.b16 %v1314, %v1313
        %v1458 = vpack.c.b16 %v1316, %v1315
        %v1459 = vpack.c.b16 %v1318, %v1317
        %v1460 = vpack.c.b16 %v1320, %v1319
        %v1461 = vpack.c.b16 %v1322, %v1321
        %v1462 = vpack.c.b16 %v1324, %v1323
        %v1463 = vpack.c.b16 %v1326, %v1325
        %v1464 = vpack.c.b16 %v1328, %v1327
        %v1465 = vpack.c.b16 %v1330, %v1329
        %v1466 = vpack.c.b16 %v1332, %v1331
        %v1467 = vpack.c.b16 %v1334, %v1333
        %v1468 = vpack.c.b16 %v1336, %v1335
        %v1469 = vpack.c.b16 %v1338, %v1337
        %v1470 = vpack.c.b16 %v1340, %v1339
        %v1471 = vpack.c.b16 %v1342, %v1341
        %v1472 = vpack.c.b16 %v1344, %v1343
        %v1473 = vpack.c.b16 %v1346, %v1345
        %v1474 = vpack.c.b16 %v1348, %v1347
        %v1475 = vpack.c.b16 %v1350, %v1349
        %v1476 = vpack.c.b16 %v1352, %v1351
        %v1477 = vpack.c.b16 %v1354, %v1353
        %v1478 = vpack.c.b16 %v1356, %v1355
        %v1479 = vpack.c.b16 %v1358, %v1357
        %v1480 = vpack.c.b16 %v1360, %v1359
        %v1481 = vpack.c.b16 %v1362, %v1361
        %v1482 = vpack.c.b16 %v1364, %v1363
        %v1483 = vpack.c.b16 %v1366, %v1365
        %v1484 = vpack.c.b16 %v1368, %v1367
        %v1485 = vpack.c.b16 %v1370, %v1369
        %v1486 = vpack.c.b16 %v1372, %v1371
        %v1487 = vpack.c.b16 %v1374, %v1373
        %v1488 = vpack.c.b16 %v1376, %v1375
        %v1489 = vpack.c.b16 %v1378, %v1377
        %v1490 = vpack.c.b16 %v1380, %v1379
        %v1491 = vpack.c.b16 %v1382, %v1381
        %v1492 = vpack.c.b16 %v1384, %v1383
        %v1493 = vpack.c.b16 %v1386, %v1385
        %v1494 = vpack.c.b16 %v1388, %v1387
        %v1495 = vpack.c.b16 %v1390, %v1389
        %v1496 = vpack.c.b16 %v1392, %v1391
        %v1497 = vpack.c.b16 %v1394, %v1393
        %v1498 = vpack.c.b16 %v1396, %v1395
        %v1499 = vpack.c.b16 %v1398, %v1397
        %v1500 = vpack.c.b16 %v1400, %v1399
        %v1501 = vpack.c.b16 %v1402, %v1401
        %v1502 = vpack.c.b16 %v1404, %v1403
        %v1503 = vpack.c.b16 %v1406, %v1405
        %v1504 = vpack.c.b16 %v1408, %v1407
        %v1505 = vpack.c.b16 %v1410, %v1409
        %v1506 = vpack.c.b16 %v1412, %v1411
        %v1507 = vpack.c.b16 %v1414, %v1413
        %v1508 = vpack.c.b16 %v1416, %v1415
        %v1509 = vpack.c.b16 %v1418, %v1417
        %v1510 = vpack.c.b16 %v1420, %v1419
        %v1511 = vpack.c.b16 %v1422, %v1421
        %v1512 = vpack.c.b16 %v1424, %v1423
        %v1513 = vpack.c.b16 %v1426, %v1425
        %v1514 = vpack.c.b16 %v1428, %v1427
        %v1515 = vpack.c.b16 %v1430, %v1429
        %v1516 = vpack.c.b16 %v1432, %v1431
        %v1517 = vpack.c.b16 %v1434, %v1433
        %v1518 = vpack.c.b16 %v1436, %v1435
        %v1519 = vpack.c.b16 %v1438, %v1437
        %v1520 = vpack.c.b16 %v1440, %v1439
        %v1521 = vpack.c.b16 %v1442, %v1441
        %v1522 = vpack.c.b16 %v1444, %v1443
        %v1523 = vpack.c.b16 %v1446, %v1445
        %v1524 = vpack.c.b16 %v1448, %v1447
        %v1525 = vpack.c.b16 %v1450, %v1449
        %v1526 = vpack.c.b16 %v1452, %v1451
        %v1527 = vpack.c.b16 %v1454, %v1453
        %v1528 = vpack.c.b16 %v1456, %v1455
        %1601 = vmatprep.subr.bf16.mxu0 0
        %1602 = vmatpush1.bf16.msra.mxu0 %v1457
        %1603 = vmatprep.subr.bf16.mxu0 0
        %1604 = vmatpush1.bf16.msra.mxu0 %v1458
        %1605 = vmatprep.subr.bf16.mxu0 0
        %1606 = vmatpush1.bf16.msra.mxu0 %v1459
        %1607 = vmatprep.subr.bf16.mxu0 0
        %1608 = vmatpush1.bf16.msra.mxu0 %v1460
        %1609 = vmatprep.subr.bf16.mxu0 0
        %1610 = vmatpush1.bf16.msra.mxu0 %v1461
        %1611 = vmatprep.subr.bf16.mxu0 0
        %1612 = vmatpush1.bf16.msra.mxu0 %v1462
        %1613 = vmatprep.subr.bf16.mxu0 0
        %1614 = vmatpush1.bf16.msra.mxu0 %v1463
        %1615 = vmatprep.subr.bf16.mxu0 0
        %1616 = vmatpush1.bf16.msra.mxu0 %v1464
        %1617 = vmatprep.subr.bf16.mxu0 0
        %1618 = vmatpush1.bf16.msra.mxu0 %v1465
        %1619 = vmatprep.subr.bf16.mxu0 0
        %1620 = vmatpush1.bf16.msra.mxu0 %v1466
        %1621 = vmatprep.subr.bf16.mxu0 0
        %1622 = vmatpush1.bf16.msra.mxu0 %v1467
        %1623 = vmatprep.subr.bf16.mxu0 0
        %1624 = vmatpush1.bf16.msra.mxu0 %v1468
        %1625 = vmatprep.subr.bf16.mxu0 0
        %1626 = vmatpush1.bf16.msra.mxu0 %v1469
        %1627 = vmatprep.subr.bf16.mxu0 0
        %1628 = vmatpush1.bf16.msra.mxu0 %v1470
        %1629 = vmatprep.subr.bf16.mxu0 0
        %1630 = vmatpush1.bf16.msra.mxu0 %v1471
        %1631 = vmatprep.subr.bf16.mxu0 0
        %1632 = vmatpush1.bf16.msra.mxu0 %v1472
        %1633 = vmatprep.mubr.bf16.mxu0 0
        %1634 = vmatmul.mubr.bf16.gmra.mrb[0].mxu0 %v930
        %v1635 = vpop.f32.mrb[0].mxu0
        %v1636 = vadd.f32 %v1167, %v1635
        %v1637 = vpop.f32.mrb[0].mxu0
        %v1638 = vpop.f32.mrb[0].mxu0
        %v1639 = vadd.f32 %v1167, %v1638
        %v1640 = vpop.f32.mrb[0].mxu0
        %1641 = vmatprep.mubr.bf16.mxu0 %v775
        %1642 = vmatmul.mubr.bf16.gmra.mrb[0].mxu0 %v931
        %v1643 = vpop.f32.mrb[0].mxu0
        %v1644 = vadd.f32 %v1167, %v1643
        %v1645 = vpop.f32.mrb[0].mxu0
        %v1646 = vpop.f32.mrb[0].mxu0
        %v1647 = vadd.f32 %v1167, %v1646
        %v1648 = vpop.f32.mrb[0].mxu0
        %1649 = vmatprep.mubr.bf16.mxu0 %v776
        %1650 = vmatmul.mubr.bf16.gmra.mrb[0].mxu0 %v932
        %v1651 = vpop.f32.mrb[0].mxu0
        %v1652 = vadd.f32 %v1167, %v1651
        %v1653 = vpop.f32.mrb[0].mxu0
        %v1654 = vpop.f32.mrb[0].mxu0
        %v1655 = vadd.f32 %v1167, %v1654
        %v1656 = vpop.f32.mrb[0].mxu0
        %1657 = vmatprep.mubr.bf16.mxu0 %v777
        %1658 = vmatmul.mubr.bf16.gmra.mrb[0].mxu0 %v933
        %v1659 = vpop.f32.mrb[0].mxu0
        %v1660 = vadd.f32 %v1167, %v1659
        %v1661 = vpop.f32.mrb[0].mxu0
        %v1662 = vpop.f32.mrb[0].mxu0
        %v1663 = vadd.f32 %v1167, %v1662
        %v1664 = vpop.f32.mrb[0].mxu0
        %1665 = vmatprep.mubr.bf16.mxu0 %v778
        %1666 = vmatmul.mubr.bf16.gmra.mrb[0].mxu0 %v934
        %v1667 = vpop.f32.mrb[0].mxu0
        %v1668 = vadd.f32 %v1167, %v1667
        %v1669 = vpop.f32.mrb[0].mxu0
        %v1670 = vpop.f32.mrb[0].mxu0
        %v1671 = vadd.f32 %v1167, %v1670
        %v1672 = vpop.f32.mrb[0].mxu0
        %1673 = vmatprep.mubr.bf16.mxu0 %v779
        %1674 = vmatmul.mubr.bf16.gmra.mrb[0].mxu0 %v935
        %v1675 = vpop.f32.mrb[0].mxu0
        %v1676 = vadd.f32 %v1167, %v1675
        %v1677 = vpop.f32.mrb[0].mxu0
        %v1678 = vpop.f32.mrb[0].mxu0
        %v1679 = vadd.f32 %v1167, %v1678
        %v1680 = vpop.f32.mrb[0].mxu0
        %1681 = vmatprep.mubr.bf16.mxu0 %v780
        %1682 = vmatmul.mubr.bf16.gmra.mrb[0].mxu0 %v936
        %v1683 = vpop.f32.mrb[0].mxu0
        %v1684 = vadd.f32 %v1167, %v1683
        %v1685 = vpop.f32.mrb[0].mxu0
        %v1686 = vpop.f32.mrb[0].mxu0
        %v1687 = vadd.f32 %v1167, %v1686
        %v1688 = vpop.f32.mrb[0].mxu0
        %1689 = vmatprep.mubr.bf16.mxu0 %v781
        %1690 = vmatmul.mubr.bf16.gmra.mrb[0].mxu0 %v937
        %v1691 = vpop.f32.mrb[0].mxu0
        %v1692 = vadd.f32 %v1167, %v1691
        %v1693 = vpop.f32.mrb[0].mxu0
        %v1694 = vpop.f32.mrb[0].mxu0
        %v1695 = vadd.f32 %v1167, %v1694
        %v1696 = vpop.f32.mrb[0].mxu0
        %1697 = vmatprep.mubr.bf16.mxu0 %v782
        %1698 = vmatmul.mubr.bf16.gmra.mrb[0].mxu0 %v938
        %v1699 = vpop.f32.mrb[0].mxu0
        %v1700 = vadd.f32 %v1167, %v1699
        %v1701 = vpop.f32.mrb[0].mxu0
        %v1702 = vpop.f32.mrb[0].mxu0
        %v1703 = vadd.f32 %v1167, %v1702
        %v1704 = vpop.f32.mrb[0].mxu0
        %1705 = vmatprep.mubr.bf16.mxu0 %v783
        %1706 = vmatmul.mubr.bf16.gmra.mrb[0].mxu0 %v939
        %v1707 = vpop.f32.mrb[0].mxu0
        %v1708 = vadd.f32 %v1167, %v1707
        %v1709 = vpop.f32.mrb[0].mxu0
        %v1710 = vpop.f32.mrb[0].mxu0
        %v1711 = vadd.f32 %v1167, %v1710
        %v1712 = vpop.f32.mrb[0].mxu0
        %1713 = vmatprep.mubr.bf16.mxu0 %v784
        %1714 = vmatmul.mubr.bf16.gmra.mrb[0].mxu0 %v940
        %v1715 = vpop.f32.mrb[0].mxu0
        %v1716 = vadd.f32 %v1167, %v1715
        %v1717 = vpop.f32.mrb[0].mxu0
        %v1718 = vpop.f32.mrb[0].mxu0
        %v1719 = vadd.f32 %v1167, %v1718
        %v1720 = vpop.f32.mrb[0].mxu0
        %1721 = vmatprep.mubr.bf16.mxu0 %v785
        %1722 = vmatmul.mubr.bf16.gmra.mrb[0].mxu0 %v941
        %v1723 = vpop.f32.mrb[0].mxu0
        %v1724 = vadd.f32 %v1167, %v1723
        %v1725 = vpop.f32.mrb[0].mxu0
        %v1726 = vpop.f32.mrb[0].mxu0
        %v1727 = vadd.f32 %v1167, %v1726
        %v1728 = vpop.f32.mrb[0].mxu0
        %1729 = vmatprep.mubr.bf16.mxu0 %v786
        %1730 = vmatmul.mubr.bf16.gmra.mrb[0].mxu0 %v942
        %v1731 = vpop.f32.mrb[0].mxu0
        %v1732 = vadd.f32 %v1167, %v1731
        %v1733 = vpop.f32.mrb[0].mxu0
        %v1734 = vpop.f32.mrb[0].mxu0
        %v1735 = vadd.f32 %v1167, %v1734
        %v1736 = vpop.f32.mrb[0].mxu0
        %1737 = vmatprep.mubr.bf16.mxu0 %v787
        %1738 = vmatmul.mubr.bf16.gmra.mrb[0].mxu0 %v943
        %v1739 = vpop.f32.mrb[0].mxu0
        %v1740 = vadd.f32 %v1167, %v1739
        %v1741 = vpop.f32.mrb[0].mxu0
        %v1742 = vpop.f32.mrb[0].mxu0
        %v1743 = vadd.f32 %v1167, %v1742
        %v1744 = vpop.f32.mrb[0].mxu0
        %1745 = vmatprep.mubr.bf16.mxu0 %v788
        %1746 = vmatmul.mubr.bf16.gmra.mrb[0].mxu0 %v944
        %v1747 = vpop.f32.mrb[0].mxu0
        %v1748 = vadd.f32 %v1167, %v1747
        %v1749 = vpop.f32.mrb[0].mxu0
        %v1750 = vpop.f32.mrb[0].mxu0
        %v1751 = vadd.f32 %v1167, %v1750
        %v1752 = vpop.f32.mrb[0].mxu0
        %1753 = vmatprep.mubr.bf16.mxu0 %v789
        %1754 = vmatmul.mubr.bf16.gmra.mrb[0].mxu0 %v945
        %v1755 = vpop.f32.mrb[0].mxu0
        %v1756 = vadd.f32 %v1167, %v1755
        %v1757 = vpop.f32.mrb[0].mxu0
        %v1758 = vpop.f32.mrb[0].mxu0
        %v1759 = vadd.f32 %v1167, %v1758
        %v1760 = vpop.f32.mrb[0].mxu0
        %1761 = vdwg.mxu0
        %1762 = vmatprep.subr.bf16.mxu0 0
        %1763 = vmatpush1.bf16.msra.mxu0 %v1473
        %1764 = vmatprep.subr.bf16.mxu0 0
        %1765 = vmatpush1.bf16.msra.mxu0 %v1474
        %1766 = vmatprep.subr.bf16.mxu0 0
        %1767 = vmatpush1.bf16.msra.mxu0 %v1475
        %1768 = vmatprep.subr.bf16.mxu0 0
        %1769 = vmatpush1.bf16.msra.mxu0 %v1476
        %1770 = vmatprep.subr.bf16.mxu0 0
        %1771 = vmatpush1.bf16.msra.mxu0 %v1477
        %1772 = vmatprep.subr.bf16.mxu0 0
        %1773 = vmatpush1.bf16.msra.mxu0 %v1478
        %1774 = vmatprep.subr.bf16.mxu0 0
        %1775 = vmatpush1.bf16.msra.mxu0 %v1479
        %1776 = vmatprep.subr.bf16.mxu0 0
        %1777 = vmatpush1.bf16.msra.mxu0 %v1480
        %1778 = vmatprep.subr.bf16.mxu0 0
        %1779 = vmatpush1.bf16.msra.mxu0 %v1481
        %1780 = vmatprep.subr.bf16.mxu0 0
        %1781 = vmatpush1.bf16.msra.mxu0 %v1482
        %1782 = vmatprep.subr.bf16.mxu0 0
        %1783 = vmatpush1.bf16.msra.mxu0 %v1483
        %1784 = vmatprep.subr.bf16.mxu0 0
        %1785 = vmatpush1.bf16.msra.mxu0 %v1484
        %1786 = vmatprep.subr.bf16.mxu0 0
        %1787 = vmatpush1.bf16.msra.mxu0 %v1485
        %1788 = vmatprep.subr.bf16.mxu0 0
        %1789 = vmatpush1.bf16.msra.mxu0 %v1486
        %1790 = vmatprep.subr.bf16.mxu0 0
        %1791 = vmatpush1.bf16.msra.mxu0 %v1487
        %1792 = vmatprep.subr.bf16.mxu0 0
        %1793 = vmatpush1.bf16.msra.mxu0 %v1488
        %1794 = vmatprep.mubr.bf16.mxu0 %v931
        %1795 = vmatmul.mubr.bf16.gmra.mrb[0].mxu0 %v1001
        %v1796 = vpop.f32.mrb[0].mxu0
        %v1797 = vadd.f32 %v1636, %v1796
        %v1798 = vpop.f32.mrb[0].mxu0
        %v1799 = vpop.f32.mrb[0].mxu0
        %v1800 = vadd.f32 %v1639, %v1799
        %v1801 = vpop.f32.mrb[0].mxu0
        %1802 = vmatprep.mubr.bf16.mxu0 %v932
        %1803 = vmatmul.mubr.bf16.gmra.mrb[0].mxu0 %v1002
        %v1804 = vpop.f32.mrb[0].mxu0
        %v1805 = vadd.f32 %v1644, %v1804
        %v1806 = vpop.f32.mrb[0].mxu0
        %v1807 = vpop.f32.mrb[0].mxu0
        %v1808 = vadd.f32 %v1647, %v1807
        %v1809 = vpop.f32.mrb[0].mxu0
        %1810 = vmatprep.mubr.bf16.mxu0 %v933
        %1811 = vmatmul.mubr.bf16.gmra.mrb[0].mxu0 %v1003
        %v1812 = vpop.f32.mrb[0].mxu0
        %v1813 = vadd.f32 %v1652, %v1812
        %v1814 = vpop.f32.mrb[0].mxu0
        %v1815 = vpop.f32.mrb[0].mxu0
        %v1816 = vadd.f32 %v1655, %v1815
        %v1817 = vpop.f32.mrb[0].mxu0
        %1818 = vmatprep.mubr.bf16.mxu0 %v934
        %1819 = vmatmul.mubr.bf16.gmra.mrb[0].mxu0 %v1004
        %v1820 = vpop.f32.mrb[0].mxu0
        %v1821 = vadd.f32 %v1660, %v1820
        %v1822 = vpop.f32.mrb[0].mxu0
        %v1823 = vpop.f32.mrb[0].mxu0
        %v1824 = vadd.f32 %v1663, %v1823
        %v1825 = vpop.f32.mrb[0].mxu0
        %1826 = vmatprep.mubr.bf16.mxu0 %v935
        %1827 = vmatmul.mubr.bf16.gmra.mrb[0].mxu0 %v1005
        %v1828 = vpop.f32.mrb[0].mxu0
        %v1829 = vadd.f32 %v1668, %v1828
        %v1830 = vpop.f32.mrb[0].mxu0
        %v1831 = vpop.f32.mrb[0].mxu0
        %v1832 = vadd.f32 %v1671, %v1831
        %v1833 = vpop.f32.mrb[0].mxu0
        %1834 = vmatprep.mubr.bf16.mxu0 %v936
        %1835 = vmatmul.mubr.bf16.gmra.mrb[0].mxu0 %v1006
        %v1836 = vpop.f32.mrb[0].mxu0
        %v1837 = vadd.f32 %v1676, %v1836
        %v1838 = vpop.f32.mrb[0].mxu0
        %v1839 = vpop.f32.mrb[0].mxu0
        %v1840 = vadd.f32 %v1679, %v1839
        %v1841 = vpop.f32.mrb[0].mxu0
        %1842 = vmatprep.mubr.bf16.mxu0 %v937
        %1843 = vmatmul.mubr.bf16.gmra.mrb[0].mxu0 %v1007
        %v1844 = vpop.f32.mrb[0].mxu0
        %v1845 = vadd.f32 %v1684, %v1844
        %v1846 = vpop.f32.mrb[0].mxu0
        %v1847 = vpop.f32.mrb[0].mxu0
        %v1848 = vadd.f32 %v1687, %v1847
        %v1849 = vpop.f32.mrb[0].mxu0
        %1850 = vmatprep.mubr.bf16.mxu0 %v938
        %1851 = vmatmul.mubr.bf16.gmra.mrb[0].mxu0 %v1008
        %v1852 = vpop.f32.mrb[0].mxu0
        %v1853 = vadd.f32 %v1692, %v1852
        %v1854 = vpop.f32.mrb[0].mxu0
        %v1855 = vpop.f32.mrb[0].mxu0
        %v1856 = vadd.f32 %v1695, %v1855
        %v1857 = vpop.f32.mrb[0].mxu0
        %1858 = vmatprep.mubr.bf16.mxu0 %v939
        %1859 = vmatmul.mubr.bf16.gmra.mrb[0].mxu0 %v1009
        %v1860 = vpop.f32.mrb[0].mxu0
        %v1861 = vadd.f32 %v1700, %v1860
        %v1862 = vpop.f32.mrb[0].mxu0
        %v1863 = vpop.f32.mrb[0].mxu0
        %v1864 = vadd.f32 %v1703, %v1863
        %v1865 = vpop.f32.mrb[0].mxu0
        %1866 = vmatprep.mubr.bf16.mxu0 %v940
        %1867 = vmatmul.mubr.bf16.gmra.mrb[0].mxu0 %v1010
        %v1868 = vpop.f32.mrb[0].mxu0
        %v1869 = vadd.f32 %v1708, %v1868
        %v1870 = vpop.f32.mrb[0].mxu0
        %v1871 = vpop.f32.mrb[0].mxu0
        %v1872 = vadd.f32 %v1711, %v1871
        %v1873 = vpop.f32.mrb[0].mxu0
        %1874 = vmatprep.mubr.bf16.mxu0 %v941
        %1875 = vmatmul.mubr.bf16.gmra.mrb[0].mxu0 %v1011
        %v1876 = vpop.f32.mrb[0].mxu0
        %v1877 = vadd.f32 %v1716, %v1876
        %v1878 = vpop.f32.mrb[0].mxu0
        %v1879 = vpop.f32.mrb[0].mxu0
        %v1880 = vadd.f32 %v1719, %v1879
        %v1881 = vpop.f32.mrb[0].mxu0
        %1882 = vmatprep.mubr.bf16.mxu0 %v942
        %1883 = vmatmul.mubr.bf16.gmra.mrb[0].mxu0 %v1012
        %v1884 = vpop.f32.mrb[0].mxu0
        %v1885 = vadd.f32 %v1724, %v1884
        %v1886 = vpop.f32.mrb[0].mxu0
        %v1887 = vpop.f32.mrb[0].mxu0
        %v1888 = vadd.f32 %v1727, %v1887
        %v1889 = vpop.f32.mrb[0].mxu0
        %1890 = vmatprep.mubr.bf16.mxu0 %v943
        %1891 = vmatmul.mubr.bf16.gmra.mrb[0].mxu0 %v1013
        %v1892 = vpop.f32.mrb[0].mxu0
        %v1893 = vadd.f32 %v1732, %v1892
        %v1894 = vpop.f32.mrb[0].mxu0
        %v1895 = vpop.f32.mrb[0].mxu0
        %v1896 = vadd.f32 %v1735, %v1895
        %v1897 = vpop.f32.mrb[0].mxu0
        %1898 = vmatprep.mubr.bf16.mxu0 %v944
        %1899 = vmatmul.mubr.bf16.gmra.mrb[0].mxu0 %v1014
        %v1900 = vpop.f32.mrb[0].mxu0
        %v1901 = vadd.f32 %v1740, %v1900
        %v1902 = vpop.f32.mrb[0].mxu0
        %v1903 = vpop.f32.mrb[0].mxu0
        %v1904 = vadd.f32 %v1743, %v1903
        %v1905 = vpop.f32.mrb[0].mxu0
        %1906 = vmatprep.mubr.bf16.mxu0 %v945
        %1907 = vmatmul.mubr.bf16.gmra.mrb[0].mxu0 %v1015
        %v1908 = vpop.f32.mrb[0].mxu0
        %v1909 = vadd.f32 %v1748, %v1908
        %v1910 = vpop.f32.mrb[0].mxu0
        %v1911 = vpop.f32.mrb[0].mxu0
        %v1912 = vadd.f32 %v1751, %v1911
        %v1913 = vpop.f32.mrb[0].mxu0
        %1914 = vmatprep.mubr.bf16.mxu0 %v946
        %1915 = vmatmul.mubr.bf16.gmra.mrb[0].mxu0 %v1016
        %v1916 = vpop.f32.mrb[0].mxu0
        %v1917 = vadd.f32 %v1756, %v1916
        %v1918 = vpop.f32.mrb[0].mxu0
        %v1919 = vpop.f32.mrb[0].mxu0
        %v1920 = vadd.f32 %v1759, %v1919
        %v1921 = vpop.f32.mrb[0].mxu0
        %1922 = vdwg.mxu0
        %1923 = vmatprep.subr.bf16.mxu0 0
        %1924 = vmatpush1.bf16.msra.mxu0 %v1489
        %1925 = vmatprep.subr.bf16.mxu0 0
        %1926 = vmatpush1.bf16.msra.mxu0 %v1490
        %1927 = vmatprep.subr.bf16.mxu0 0
        %1928 = vmatpush1.bf16.msra.mxu0 %v1491
        %1929 = vmatprep.subr.bf16.mxu0 0
        %1930 = vmatpush1.bf16.msra.mxu0 %v1492
        %1931 = vmatprep.subr.bf16.mxu0 0
        %1932 = vmatpush1.bf16.msra.mxu0 %v1493
        %1933 = vmatprep.subr.bf16.mxu0 0
        %1934 = vmatpush1.bf16.msra.mxu0 %v1494
        %1935 = vmatprep.subr.bf16.mxu0 0
        %1936 = vmatpush1.bf16.msra.mxu0 %v1495
        %1937 = vmatprep.subr.bf16.mxu0 0
        %1938 = vmatpush1.bf16.msra.mxu0 %v1496
        %1939 = vmatprep.subr.bf16.mxu0 0
        %1940 = vmatpush1.bf16.msra.mxu0 %v1497
        %1941 = vmatprep.subr.bf16.mxu0 0
        %1942 = vmatpush1.bf16.msra.mxu0 %v1498
        %1943 = vmatprep.subr.bf16.mxu0 0
        %1944 = vmatpush1.bf16.msra.mxu0 %v1499
        %1945 = vmatprep.subr.bf16.mxu0 0
        %1946 = vmatpush1.bf16.msra.mxu0 %v1500
        %1947 = vmatprep.subr.bf16.mxu0 0
        %1948 = vmatpush1.bf16.msra.mxu0 %v1501
        %1949 = vmatprep.subr.bf16.mxu0 0
        %1950 = vmatpush1.bf16.msra.mxu0 %v1502
        %1951 = vmatprep.subr.bf16.mxu0 0
        %1952 = vmatpush1.bf16.msra.mxu0 %v1503
        %1953 = vmatprep.subr.bf16.mxu0 0
        %1954 = vmatpush1.bf16.msra.mxu0 %v1504
        %1955 = vmatprep.mubr.bf16.mxu0 %v1002
        %1956 = vmatmul.mubr.bf16.gmra.mrb[0].mxu0 %v775
        %v1957 = vpop.f32.mrb[0].mxu0
        %v1958 = vadd.f32 %v1797, %v1957
        %v1959 = vpop.f32.mrb[0].mxu0
        %v1960 = vpop.f32.mrb[0].mxu0
        %v1961 = vadd.f32 %v1800, %v1960
        %v1962 = vpop.f32.mrb[0].mxu0
        %1963 = vmatprep.mubr.bf16.mxu0 %v1003
        %1964 = vmatmul.mubr.bf16.gmra.mrb[0].mxu0 %v776
        %v1965 = vpop.f32.mrb[0].mxu0
        %v1966 = vadd.f32 %v1805, %v1965
        %v1967 = vpop.f32.mrb[0].mxu0
        %v1968 = vpop.f32.mrb[0].mxu0
        %v1969 = vadd.f32 %v1808, %v1968
        %v1970 = vpop.f32.mrb[0].mxu0
        %1971 = vmatprep.mubr.bf16.mxu0 %v1004
        %1972 = vmatmul.mubr.bf16.gmra.mrb[0].mxu0 %v777
        %v1973 = vpop.f32.mrb[0].mxu0
        %v1974 = vadd.f32 %v1813, %v1973
        %v1975 = vpop.f32.mrb[0].mxu0
        %v1976 = vpop.f32.mrb[0].mxu0
        %v1977 = vadd.f32 %v1816, %v1976
        %v1978 = vpop.f32.mrb[0].mxu0
        %1979 = vmatprep.mubr.bf16.mxu0 %v1005
        %1980 = vmatmul.mubr.bf16.gmra.mrb[0].mxu0 %v778
        %v1981 = vpop.f32.mrb[0].mxu0
        %v1982 = vadd.f32 %v1821, %v1981
        %v1983 = vpop.f32.mrb[0].mxu0
        %v1984 = vpop.f32.mrb[0].mxu0
        %v1985 = vadd.f32 %v1824, %v1984
        %v1986 = vpop.f32.mrb[0].mxu0
        %1987 = vmatprep.mubr.bf16.mxu0 %v1006
        %1988 = vmatmul.mubr.bf16.gmra.mrb[0].mxu0 %v779
        %v1989 = vpop.f32.mrb[0].mxu0
        %v1990 = vadd.f32 %v1829, %v1989
        %v1991 = vpop.f32.mrb[0].mxu0
        %v1992 = vpop.f32.mrb[0].mxu0
        %v1993 = vadd.f32 %v1832, %v1992
        %v1994 = vpop.f32.mrb[0].mxu0
        %1995 = vmatprep.mubr.bf16.mxu0 %v1007
        %1996 = vmatmul.mubr.bf16.gmra.mrb[0].mxu0 %v780
        %v1997 = vpop.f32.mrb[0].mxu0
        %v1998 = vadd.f32 %v1837, %v1997
        %v1999 = vpop.f32.mrb[0].mxu0
        %v2000 = vpop.f32.mrb[0].mxu0
        %v2001 = vadd.f32 %v1840, %v2000
        %v2002 = vpop.f32.mrb[0].mxu0
        %2003 = vmatprep.mubr.bf16.mxu0 %v1008
        %2004 = vmatmul.mubr.bf16.gmra.mrb[0].mxu0 %v781
        %v2005 = vpop.f32.mrb[0].mxu0
        %v2006 = vadd.f32 %v1845, %v2005
        %v2007 = vpop.f32.mrb[0].mxu0
        %v2008 = vpop.f32.mrb[0].mxu0
        %v2009 = vadd.f32 %v1848, %v2008
        %v2010 = vpop.f32.mrb[0].mxu0
        %2011 = vmatprep.mubr.bf16.mxu0 %v1009
        %2012 = vmatmul.mubr.bf16.gmra.mrb[0].mxu0 %v782
        %v2013 = vpop.f32.mrb[0].mxu0
        %v2014 = vadd.f32 %v1853, %v2013
        %v2015 = vpop.f32.mrb[0].mxu0
        %v2016 = vpop.f32.mrb[0].mxu0
        %v2017 = vadd.f32 %v1856, %v2016
        %v2018 = vpop.f32.mrb[0].mxu0
        %2019 = vmatprep.mubr.bf16.mxu0 %v1010
        %2020 = vmatmul.mubr.bf16.gmra.mrb[0].mxu0 %v783
        %v2021 = vpop.f32.mrb[0].mxu0
        %v2022 = vadd.f32 %v1861, %v2021
        %v2023 = vpop.f32.mrb[0].mxu0
        %v2024 = vpop.f32.mrb[0].mxu0
        %v2025 = vadd.f32 %v1864, %v2024
        %v2026 = vpop.f32.mrb[0].mxu0
        %2027 = vmatprep.mubr.bf16.mxu0 %v1011
        %2028 = vmatmul.mubr.bf16.gmra.mrb[0].mxu0 %v784
        %v2029 = vpop.f32.mrb[0].mxu0
        %v2030 = vadd.f32 %v1869, %v2029
        %v2031 = vpop.f32.mrb[0].mxu0
        %v2032 = vpop.f32.mrb[0].mxu0
        %v2033 = vadd.f32 %v1872, %v2032
        %v2034 = vpop.f32.mrb[0].mxu0
        %2035 = vmatprep.mubr.bf16.mxu0 %v1012
        %2036 = vmatmul.mubr.bf16.gmra.mrb[0].mxu0 %v785
        %v2037 = vpop.f32.mrb[0].mxu0
        %v2038 = vadd.f32 %v1877, %v2037
        %v2039 = vpop.f32.mrb[0].mxu0
        %v2040 = vpop.f32.mrb[0].mxu0
        %v2041 = vadd.f32 %v1880, %v2040
        %v2042 = vpop.f32.mrb[0].mxu0
        %2043 = vmatprep.mubr.bf16.mxu0 %v1013
        %2044 = vmatmul.mubr.bf16.gmra.mrb[0].mxu0 %v786
        %v2045 = vpop.f32.mrb[0].mxu0
        %v2046 = vadd.f32 %v1885, %v2045
        %v2047 = vpop.f32.mrb[0].mxu0
        %v2048 = vpop.f32.mrb[0].mxu0
        %v2049 = vadd.f32 %v1888, %v2048
        %v2050 = vpop.f32.mrb[0].mxu0
        %2051 = vmatprep.mubr.bf16.mxu0 %v1014
        %2052 = vmatmul.mubr.bf16.gmra.mrb[0].mxu0 %v787
        %v2053 = vpop.f32.mrb[0].mxu0
        %v2054 = vadd.f32 %v1893, %v2053
        %v2055 = vpop.f32.mrb[0].mxu0
        %v2056 = vpop.f32.mrb[0].mxu0
        %v2057 = vadd.f32 %v1896, %v2056
        %v2058 = vpop.f32.mrb[0].mxu0
        %2059 = vmatprep.mubr.bf16.mxu0 %v1015
        %2060 = vmatmul.mubr.bf16.gmra.mrb[0].mxu0 %v788
        %v2061 = vpop.f32.mrb[0].mxu0
        %v2062 = vadd.f32 %v1901, %v2061
        %v2063 = vpop.f32.mrb[0].mxu0
        %v2064 = vpop.f32.mrb[0].mxu0
        %v2065 = vadd.f32 %v1904, %v2064
        %v2066 = vpop.f32.mrb[0].mxu0
        %2067 = vmatprep.mubr.bf16.mxu0 %v1016
        %2068 = vmatmul.mubr.bf16.gmra.mrb[0].mxu0 %v789
        %v2069 = vpop.f32.mrb[0].mxu0
        %v2070 = vadd.f32 %v1909, %v2069
        %v2071 = vpop.f32.mrb[0].mxu0
        %v2072 = vpop.f32.mrb[0].mxu0
        %v2073 = vadd.f32 %v1912, %v2072
        %v2074 = vpop.f32.mrb[0].mxu0
        %2075 = vmatprep.mubr.bf16.mxu0 %v1017
        %2076 = vmatmul.mubr.bf16.gmra.mrb[0].mxu0 %v790
        %v2077 = vpop.f32.mrb[0].mxu0
        %v2078 = vadd.f32 %v1917, %v2077
        %v2079 = vpop.f32.mrb[0].mxu0
        %v2080 = vpop.f32.mrb[0].mxu0
        %v2081 = vadd.f32 %v1920, %v2080
        %v2082 = vpop.f32.mrb[0].mxu0
        %2083 = vdwg.mxu0
        %2084 = vmatprep.subr.bf16.mxu0 0
        %2085 = vmatpush1.bf16.msra.mxu0 %v1505
        %2086 = vmatprep.subr.bf16.mxu0 0
        %2087 = vmatpush1.bf16.msra.mxu0 %v1506
        %2088 = vmatprep.subr.bf16.mxu0 0
        %2089 = vmatpush1.bf16.msra.mxu0 %v1507
        %2090 = vmatprep.subr.bf16.mxu0 0
        %2091 = vmatpush1.bf16.msra.mxu0 %v1508
        %2092 = vmatprep.subr.bf16.mxu0 0
        %2093 = vmatpush1.bf16.msra.mxu0 %v1509
        %2094 = vmatprep.subr.bf16.mxu0 0
        %2095 = vmatpush1.bf16.msra.mxu0 %v1510
        %2096 = vmatprep.subr.bf16.mxu0 0
        %2097 = vmatpush1.bf16.msra.mxu0 %v1511
        %2098 = vmatprep.subr.bf16.mxu0 0
        %2099 = vmatpush1.bf16.msra.mxu0 %v1512
        %2100 = vmatprep.subr.bf16.mxu0 0
        %2101 = vmatpush1.bf16.msra.mxu0 %v1513
        %2102 = vmatprep.subr.bf16.mxu0 0
        %2103 = vmatpush1.bf16.msra.mxu0 %v1514
        %2104 = vmatprep.subr.bf16.mxu0 0
        %2105 = vmatpush1.bf16.msra.mxu0 %v1515
        %2106 = vmatprep.subr.bf16.mxu0 0
        %2107 = vmatpush1.bf16.msra.mxu0 %v1516
        %2108 = vmatprep.subr.bf16.mxu0 0
        %2109 = vmatpush1.bf16.msra.mxu0 %v1517
        %2110 = vmatprep.subr.bf16.mxu0 0
        %2111 = vmatpush1.bf16.msra.mxu0 %v1518
        %2112 = vmatprep.subr.bf16.mxu0 0
        %2113 = vmatpush1.bf16.msra.mxu0 %v1519
        %2114 = vmatprep.subr.bf16.mxu0 0
        %2115 = vmatpush1.bf16.msra.mxu0 %v1520
        %2116 = vmatprep.mubr.bf16.mxu0 %v776
        %2117 = vmatmul.mubr.bf16.gmra.mrb[0].mxu0 %v932
        %v2118 = vpop.f32.mrb[0].mxu0
        %v2119 = vadd.f32 %v1958, %v2118
        %v2120 = vpop.f32.mrb[0].mxu0
        %v2121 = vpop.f32.mrb[0].mxu0
        %v2122 = vadd.f32 %v1961, %v2121
        %v2123 = vpop.f32.mrb[0].mxu0
        %2124 = vmatprep.mubr.bf16.mxu0 %v777
        %2125 = vmatmul.mubr.bf16.gmra.mrb[0].mxu0 %v933
        %v2126 = vpop.f32.mrb[0].mxu0
        %v2127 = vadd.f32 %v1966, %v2126
        %v2128 = vpop.f32.mrb[0].mxu0
        %v2129 = vpop.f32.mrb[0].mxu0
        %v2130 = vadd.f32 %v1969, %v2129
        %v2131 = vpop.f32.mrb[0].mxu0
        %2132 = vmatprep.mubr.bf16.mxu0 %v778
        %2133 = vmatmul.mubr.bf16.gmra.mrb[0].mxu0 %v934
        %v2134 = vpop.f32.mrb[0].mxu0
        %v2135 = vadd.f32 %v1974, %v2134
        %v2136 = vpop.f32.mrb[0].mxu0
        %v2137 = vpop.f32.mrb[0].mxu0
        %v2138 = vadd.f32 %v1977, %v2137
        %v2139 = vpop.f32.mrb[0].mxu0
        %2140 = vmatprep.mubr.bf16.mxu0 %v779
        %2141 = vmatmul.mubr.bf16.gmra.mrb[0].mxu0 %v935
        %v2142 = vpop.f32.mrb[0].mxu0
        %v2143 = vadd.f32 %v1982, %v2142
        %v2144 = vpop.f32.mrb[0].mxu0
        %v2145 = vpop.f32.mrb[0].mxu0
        %v2146 = vadd.f32 %v1985, %v2145
        %v2147 = vpop.f32.mrb[0].mxu0
        %2148 = vmatprep.mubr.bf16.mxu0 %v780
        %2149 = vmatmul.mubr.bf16.gmra.mrb[0].mxu0 %v936
        %v2150 = vpop.f32.mrb[0].mxu0
        %v2151 = vadd.f32 %v1990, %v2150
        %v2152 = vpop.f32.mrb[0].mxu0
        %v2153 = vpop.f32.mrb[0].mxu0
        %v2154 = vadd.f32 %v1993, %v2153
        %v2155 = vpop.f32.mrb[0].mxu0
        %2156 = vmatprep.mubr.bf16.mxu0 %v781
        %2157 = vmatmul.mubr.bf16.gmra.mrb[0].mxu0 %v937
        %v2158 = vpop.f32.mrb[0].mxu0
        %v2159 = vadd.f32 %v1998, %v2158
        %v2160 = vpop.f32.mrb[0].mxu0
        %v2161 = vpop.f32.mrb[0].mxu0
        %v2162 = vadd.f32 %v2001, %v2161
        %v2163 = vpop.f32.mrb[0].mxu0
        %2164 = vmatprep.mubr.bf16.mxu0 %v782
        %2165 = vmatmul.mubr.bf16.gmra.mrb[0].mxu0 %v938
        %v2166 = vpop.f32.mrb[0].mxu0
        %v2167 = vadd.f32 %v2006, %v2166
        %v2168 = vpop.f32.mrb[0].mxu0
        %v2169 = vpop.f32.mrb[0].mxu0
        %v2170 = vadd.f32 %v2009, %v2169
        %v2171 = vpop.f32.mrb[0].mxu0
        %2172 = vmatprep.mubr.bf16.mxu0 %v783
        %2173 = vmatmul.mubr.bf16.gmra.mrb[0].mxu0 %v939
        %v2174 = vpop.f32.mrb[0].mxu0
        %v2175 = vadd.f32 %v2014, %v2174
        %v2176 = vpop.f32.mrb[0].mxu0
        %v2177 = vpop.f32.mrb[0].mxu0
        %v2178 = vadd.f32 %v2017, %v2177
        %v2179 = vpop.f32.mrb[0].mxu0
        %2180 = vmatprep.mubr.bf16.mxu0 %v784
        %2181 = vmatmul.mubr.bf16.gmra.mrb[0].mxu0 %v940
        %v2182 = vpop.f32.mrb[0].mxu0
        %v2183 = vadd.f32 %v2022, %v2182
        %v2184 = vpop.f32.mrb[0].mxu0
        %v2185 = vpop.f32.mrb[0].mxu0
        %v2186 = vadd.f32 %v2025, %v2185
        %v2187 = vpop.f32.mrb[0].mxu0
        %2188 = vmatprep.mubr.bf16.mxu0 %v785
        %2189 = vmatmul.mubr.bf16.gmra.mrb[0].mxu0 %v941
        %v2190 = vpop.f32.mrb[0].mxu0
        %v2191 = vadd.f32 %v2030, %v2190
        %v2192 = vpop.f32.mrb[0].mxu0
        %v2193 = vpop.f32.mrb[0].mxu0
        %v2194 = vadd.f32 %v2033, %v2193
        %v2195 = vpop.f32.mrb[0].mxu0
        %2196 = vmatprep.mubr.bf16.mxu0 %v786
        %2197 = vmatmul.mubr.bf16.gmra.mrb[0].mxu0 %v942
        %v2198 = vpop.f32.mrb[0].mxu0
        %v2199 = vadd.f32 %v2038, %v2198
        %v2200 = vpop.f32.mrb[0].mxu0
        %v2201 = vpop.f32.mrb[0].mxu0
        %v2202 = vadd.f32 %v2041, %v2201
        %v2203 = vpop.f32.mrb[0].mxu0
        %2204 = vmatprep.mubr.bf16.mxu0 %v787
        %2205 = vmatmul.mubr.bf16.gmra.mrb[0].mxu0 %v943
        %v2206 = vpop.f32.mrb[0].mxu0
        %v2207 = vadd.f32 %v2046, %v2206
        %v2208 = vpop.f32.mrb[0].mxu0
        %v2209 = vpop.f32.mrb[0].mxu0
        %v2210 = vadd.f32 %v2049, %v2209
        %v2211 = vpop.f32.mrb[0].mxu0
        %2212 = vmatprep.mubr.bf16.mxu0 %v788
        %2213 = vmatmul.mubr.bf16.gmra.mrb[0].mxu0 %v944
        %v2214 = vpop.f32.mrb[0].mxu0
        %v2215 = vadd.f32 %v2054, %v2214
        %v2216 = vpop.f32.mrb[0].mxu0
        %v2217 = vpop.f32.mrb[0].mxu0
        %v2218 = vadd.f32 %v2057, %v2217
        %v2219 = vpop.f32.mrb[0].mxu0
        %2220 = vmatprep.mubr.bf16.mxu0 %v789
        %2221 = vmatmul.mubr.bf16.gmra.mrb[0].mxu0 %v945
        %v2222 = vpop.f32.mrb[0].mxu0
        %v2223 = vadd.f32 %v2062, %v2222
        %v2224 = vpop.f32.mrb[0].mxu0
        %v2225 = vpop.f32.mrb[0].mxu0
        %v2226 = vadd.f32 %v2065, %v2225
        %v2227 = vpop.f32.mrb[0].mxu0
        %2228 = vmatprep.mubr.bf16.mxu0 %v790
        %2229 = vmatmul.mubr.bf16.gmra.mrb[0].mxu0 %v946
        %v2230 = vpop.f32.mrb[0].mxu0
        %v2231 = vadd.f32 %v2070, %v2230
        %v2232 = vpop.f32.mrb[0].mxu0
        %v2233 = vpop.f32.mrb[0].mxu0
        %v2234 = vadd.f32 %v2073, %v2233
        %v2235 = vpop.f32.mrb[0].mxu0
        %2236 = vmatprep.mubr.bf16.mxu0 0
        %2237 = vmatmul.mubr.bf16.gmra.mrb[0].mxu0 %v930
        %v2238 = vpop.f32.mrb[0].mxu0
        %v2239 = vadd.f32 %v2078, %v2238
        %v2240 = vpop.f32.mrb[0].mxu0
        %v2241 = vpop.f32.mrb[0].mxu0
        %v2242 = vadd.f32 %v2081, %v2241
        %v2243 = vpop.f32.mrb[0].mxu0
        %2244 = vdwg.mxu0
        %2245 = vmatprep.subr.bf16.mxu0 0
        %2246 = vmatpush1.bf16.msra.mxu0 %v1521
        %2247 = vmatprep.subr.bf16.mxu0 0
        %2248 = vmatpush1.bf16.msra.mxu0 %v1522
        %2249 = vmatprep.subr.bf16.mxu0 0
        %2250 = vmatpush1.bf16.msra.mxu0 %v1523
        %2251 = vmatprep.subr.bf16.mxu0 0
        %2252 = vmatpush1.bf16.msra.mxu0 %v1524
        %2253 = vmatprep.subr.bf16.mxu0 0
        %2254 = vmatpush1.bf16.msra.mxu0 %v1525
        %2255 = vmatprep.subr.bf16.mxu0 0
        %2256 = vmatpush1.bf16.msra.mxu0 %v1526
        %2257 = vmatprep.subr.bf16.mxu0 0
        %2258 = vmatpush1.bf16.msra.mxu0 %v1527
        %2259 = vmatprep.subr.bf16.mxu0 0
        %2260 = vmatpush1.bf16.msra.mxu0 %v1528
        %2261 = vmatprep.subr.bf16.mxu0 0
        %2262 = vmatpush1.bf16.msra.mxu0 0
        %2263 = vmatprep.subr.bf16.mxu0 0
        %2264 = vmatpush1.bf16.msra.mxu0 0
        %2265 = vmatprep.subr.bf16.mxu0 0
        %2266 = vmatpush1.bf16.msra.mxu0 0
        %2267 = vmatprep.subr.bf16.mxu0 0
        %2268 = vmatpush1.bf16.msra.mxu0 0
        %2269 = vmatprep.subr.bf16.mxu0 0
        %2270 = vmatpush1.bf16.msra.mxu0 0
        %2271 = vmatprep.subr.bf16.mxu0 0
        %2272 = vmatpush1.bf16.msra.mxu0 0
        %2273 = vmatprep.subr.bf16.mxu0 0
        %2274 = vmatpush1.bf16.msra.mxu0 0
        %2275 = vmatprep.subr.bf16.mxu0 0
        %2276 = vmatpush1.bf16.msra.mxu0 0
        %2277 = vmatprep.mubr.bf16.mxu0 0
        %2278 = vmatmul.mubr.bf16.gmra.mrb[0].mxu0 %v1003
        %v2279 = vpop.f32.mrb[0].mxu0
        %v2280 = vadd.f32 %v2119, %v2279
        %v2281 = vpop.f32.mrb[0].mxu0
        %v2282 = vpop.f32.mrb[0].mxu0
        %v2283 = vadd.f32 %v2122, %v2282
        %v2284 = vpop.f32.mrb[0].mxu0
        %2285 = vmatprep.mubr.bf16.mxu0 0
        %2286 = vmatmul.mubr.bf16.gmra.mrb[0].mxu0 %v1004
        %v2287 = vpop.f32.mrb[0].mxu0
        %v2288 = vadd.f32 %v2127, %v2287
        %v2289 = vpop.f32.mrb[0].mxu0
        %v2290 = vpop.f32.mrb[0].mxu0
        %v2291 = vadd.f32 %v2130, %v2290
        %v2292 = vpop.f32.mrb[0].mxu0
        %2293 = vmatprep.mubr.bf16.mxu0 0
        %2294 = vmatmul.mubr.bf16.gmra.mrb[0].mxu0 %v1005
        %v2295 = vpop.f32.mrb[0].mxu0
        %v2296 = vadd.f32 %v2135, %v2295
        %v2297 = vpop.f32.mrb[0].mxu0
        %v2298 = vpop.f32.mrb[0].mxu0
        %v2299 = vadd.f32 %v2138, %v2298
        %v2300 = vpop.f32.mrb[0].mxu0
        %2301 = vmatprep.mubr.bf16.mxu0 0
        %2302 = vmatmul.mubr.bf16.gmra.mrb[0].mxu0 %v1006
        %v2303 = vpop.f32.mrb[0].mxu0
        %v2304 = vadd.f32 %v2143, %v2303
        %v2305 = vpop.f32.mrb[0].mxu0
        %v2306 = vpop.f32.mrb[0].mxu0
        %v2307 = vadd.f32 %v2146, %v2306
        %v2308 = vpop.f32.mrb[0].mxu0
        %2309 = vmatprep.mubr.bf16.mxu0 0
        %2310 = vmatmul.mubr.bf16.gmra.mrb[0].mxu0 %v1007
        %v2311 = vpop.f32.mrb[0].mxu0
        %v2312 = vadd.f32 %v2151, %v2311
        %v2313 = vpop.f32.mrb[0].mxu0
        %v2314 = vpop.f32.mrb[0].mxu0
        %v2315 = vadd.f32 %v2154, %v2314
        %v2316 = vpop.f32.mrb[0].mxu0
        %2317 = vmatprep.mubr.bf16.mxu0 0
        %2318 = vmatmul.mubr.bf16.gmra.mrb[0].mxu0 %v1008
        %v2319 = vpop.f32.mrb[0].mxu0
        %v2320 = vadd.f32 %v2159, %v2319
        %v2321 = vpop.f32.mrb[0].mxu0
        %v2322 = vpop.f32.mrb[0].mxu0
        %v2323 = vadd.f32 %v2162, %v2322
        %v2324 = vpop.f32.mrb[0].mxu0
        %2325 = vmatprep.mubr.bf16.mxu0 0
        %2326 = vmatmul.mubr.bf16.gmra.mrb[0].mxu0 %v1009
        %v2327 = vpop.f32.mrb[0].mxu0
        %v2328 = vadd.f32 %v2167, %v2327
        %v2329 = vpop.f32.mrb[0].mxu0
        %v2330 = vpop.f32.mrb[0].mxu0
        %v2331 = vadd.f32 %v2170, %v2330
        %v2332 = vpop.f32.mrb[0].mxu0
        %2333 = vmatprep.mubr.bf16.mxu0 0
        %2334 = vmatmul.mubr.bf16.gmra.mrb[0].mxu0 %v1010
        %v2335 = vpop.f32.mrb[0].mxu0
        %v2336 = vadd.f32 %v2175, %v2335
        %v2337 = vpop.f32.mrb[0].mxu0
        %v2338 = vpop.f32.mrb[0].mxu0
        %v2339 = vadd.f32 %v2178, %v2338
        %v2340 = vpop.f32.mrb[0].mxu0
        %2341 = vmatprep.mubr.bf16.mxu0 0
        %2342 = vmatmul.mubr.bf16.gmra.mrb[0].mxu0 %v1011
        %v2343 = vpop.f32.mrb[0].mxu0
        %v2344 = vadd.f32 %v2183, %v2343
        %v2345 = vpop.f32.mrb[0].mxu0
        %v2346 = vpop.f32.mrb[0].mxu0
        %v2347 = vadd.f32 %v2186, %v2346
        %v2348 = vpop.f32.mrb[0].mxu0
        %2349 = vmatprep.mubr.bf16.mxu0 0
        %2350 = vmatmul.mubr.bf16.gmra.mrb[0].mxu0 %v1012
        %v2351 = vpop.f32.mrb[0].mxu0
        %v2352 = vadd.f32 %v2191, %v2351
        %v2353 = vpop.f32.mrb[0].mxu0
        %v2354 = vpop.f32.mrb[0].mxu0
        %v2355 = vadd.f32 %v2194, %v2354
        %v2356 = vpop.f32.mrb[0].mxu0
        %2357 = vmatprep.mubr.bf16.mxu0 0
        %2358 = vmatmul.mubr.bf16.gmra.mrb[0].mxu0 %v1013
        %v2359 = vpop.f32.mrb[0].mxu0
        %v2360 = vadd.f32 %v2199, %v2359
        %v2361 = vpop.f32.mrb[0].mxu0
        %v2362 = vpop.f32.mrb[0].mxu0
        %v2363 = vadd.f32 %v2202, %v2362
        %v2364 = vpop.f32.mrb[0].mxu0
        %2365 = vmatprep.mubr.bf16.mxu0 0
        %2366 = vmatmul.mubr.bf16.gmra.mrb[0].mxu0 %v1014
        %v2367 = vpop.f32.mrb[0].mxu0
        %v2368 = vadd.f32 %v2207, %v2367
        %v2369 = vpop.f32.mrb[0].mxu0
        %v2370 = vpop.f32.mrb[0].mxu0
        %v2371 = vadd.f32 %v2210, %v2370
        %v2372 = vpop.f32.mrb[0].mxu0
        %2373 = vmatprep.mubr.bf16.mxu0 0
        %2374 = vmatmul.mubr.bf16.gmra.mrb[0].mxu0 %v1015
        %v2375 = vpop.f32.mrb[0].mxu0
        %v2376 = vadd.f32 %v2215, %v2375
        %v2377 = vpop.f32.mrb[0].mxu0
        %v2378 = vpop.f32.mrb[0].mxu0
        %v2379 = vadd.f32 %v2218, %v2378
        %v2380 = vpop.f32.mrb[0].mxu0
        %2381 = vmatprep.mubr.bf16.mxu0 0
        %2382 = vmatmul.mubr.bf16.gmra.mrb[0].mxu0 %v1016
        %v2383 = vpop.f32.mrb[0].mxu0
        %v2384 = vadd.f32 %v2223, %v2383
        %v2385 = vpop.f32.mrb[0].mxu0
        %v2386 = vpop.f32.mrb[0].mxu0
        %v2387 = vadd.f32 %v2226, %v2386
        %v2388 = vpop.f32.mrb[0].mxu0
        %2389 = vmatprep.mubr.bf16.mxu0 0
        %2390 = vmatmul.mubr.bf16.gmra.mrb[0].mxu0 %v1017
        %v2391 = vpop.f32.mrb[0].mxu0
        %v2392 = vadd.f32 %v2231, %v2391
        %v2393 = vpop.f32.mrb[0].mxu0
        %v2394 = vpop.f32.mrb[0].mxu0
        %v2395 = vadd.f32 %v2234, %v2394
        %v2396 = vpop.f32.mrb[0].mxu0
        %2397 = vmatprep.mubr.bf16.mxu0 0
        %2398 = vmatmul.mubr.bf16.gmra.mrb[0].mxu0 %v1001
        %v2399 = vpop.f32.mrb[0].mxu0
        %v2400 = vadd.f32 %v2239, %v2399
        %v2401 = vpop.f32.mrb[0].mxu0
        %v2402 = vpop.f32.mrb[0].mxu0
        %v2403 = vadd.f32 %v2242, %v2402
        %v2404 = vpop.f32.mrb[0].mxu0
        %2405 = vdwg.mxu0
        %v2406 = vmax.f32 %v2280, 0.0
        %v2407 = vmax.f32 %v2283, 0.0
        %v2408 = vmax.f32 %v2288, 0.0
        %v2409 = vmax.f32 %v2291, 0.0
        %v2410 = vmax.f32 %v2296, 0.0
        %v2411 = vmax.f32 %v2299, 0.0
        %v2412 = vmax.f32 %v2304, 0.0
        %v2413 = vmax.f32 %v2307, 0.0
        %v2414 = vmax.f32 %v2312, 0.0
        %v2415 = vmax.f32 %v2315, 0.0
        %v2416 = vmax.f32 %v2320, 0.0
        %v2417 = vmax.f32 %v2323, 0.0
        %v2418 = vmax.f32 %v2328, 0.0
        %v2419 = vmax.f32 %v2331, 0.0
        %v2420 = vmax.f32 %v2336, 0.0
        %v2421 = vmax.f32 %v2339, 0.0
        %v2422 = vmax.f32 %v2344, 0.0
        %v2423 = vmax.f32 %v2347, 0.0
        %v2424 = vmax.f32 %v2352, 0.0
        %v2425 = vmax.f32 %v2355, 0.0
        %v2426 = vmax.f32 %v2360, 0.0
        %v2427 = vmax.f32 %v2363, 0.0
        %v2428 = vmax.f32 %v2368, 0.0
        %v2429 = vmax.f32 %v2371, 0.0
        %v2430 = vmax.f32 %v2376, 0.0
        %v2431 = vmax.f32 %v2379, 0.0
        %v2432 = vmax.f32 %v2384, 0.0
        %v2433 = vmax.f32 %v2387, 0.0
        %v2434 = vmax.f32 %v2392, 0.0
        %v2435 = vmax.f32 %v2395, 0.0
        %v2436 = vmax.f32 %v2400, 0.0
        %v2437 = vmax.f32 %v2403, 0.0
        %v2438 = vpack.c.bf16 %v2407, %v2406
        %v2439 = vpack.c.bf16 %v2409, %v2408
        %v2440 = vpack.c.bf16 %v2411, %v2410
        %v2441 = vpack.c.bf16 %v2413, %v2412
        %v2442 = vpack.c.bf16 %v2415, %v2414
        %v2443 = vpack.c.bf16 %v2417, %v2416
        %v2444 = vpack.c.bf16 %v2419, %v2418
        %v2445 = vpack.c.bf16 %v2421, %v2420
        %v2446 = vpack.c.bf16 %v2423, %v2422
        %v2447 = vpack.c.bf16 %v2425, %v2424
        %v2448 = vpack.c.bf16 %v2427, %v2426
        %v2449 = vpack.c.bf16 %v2429, %v2428
        %v2450 = vpack.c.bf16 %v2431, %v2430
        %v2451 = vpack.c.bf16 %v2433, %v2432
        %v2452 = vpack.c.bf16 %v2435, %v2434
        %v2453 = vpack.c.bf16 %v2437, %v2436
        %v2454 = vld [vmem:[#allocation8] sm:$0xf]
        %v2455 = vld [vmem:[#allocation8 + $0x4] sm:$0xf]
        %v2456 = vld [vmem:[#allocation8 + $0x8] sm:$0xf]
        %v2457 = vld [vmem:[#allocation8 + $0xc] sm:$0xf]
        %v2458 = vld [vmem:[#allocation8 + $0x10] sm:$0xf]
        %v2459 = vld [vmem:[#allocation8 + $0x14] sm:$0xf]
        %v2460 = vld [vmem:[#allocation8 + $0x18] sm:$0xf]
        %v2461 = vld [vmem:[#allocation8 + $0x1c] sm:$0xf]
        %v2462 = vld [vmem:[#allocation8 + $0x20] sm:$0xf]
        %v2463 = vld [vmem:[#allocation8 + $0x24] sm:$0xf]
        %v2464 = vld [vmem:[#allocation8 + $0x28] sm:$0xf]
        %v2465 = vld [vmem:[#allocation8 + $0x2c] sm:$0xf]
        %v2466 = vld [vmem:[#allocation8 + $0x30] sm:$0xf]
        %v2467 = vld [vmem:[#allocation8 + $0x34] sm:$0xf]
        %v2468 = vld [vmem:[#allocation8 + $0x38] sm:$0xf]
        %v2469 = vld [vmem:[#allocation8 + $0x3c] sm:$0xf]
        %v2470 = vld [vmem:[%s7] sm:$0x1]
        %v2472 = vlaneseq
        %v2473 = vshrl.u32 %v2472, 7
        %v2474 = vsub.s32 0, %v2473
        %v2475 = vrot.slane %v2470, %v2474
        %v2493 = vunpack.c.l.b16 %v2454
        %v2494 = vunpack.c.l.b16 %v2455
        %v2495 = vunpack.c.l.b16 %v2456
        %v2496 = vunpack.c.l.b16 %v2457
        %v2497 = vunpack.c.l.b16 %v2458
        %v2498 = vunpack.c.l.b16 %v2459
        %v2499 = vunpack.c.l.b16 %v2460
        %v2500 = vunpack.c.l.b16 %v2461
        %v2501 = vunpack.c.l.b16 %v2462
        %v2502 = vunpack.c.l.b16 %v2463
        %v2503 = vunpack.c.l.b16 %v2464
        %v2504 = vunpack.c.l.b16 %v2465
        %v2505 = vunpack.c.l.b16 %v2466
        %v2506 = vunpack.c.l.b16 %v2467
        %v2507 = vunpack.c.l.b16 %v2468
        %v2508 = vunpack.c.l.b16 %v2469
        %v2509 = vpack.c.b16 %v2494, %v2493
        %v2510 = vpack.c.b16 %v2496, %v2495
        %v2511 = vpack.c.b16 %v2498, %v2497
        %v2512 = vpack.c.b16 %v2500, %v2499
        %v2513 = vpack.c.b16 %v2502, %v2501
        %v2514 = vpack.c.b16 %v2504, %v2503
        %v2515 = vpack.c.b16 %v2506, %v2505
        %v2516 = vpack.c.b16 %v2508, %v2507
        %2525 = vmatprep.subr.bf16.mxu0 0
        %2526 = vmatpush1.bf16.msra.mxu0 %v2509
        %2527 = vmatprep.subr.bf16.mxu0 0
        %2528 = vmatpush1.bf16.msra.mxu0 %v2510
        %2529 = vmatprep.subr.bf16.mxu0 0
        %2530 = vmatpush1.bf16.msra.mxu0 %v2511
        %2531 = vmatprep.subr.bf16.mxu0 0
        %2532 = vmatpush1.bf16.msra.mxu0 %v2512
        %2533 = vmatprep.subr.bf16.mxu0 0
        %2534 = vmatpush1.bf16.msra.mxu0 %v2513
        %2535 = vmatprep.subr.bf16.mxu0 0
        %2536 = vmatpush1.bf16.msra.mxu0 %v2514
        %2537 = vmatprep.subr.bf16.mxu0 0
        %2538 = vmatpush1.bf16.msra.mxu0 %v2515
        %2539 = vmatprep.subr.bf16.mxu0 0
        %2540 = vmatpush1.bf16.msra.mxu0 %v2516
        %2541 = vmatprep.subr.bf16.mxu0 0
        %2542 = vmatpush1.bf16.msra.mxu0 0
        %2543 = vmatprep.subr.bf16.mxu0 0
        %2544 = vmatpush1.bf16.msra.mxu0 0
        %2545 = vmatprep.subr.bf16.mxu0 0
        %2546 = vmatpush1.bf16.msra.mxu0 0
        %2547 = vmatprep.subr.bf16.mxu0 0
        %2548 = vmatpush1.bf16.msra.mxu0 0
        %2549 = vmatprep.subr.bf16.mxu0 0
        %2550 = vmatpush1.bf16.msra.mxu0 0
        %2551 = vmatprep.subr.bf16.mxu0 0
        %2552 = vmatpush1.bf16.msra.mxu0 0
        %2553 = vmatprep.subr.bf16.mxu0 0
        %2554 = vmatpush1.bf16.msra.mxu0 0
        %2555 = vmatprep.subr.bf16.mxu0 0
        %2556 = vmatpush1.bf16.msra.mxu0 0
        %2557 = vmatprep.mubr.bf16.mxu0 0
        %2558 = vmatmul.mubr.bf16.gmra.mrb[0].mxu0 %v2438
        %v2559 = vpop.f32.mrb[0].mxu0
        %v2560 = vadd.f32 %v2475, %v2559
        %v2561 = vpop.f32.mrb[0].mxu0
        %v2562 = vpop.f32.mrb[0].mxu0
        %v2563 = vadd.f32 %v2475, %v2562
        %v2564 = vpop.f32.mrb[0].mxu0
        %2565 = vmatprep.mubr.bf16.mxu0 0
        %2566 = vmatmul.mubr.bf16.gmra.mrb[0].mxu0 %v2439
        %v2567 = vpop.f32.mrb[0].mxu0
        %v2568 = vadd.f32 %v2475, %v2567
        %v2569 = vpop.f32.mrb[0].mxu0
        %v2570 = vpop.f32.mrb[0].mxu0
        %v2571 = vadd.f32 %v2475, %v2570
        %v2572 = vpop.f32.mrb[0].mxu0
        %2573 = vmatprep.mubr.bf16.mxu0 0
        %2574 = vmatmul.mubr.bf16.gmra.mrb[0].mxu0 %v2440
        %v2575 = vpop.f32.mrb[0].mxu0
        %v2576 = vadd.f32 %v2475, %v2575
        %v2577 = vpop.f32.mrb[0].mxu0
        %v2578 = vpop.f32.mrb[0].mxu0
        %v2579 = vadd.f32 %v2475, %v2578
        %v2580 = vpop.f32.mrb[0].mxu0
        %2581 = vmatprep.mubr.bf16.mxu0 0
        %2582 = vmatmul.mubr.bf16.gmra.mrb[0].mxu0 %v2441
        %v2583 = vpop.f32.mrb[0].mxu0
        %v2584 = vadd.f32 %v2475, %v2583
        %v2585 = vpop.f32.mrb[0].mxu0
        %v2586 = vpop.f32.mrb[0].mxu0
        %v2587 = vadd.f32 %v2475, %v2586
        %v2588 = vpop.f32.mrb[0].mxu0
        %2589 = vmatprep.mubr.bf16.mxu0 0
        %2590 = vmatmul.mubr.bf16.gmra.mrb[0].mxu0 %v2442
        %v2591 = vpop.f32.mrb[0].mxu0
        %v2592 = vadd.f32 %v2475, %v2591
        %v2593 = vpop.f32.mrb[0].mxu0
        %v2594 = vpop.f32.mrb[0].mxu0
        %v2595 = vadd.f32 %v2475, %v2594
        %v2596 = vpop.f32.mrb[0].mxu0
        %2597 = vmatprep.mubr.bf16.mxu0 0
        %2598 = vmatmul.mubr.bf16.gmra.mrb[0].mxu0 %v2443
        %v2599 = vpop.f32.mrb[0].mxu0
        %v2600 = vadd.f32 %v2475, %v2599
        %v2601 = vpop.f32.mrb[0].mxu0
        %v2602 = vpop.f32.mrb[0].mxu0
        %v2603 = vadd.f32 %v2475, %v2602
        %v2604 = vpop.f32.mrb[0].mxu0
        %2605 = vmatprep.mubr.bf16.mxu0 0
        %2606 = vmatmul.mubr.bf16.gmra.mrb[0].mxu0 %v2444
        %v2607 = vpop.f32.mrb[0].mxu0
        %v2608 = vadd.f32 %v2475, %v2607
        %v2609 = vpop.f32.mrb[0].mxu0
        %v2610 = vpop.f32.mrb[0].mxu0
        %v2611 = vadd.f32 %v2475, %v2610
        %v2612 = vpop.f32.mrb[0].mxu0
        %2613 = vmatprep.mubr.bf16.mxu0 0
        %2614 = vmatmul.mubr.bf16.gmra.mrb[0].mxu0 %v2445
        %v2615 = vpop.f32.mrb[0].mxu0
        %v2616 = vadd.f32 %v2475, %v2615
        %v2617 = vpop.f32.mrb[0].mxu0
        %v2618 = vpop.f32.mrb[0].mxu0
        %v2619 = vadd.f32 %v2475, %v2618
        %v2620 = vpop.f32.mrb[0].mxu0
        %2621 = vmatprep.mubr.bf16.mxu0 0
        %2622 = vmatmul.mubr.bf16.gmra.mrb[0].mxu0 %v2446
        %v2623 = vpop.f32.mrb[0].mxu0
        %v2624 = vadd.f32 %v2475, %v2623
        %v2625 = vpop.f32.mrb[0].mxu0
        %v2626 = vpop.f32.mrb[0].mxu0
        %v2627 = vadd.f32 %v2475, %v2626
        %v2628 = vpop.f32.mrb[0].mxu0
        %2629 = vmatprep.mubr.bf16.mxu0 0
        %2630 = vmatmul.mubr.bf16.gmra.mrb[0].mxu0 %v2447
        %v2631 = vpop.f32.mrb[0].mxu0
        %v2632 = vadd.f32 %v2475, %v2631
        %v2633 = vpop.f32.mrb[0].mxu0
        %v2634 = vpop.f32.mrb[0].mxu0
        %v2635 = vadd.f32 %v2475, %v2634
        %v2636 = vpop.f32.mrb[0].mxu0
        %2637 = vmatprep.mubr.bf16.mxu0 0
        %2638 = vmatmul.mubr.bf16.gmra.mrb[0].mxu0 %v2448
        %v2639 = vpop.f32.mrb[0].mxu0
        %v2640 = vadd.f32 %v2475, %v2639
        %v2641 = vpop.f32.mrb[0].mxu0
        %v2642 = vpop.f32.mrb[0].mxu0
        %v2643 = vadd.f32 %v2475, %v2642
        %v2644 = vpop.f32.mrb[0].mxu0
        %2645 = vmatprep.mubr.bf16.mxu0 0
        %2646 = vmatmul.mubr.bf16.gmra.mrb[0].mxu0 %v2449
        %v2647 = vpop.f32.mrb[0].mxu0
        %v2648 = vadd.f32 %v2475, %v2647
        %v2649 = vpop.f32.mrb[0].mxu0
        %v2650 = vpop.f32.mrb[0].mxu0
        %v2651 = vadd.f32 %v2475, %v2650
        %v2652 = vpop.f32.mrb[0].mxu0
        %2653 = vmatprep.mubr.bf16.mxu0 0
        %2654 = vmatmul.mubr.bf16.gmra.mrb[0].mxu0 %v2450
        %v2655 = vpop.f32.mrb[0].mxu0
        %v2656 = vadd.f32 %v2475, %v2655
        %v2657 = vpop.f32.mrb[0].mxu0
        %v2658 = vpop.f32.mrb[0].mxu0
        %v2659 = vadd.f32 %v2475, %v2658
        %v2660 = vpop.f32.mrb[0].mxu0
        %2661 = vmatprep.mubr.bf16.mxu0 0
        %2662 = vmatmul.mubr.bf16.gmra.mrb[0].mxu0 %v2451
        %v2663 = vpop.f32.mrb[0].mxu0
        %v2664 = vadd.f32 %v2475, %v2663
        %v2665 = vpop.f32.mrb[0].mxu0
        %v2666 = vpop.f32.mrb[0].mxu0
        %v2667 = vadd.f32 %v2475, %v2666
        %v2668 = vpop.f32.mrb[0].mxu0
        %2669 = vmatprep.mubr.bf16.mxu0 0
        %2670 = vmatmul.mubr.bf16.gmra.mrb[0].mxu0 %v2452
        %v2671 = vpop.f32.mrb[0].mxu0
        %v2672 = vadd.f32 %v2475, %v2671
        %v2673 = vpop.f32.mrb[0].mxu0
        %v2674 = vpop.f32.mrb[0].mxu0
        %v2675 = vadd.f32 %v2475, %v2674
        %v2676 = vpop.f32.mrb[0].mxu0
        %2677 = vmatprep.mubr.bf16.mxu0 0
        %2678 = vmatmul.mubr.bf16.gmra.mrb[0].mxu0 %v2453
        %v2679 = vpop.f32.mrb[0].mxu0
        %v2680 = vadd.f32 %v2475, %v2679
        %v2681 = vpop.f32.mrb[0].mxu0
        %v2682 = vpop.f32.mrb[0].mxu0
        %v2683 = vadd.f32 %v2475, %v2682
        %v2684 = vpop.f32.mrb[0].mxu0
        %2685 = vdwg.mxu0
        %v2686 = vld [vmem:[#allocation10] sm:$0xf]
        %v2687 = vld [vmem:[#allocation10 + $0x4] sm:$0xf]
        %v2688 = vld [vmem:[#allocation10 + $0x8] sm:$0xf]
        %v2689 = vld [vmem:[#allocation10 + $0xc] sm:$0xf]
        %v2690 = vld [vmem:[#allocation10 + $0x10] sm:$0xf]
        %v2691 = vld [vmem:[#allocation10 + $0x14] sm:$0xf]
        %v2692 = vld [vmem:[#allocation10 + $0x18] sm:$0xf]
        %v2693 = vld [vmem:[#allocation10 + $0x1c] sm:$0xf]
        %v2694 = vld [vmem:[#allocation10 + $0x20] sm:$0xf]
        %v2695 = vld [vmem:[#allocation10 + $0x24] sm:$0xf]
        %v2696 = vld [vmem:[#allocation10 + $0x28] sm:$0xf]
        %v2697 = vld [vmem:[#allocation10 + $0x2c] sm:$0xf]
        %v2698 = vld [vmem:[#allocation10 + $0x30] sm:$0xf]
        %v2699 = vld [vmem:[#allocation10 + $0x34] sm:$0xf]
        %v2700 = vld [vmem:[#allocation10 + $0x38] sm:$0xf]
        %v2701 = vld [vmem:[#allocation10 + $0x3c] sm:$0xf]
        %v2718 = vunpack.c.l.b16 %v2686
        %v2719 = vunpack.c.l.b16 %v2687
        %v2720 = vunpack.c.l.b16 %v2688
        %v2721 = vunpack.c.l.b16 %v2689
        %v2722 = vunpack.c.l.b16 %v2690
        %v2723 = vunpack.c.l.b16 %v2691
        %v2724 = vunpack.c.l.b16 %v2692
        %v2725 = vunpack.c.l.b16 %v2693
        %v2726 = vunpack.c.l.b16 %v2694
        %v2727 = vunpack.c.l.b16 %v2695
        %v2728 = vunpack.c.l.b16 %v2696
        %v2729 = vunpack.c.l.b16 %v2697
        %v2730 = vunpack.c.l.b16 %v2698
        %v2731 = vunpack.c.l.b16 %v2699
        %v2732 = vunpack.c.l.b16 %v2700
        %v2733 = vunpack.c.l.b16 %v2701
        %v2734 = vpack.c.b16 %v2719, %v2718
        %v2735 = vpack.c.b16 %v2721, %v2720
        %v2736 = vpack.c.b16 %v2723, %v2722
        %v2737 = vpack.c.b16 %v2725, %v2724
        %v2738 = vpack.c.b16 %v2727, %v2726
        %v2739 = vpack.c.b16 %v2729, %v2728
        %v2740 = vpack.c.b16 %v2731, %v2730
        %v2741 = vpack.c.b16 %v2733, %v2732
        %2750 = vmatprep.subr.bf16.mxu0 0
        %2751 = vmatpush1.bf16.msra.mxu0 %v2734
        %2752 = vmatprep.subr.bf16.mxu0 0
        %2753 = vmatpush1.bf16.msra.mxu0 %v2735
        %2754 = vmatprep.subr.bf16.mxu0 0
        %2755 = vmatpush1.bf16.msra.mxu0 %v2736
        %2756 = vmatprep.subr.bf16.mxu0 0
        %2757 = vmatpush1.bf16.msra.mxu0 %v2737
        %2758 = vmatprep.subr.bf16.mxu0 0
        %2759 = vmatpush1.bf16.msra.mxu0 %v2738
        %2760 = vmatprep.subr.bf16.mxu0 0
        %2761 = vmatpush1.bf16.msra.mxu0 %v2739
        %2762 = vmatprep.subr.bf16.mxu0 0
        %2763 = vmatpush1.bf16.msra.mxu0 %v2740
        %2764 = vmatprep.subr.bf16.mxu0 0
        %2765 = vmatpush1.bf16.msra.mxu0 %v2741
        %2766 = vmatprep.subr.bf16.mxu0 0
        %2767 = vmatpush1.bf16.msra.mxu0 0
        %2768 = vmatprep.subr.bf16.mxu0 0
        %2769 = vmatpush1.bf16.msra.mxu0 0
        %2770 = vmatprep.subr.bf16.mxu0 0
        %2771 = vmatpush1.bf16.msra.mxu0 0
        %2772 = vmatprep.subr.bf16.mxu0 0
        %2773 = vmatpush1.bf16.msra.mxu0 0
        %2774 = vmatprep.subr.bf16.mxu0 0
        %2775 = vmatpush1.bf16.msra.mxu0 0
        %2776 = vmatprep.subr.bf16.mxu0 0
        %2777 = vmatpush1.bf16.msra.mxu0 0
        %2778 = vmatprep.subr.bf16.mxu0 0
        %2779 = vmatpush1.bf16.msra.mxu0 0
        %2780 = vmatprep.subr.bf16.mxu0 0
        %2781 = vmatpush1.bf16.msra.mxu0 0
        %2782 = vmatprep.mubr.bf16.mxu0 0
        %2783 = vmatmul.mubr.bf16.gmra.mrb[0].mxu0 %v502
        %v2784 = vpop.f32.mrb[0].mxu0
        %v2785 = vadd.f32 0.0, %v2784
        %v2786 = vpop.f32.mrb[0].mxu0
        %v2787 = vpop.f32.mrb[0].mxu0
        %v2788 = vadd.f32 0.0, %v2787
        %v2789 = vpop.f32.mrb[0].mxu0
        %2790 = vmatprep.mubr.bf16.mxu0 0
        %2791 = vmatmul.mubr.bf16.gmra.mrb[0].mxu0 %v503
        %v2792 = vpop.f32.mrb[0].mxu0
        %v2793 = vadd.f32 0.0, %v2792
        %v2794 = vpop.f32.mrb[0].mxu0
        %v2795 = vpop.f32.mrb[0].mxu0
        %v2796 = vadd.f32 0.0, %v2795
        %v2797 = vpop.f32.mrb[0].mxu0
        %2798 = vmatprep.mubr.bf16.mxu0 0
        %2799 = vmatmul.mubr.bf16.gmra.mrb[0].mxu0 %v504
        %v2800 = vpop.f32.mrb[0].mxu0
        %v2801 = vadd.f32 0.0, %v2800
        %v2802 = vpop.f32.mrb[0].mxu0
        %v2803 = vpop.f32.mrb[0].mxu0
        %v2804 = vadd.f32 0.0, %v2803
        %v2805 = vpop.f32.mrb[0].mxu0
        %2806 = vmatprep.mubr.bf16.mxu0 0
        %2807 = vmatmul.mubr.bf16.gmra.mrb[0].mxu0 %v505
        %v2808 = vpop.f32.mrb[0].mxu0
        %v2809 = vadd.f32 0.0, %v2808
        %v2810 = vpop.f32.mrb[0].mxu0
        %v2811 = vpop.f32.mrb[0].mxu0
        %v2812 = vadd.f32 0.0, %v2811
        %v2813 = vpop.f32.mrb[0].mxu0
        %2814 = vmatprep.mubr.bf16.mxu0 0
        %2815 = vmatmul.mubr.bf16.gmra.mrb[0].mxu0 %v506
        %v2816 = vpop.f32.mrb[0].mxu0
        %v2817 = vadd.f32 0.0, %v2816
        %v2818 = vpop.f32.mrb[0].mxu0
        %v2819 = vpop.f32.mrb[0].mxu0
        %v2820 = vadd.f32 0.0, %v2819
        %v2821 = vpop.f32.mrb[0].mxu0
        %2822 = vmatprep.mubr.bf16.mxu0 0
        %2823 = vmatmul.mubr.bf16.gmra.mrb[0].mxu0 %v507
        %v2824 = vpop.f32.mrb[0].mxu0
        %v2825 = vadd.f32 0.0, %v2824
        %v2826 = vpop.f32.mrb[0].mxu0
        %v2827 = vpop.f32.mrb[0].mxu0
        %v2828 = vadd.f32 0.0, %v2827
        %v2829 = vpop.f32.mrb[0].mxu0
        %2830 = vmatprep.mubr.bf16.mxu0 0
        %2831 = vmatmul.mubr.bf16.gmra.mrb[0].mxu0 %v508
        %v2832 = vpop.f32.mrb[0].mxu0
        %v2833 = vadd.f32 0.0, %v2832
        %v2834 = vpop.f32.mrb[0].mxu0
        %v2835 = vpop.f32.mrb[0].mxu0
        %v2836 = vadd.f32 0.0, %v2835
        %v2837 = vpop.f32.mrb[0].mxu0
        %2838 = vmatprep.mubr.bf16.mxu0 0
        %2839 = vmatmul.mubr.bf16.gmra.mrb[0].mxu0 %v509
        %v2840 = vpop.f32.mrb[0].mxu0
        %v2841 = vadd.f32 0.0, %v2840
        %v2842 = vpop.f32.mrb[0].mxu0
        %v2843 = vpop.f32.mrb[0].mxu0
        %v2844 = vadd.f32 0.0, %v2843
        %v2845 = vpop.f32.mrb[0].mxu0
        %2846 = vmatprep.mubr.bf16.mxu0 0
        %2847 = vmatmul.mubr.bf16.gmra.mrb[0].mxu0 %v510
        %v2848 = vpop.f32.mrb[0].mxu0
        %v2849 = vadd.f32 0.0, %v2848
        %v2850 = vpop.f32.mrb[0].mxu0
        %v2851 = vpop.f32.mrb[0].mxu0
        %v2852 = vadd.f32 0.0, %v2851
        %v2853 = vpop.f32.mrb[0].mxu0
        %2854 = vmatprep.mubr.bf16.mxu0 0
        %2855 = vmatmul.mubr.bf16.gmra.mrb[0].mxu0 %v511
        %v2856 = vpop.f32.mrb[0].mxu0
        %v2857 = vadd.f32 0.0, %v2856
        %v2858 = vpop.f32.mrb[0].mxu0
        %v2859 = vpop.f32.mrb[0].mxu0
        %v2860 = vadd.f32 0.0, %v2859
        %v2861 = vpop.f32.mrb[0].mxu0
        %2862 = vmatprep.mubr.bf16.mxu0 0
        %2863 = vmatmul.mubr.bf16.gmra.mrb[0].mxu0 %v512
        %v2864 = vpop.f32.mrb[0].mxu0
        %v2865 = vadd.f32 0.0, %v2864
        %v2866 = vpop.f32.mrb[0].mxu0
        %v2867 = vpop.f32.mrb[0].mxu0
        %v2868 = vadd.f32 0.0, %v2867
        %v2869 = vpop.f32.mrb[0].mxu0
        %2870 = vmatprep.mubr.bf16.mxu0 0
        %2871 = vmatmul.mubr.bf16.gmra.mrb[0].mxu0 %v513
        %v2872 = vpop.f32.mrb[0].mxu0
        %v2873 = vadd.f32 0.0, %v2872
        %v2874 = vpop.f32.mrb[0].mxu0
        %v2875 = vpop.f32.mrb[0].mxu0
        %v2876 = vadd.f32 0.0, %v2875
        %v2877 = vpop.f32.mrb[0].mxu0
        %2878 = vmatprep.mubr.bf16.mxu0 0
        %2879 = vmatmul.mubr.bf16.gmra.mrb[0].mxu0 %v514
        %v2880 = vpop.f32.mrb[0].mxu0
        %v2881 = vadd.f32 0.0, %v2880
        %v2882 = vpop.f32.mrb[0].mxu0
        %v2883 = vpop.f32.mrb[0].mxu0
        %v2884 = vadd.f32 0.0, %v2883
        %v2885 = vpop.f32.mrb[0].mxu0
        %2886 = vmatprep.mubr.bf16.mxu0 0
        %2887 = vmatmul.mubr.bf16.gmra.mrb[0].mxu0 %v515
        %v2888 = vpop.f32.mrb[0].mxu0
        %v2889 = vadd.f32 0.0, %v2888
        %v2890 = vpop.f32.mrb[0].mxu0
        %v2891 = vpop.f32.mrb[0].mxu0
        %v2892 = vadd.f32 0.0, %v2891
        %v2893 = vpop.f32.mrb[0].mxu0
        %2894 = vmatprep.mubr.bf16.mxu0 0
        %2895 = vmatmul.mubr.bf16.gmra.mrb[0].mxu0 %v516
        %v2896 = vpop.f32.mrb[0].mxu0
        %v2897 = vadd.f32 0.0, %v2896
        %v2898 = vpop.f32.mrb[0].mxu0
        %v2899 = vpop.f32.mrb[0].mxu0
        %v2900 = vadd.f32 0.0, %v2899
        %v2901 = vpop.f32.mrb[0].mxu0
        %2902 = vmatprep.mubr.bf16.mxu0 0
        %2903 = vmatmul.mubr.bf16.gmra.mrb[0].mxu0 %v517
        %v2904 = vpop.f32.mrb[0].mxu0
        %v2905 = vadd.f32 0.0, %v2904
        %v2906 = vpop.f32.mrb[0].mxu0
        %v2907 = vpop.f32.mrb[0].mxu0
        %v2908 = vadd.f32 0.0, %v2907
        %v2909 = vpop.f32.mrb[0].mxu0
        %2910 = vdwg.mxu0
        %v2911 = vadd.f32 %v2560, %v2785
        %v2912 = vadd.f32 %v2563, %v2788
        %v2913 = vadd.f32 %v2568, %v2793
        %v2914 = vadd.f32 %v2571, %v2796
        %v2915 = vadd.f32 %v2576, %v2801
        %v2916 = vadd.f32 %v2579, %v2804
        %v2917 = vadd.f32 %v2584, %v2809
        %v2918 = vadd.f32 %v2587, %v2812
        %v2919 = vadd.f32 %v2592, %v2817
        %v2920 = vadd.f32 %v2595, %v2820
        %v2921 = vadd.f32 %v2600, %v2825
        %v2922 = vadd.f32 %v2603, %v2828
        %v2923 = vadd.f32 %v2608, %v2833
        %v2924 = vadd.f32 %v2611, %v2836
        %v2925 = vadd.f32 %v2616, %v2841
        %v2926 = vadd.f32 %v2619, %v2844
        %v2927 = vadd.f32 %v2624, %v2849
        %v2928 = vadd.f32 %v2627, %v2852
        %v2929 = vadd.f32 %v2632, %v2857
        %v2930 = vadd.f32 %v2635, %v2860
        %v2931 = vadd.f32 %v2640, %v2865
        %v2932 = vadd.f32 %v2643, %v2868
        %v2933 = vadd.f32 %v2648, %v2873
        %v2934 = vadd.f32 %v2651, %v2876
        %v2935 = vadd.f32 %v2656, %v2881
        %v2936 = vadd.f32 %v2659, %v2884
        %v2937 = vadd.f32 %v2664, %v2889
        %v2938 = vadd.f32 %v2667, %v2892
        %v2939 = vadd.f32 %v2672, %v2897
        %v2940 = vadd.f32 %v2675, %v2900
        %v2941 = vadd.f32 %v2680, %v2905
        %v2942 = vadd.f32 %v2683, %v2908
        %v2943 = vpack.c.bf16 %v2912, %v2911
        %v2944 = vpack.c.bf16 %v2914, %v2913
        %v2945 = vpack.c.bf16 %v2916, %v2915
        %v2946 = vpack.c.bf16 %v2918, %v2917
        %v2947 = vpack.c.bf16 %v2920, %v2919
        %v2948 = vpack.c.bf16 %v2922, %v2921
        %v2949 = vpack.c.bf16 %v2924, %v2923
        %v2950 = vpack.c.bf16 %v2926, %v2925
        %v2951 = vpack.c.bf16 %v2928, %v2927
        %v2952 = vpack.c.bf16 %v2930, %v2929
        %v2953 = vpack.c.bf16 %v2932, %v2931
        %v2954 = vpack.c.bf16 %v2934, %v2933
        %v2955 = vpack.c.bf16 %v2936, %v2935
        %v2956 = vpack.c.bf16 %v2938, %v2937
        %v2957 = vpack.c.bf16 %v2940, %v2939
        %v2958 = vpack.c.bf16 %v2942, %v2941
        %v2975 = vunpack.c.l.b16 %v2943
        %v2976 = vunpack.c.h.b16 %v2943
        %v2977 = vunpack.c.l.b16 %v2944
        %v2978 = vunpack.c.h.b16 %v2944
        %v2979 = vunpack.c.l.b16 %v2945
        %v2980 = vunpack.c.h.b16 %v2945
        %v2981 = vunpack.c.l.b16 %v2946
        %v2982 = vunpack.c.h.b16 %v2946
        %v2983 = vunpack.c.l.b16 %v2947
        %v2984 = vunpack.c.h.b16 %v2947
        %v2985 = vunpack.c.l.b16 %v2948
        %v2986 = vunpack.c.h.b16 %v2948
        %v2987 = vunpack.c.l.b16 %v2949
        %v2988 = vunpack.c.h.b16 %v2949
        %v2989 = vunpack.c.l.b16 %v2950
        %v2990 = vunpack.c.h.b16 %v2950
        %v2991 = vunpack.c.l.b16 %v2951
        %v2992 = vunpack.c.h.b16 %v2951
        %v2993 = vunpack.c.l.b16 %v2952
        %v2994 = vunpack.c.h.b16 %v2952
        %v2995 = vunpack.c.l.b16 %v2953
        %v2996 = vunpack.c.h.b16 %v2953
        %v2997 = vunpack.c.l.b16 %v2954
        %v2998 = vunpack.c.h.b16 %v2954
        %v2999 = vunpack.c.l.b16 %v2955
        %v3000 = vunpack.c.h.b16 %v2955
        %v3001 = vunpack.c.l.b16 %v2956
        %v3002 = vunpack.c.h.b16 %v2956
        %v3003 = vunpack.c.l.b16 %v2957
        %v3004 = vunpack.c.h.b16 %v2957
        %v3005 = vunpack.c.l.b16 %v2958
        %v3006 = vunpack.c.h.b16 %v2958
        %v3007 = vpack.c.b16 %v2975, %v2975
        %v3008 = vpack.c.b16 %v2976, %v2976
        %v3009 = vpack.c.b16 %v2977, %v2977
        %v3010 = vpack.c.b16 %v2978, %v2978
        %v3011 = vpack.c.b16 %v2979, %v2979
        %v3012 = vpack.c.b16 %v2980, %v2980
        %v3013 = vpack.c.b16 %v2981, %v2981
        %v3014 = vpack.c.b16 %v2982, %v2982
        %v3015 = vpack.c.b16 %v2983, %v2983
        %v3016 = vpack.c.b16 %v2984, %v2984
        %v3017 = vpack.c.b16 %v2985, %v2985
        %v3018 = vpack.c.b16 %v2986, %v2986
        %v3019 = vpack.c.b16 %v2987, %v2987
        %v3020 = vpack.c.b16 %v2988, %v2988
        %v3021 = vpack.c.b16 %v2989, %v2989
        %v3022 = vpack.c.b16 %v2990, %v2990
        %v3023 = vpack.c.b16 %v2991, %v2991
        %v3024 = vpack.c.b16 %v2992, %v2992
        %v3025 = vpack.c.b16 %v2993, %v2993
        %v3026 = vpack.c.b16 %v2994, %v2994
        %v3027 = vpack.c.b16 %v2995, %v2995
        %v3028 = vpack.c.b16 %v2996, %v2996
        %v3029 = vpack.c.b16 %v2997, %v2997
        %v3030 = vpack.c.b16 %v2998, %v2998
        %v3031 = vpack.c.b16 %v2999, %v2999
        %v3032 = vpack.c.b16 %v3000, %v3000
        %v3033 = vpack.c.b16 %v3001, %v3001
        %v3034 = vpack.c.b16 %v3002, %v3002
        %v3035 = vpack.c.b16 %v3003, %v3003
        %v3036 = vpack.c.b16 %v3004, %v3004
        %v3037 = vpack.c.b16 %v3005, %v3005
        %v3038 = vpack.c.b16 %v3006, %v3006
        %3071 = vst [vmem:[%s381] sm:$0xf] %v3007
        %3072 = vst [vmem:[%s381 + $0x4] sm:$0xf] %v3008
        %3073 = vst [vmem:[%s381 + $0x8] sm:$0xf] %v3009
        %3074 = vst [vmem:[%s381 + $0xc] sm:$0xf] %v3010
        %3075 = vst [vmem:[%s381 + $0x10] sm:$0xf] %v3011
        %3076 = vst [vmem:[%s381 + $0x14] sm:$0xf] %v3012
        %3077 = vst [vmem:[%s381 + $0x18] sm:$0xf] %v3013
        %3078 = vst [vmem:[%s381 + $0x1c] sm:$0xf] %v3014
        %3079 = vst [vmem:[%s381 + $0x20] sm:$0xf] %v3015
        %3080 = vst [vmem:[%s381 + $0x24] sm:$0xf] %v3016
        %3081 = vst [vmem:[%s381 + $0x28] sm:$0xf] %v3017
        %3082 = vst [vmem:[%s381 + $0x2c] sm:$0xf] %v3018
        %3083 = vst [vmem:[%s381 + $0x30] sm:$0xf] %v3019
        %3084 = vst [vmem:[%s381 + $0x34] sm:$0xf] %v3020
        %3085 = vst [vmem:[%s381 + $0x38] sm:$0xf] %v3021
        %3086 = vst [vmem:[%s381 + $0x3c] sm:$0xf] %v3022
        %3087 = vst [vmem:[%s381 + $0x40] sm:$0xf] %v3023
        %3088 = vst [vmem:[%s381 + $0x44] sm:$0xf] %v3024
        %3089 = vst [vmem:[%s381 + $0x48] sm:$0xf] %v3025
        %3090 = vst [vmem:[%s381 + $0x4c] sm:$0xf] %v3026
        %3091 = vst [vmem:[%s381 + $0x50] sm:$0xf] %v3027
        %3092 = vst [vmem:[%s381 + $0x54] sm:$0xf] %v3028
        %3093 = vst [vmem:[%s381 + $0x58] sm:$0xf] %v3029
        %3094 = vst [vmem:[%s381 + $0x5c] sm:$0xf] %v3030
        %3095 = vst [vmem:[%s381 + $0x60] sm:$0xf] %v3031
        %3096 = vst [vmem:[%s381 + $0x64] sm:$0xf] %v3032
        %3097 = vst [vmem:[%s381 + $0x68] sm:$0xf] %v3033
        %3098 = vst [vmem:[%s381 + $0x6c] sm:$0xf] %v3034
        %3099 = vst [vmem:[%s381 + $0x70] sm:$0xf] %v3035
        %3100 = vst [vmem:[%s381 + $0x74] sm:$0xf] %v3036
        %3101 = vst [vmem:[%s381 + $0x78] sm:$0xf] %v3037
        %3102 = vst [vmem:[%s381 + $0x7c] sm:$0xf] %v3038
        %s3103 = sand.u32 %s208, 1
        %s3104 = scalar_lea.sflag [#allocation4], %s3103
        %s3105 = sand.u32 %s208, 1
        %s3106 = smul.addr %s3105, 128
        %s3107 = scalar_lea.vmem [#allocation11], %s3106
        // Predicated region
        $region73: #{tpu_custom_call.1} parent=51 // pred_check
          %p3108 = pneg %p218
        $region74: #{tpu_custom_call.1} parent=51 // pred_check_branch
          %3110 = sbr.rel (%p3108) target = $region76
        $region75: #{tpu_custom_call.1} parent=51 // pred_region
          %s3112 = ssub.s32 2048, 2048
          %3113 = vsyncadd %s3104, %s3112
          %s3114 = smul.addr %s27, 32
          %s3115 = smul.addr %s3114, 64
          %s3116 = scalar_lea.hbm %s8, %s3115
          %s3117 = sshll.u32 %s3107, 4
          %s3118 = int_to_ptr.vmem [resolvable:$true] %s3117
          %3123 = dma.vmem_to_hbm [thread:$0]  %s3118, 2048, %s3116, %s3104, 64, 64, 4
        $region76: #{tpu_custom_call.1} parent=51 // pred_fallthru
          _
      $region52: #{tpu_custom_call.1} parent=5 // pred_fallthru
        _
      %p3124 = scmp.le.s32.totalorder 2, %s22
      // Predicated region
      $region77: #{tpu_custom_call.1} parent=5 // pred_check
        %p3125 = pneg %p3124
      $region78: #{tpu_custom_call.1} parent=5 // pred_check_branch
        %3127 = sbr.rel (%p3125) target = $region80
      $region79: #{tpu_custom_call.1} parent=5 // pred_region
        %s3128 = ssub.s32 %s22, 2
        // Predicated region
        $region81: #{tpu_custom_call.1} parent=79 // pred_check
          %p3129 = pneg %p224
        $region82: #{tpu_custom_call.1} parent=79 // pred_check_branch
          %3131 = sbr.rel (%p3129) target = $region84
        $region83: #{tpu_custom_call.1} parent=79 // pred_region
          %s3132 = sand.u32 %s209, 1
          %s3133 = scalar_lea.sflag [#allocation4], %s3132
          %s3134 = sand.u32 %s209, 1
          %s3135 = smul.addr %s3134, 128
          %s3136 = scalar_lea.vmem [#allocation11], %s3135
          %3137 = dma.done %s3133, 2048
        $region84: #{tpu_custom_call.1} parent=79 // pred_fallthru
          _
      $region80: #{tpu_custom_call.1} parent=5 // pred_fallthru
        _
    $region6: #{tpu_custom_call.1} parent=1 // loop_footer
      %s26 = sadd.s32 1, %s22
    $region7: #{tpu_custom_call.1} parent=1 // loop_footer_branch
      %21 = sbr.rel target = $region3
    $region8: #{tpu_custom_call.1} parent=1 // loop_exit
      _
    %3138 = vsyncpa [#allocation3], 1
    %s3139 = scalar_lea.sflag [#allocation3], 1
    %3140 = vsyncpa %s3139, 1
    %3141 = vsyncpa [#allocation6], 1
    %3142 = vsyncpa [#allocation9], 1
    %3143 = vsyncpa [#allocation4], 1
    %s3144 = scalar_lea.sflag [#allocation4], 1
    %3145 = vsyncpa %s3144, 1

// kernel: tpu_custom_call.1
$region0: #{tpu_custom_call.1}
  #allocation0 [shape = 'u32[]', space=smem, size = 0x4, offset = 0x4, fixed_abs, tag = 'smem constant byte address 0x4 - core index']
  #allocation1 [shape = 'u32[144,128]{1,0:T(1,128)}', space=vmem, size = 0x12000, scoped, tag = 'internal scratch']
  %s0 = inlined_call_operand.hbm [shape: bf16[2,16,16,128], index: 0, kind: input, shape index: {}]
  %s1 = inlined_call_operand.hbm [shape: bf16[128,128], index: 1, kind: input, shape index: {}]
  %s2 = inlined_call_operand.hbm [shape: bf16[1152,128], index: 2, kind: input, shape index: {}]
  %s3 = inlined_call_operand.hbm [shape: bf16[128,128], index: 3, kind: input, shape index: {}]
  %s4 = inlined_call_operand.hbm [shape: bf16[128,128], index: 4, kind: input, shape index: {}]
  %s5 = inlined_call_operand.vmem [shape: f32[1,128], index: 5, kind: input, shape index: {}]
  %s6 = inlined_call_operand.vmem [shape: f32[1,128], index: 6, kind: input, shape index: {}]
  %s7 = inlined_call_operand.vmem [shape: f32[1,128], index: 7, kind: input, shape index: {}]
  %s8 = inlined_call_operand.hbm [shape: bf16[2,16,16,128], index: 8, kind: output, shape index: {}]
  %s9 = sld [smem:[#allocation0]]
  $region85: #{tpu_custom_call.1} parent=0
    _
  %s11 = ssub.s32 1, %s9
  %s12 = scalar_select 0, %s11, %s9
  $region1: #{tpu_custom_call.1} parent=0
    #allocation2 [shape = 'u8[131072]{0}', space=vmem, size = 0x20000, scoped, tag = 'input window, operand 0']
    #allocation3 [shape = 's32[2]{0}', space=sflag, size = 0x8, scoped, tag = 'scoped memory for tpu_custom_call.1']
    #allocation4 [shape = 's32[2]{0}', space=sflag, size = 0x8, scoped, tag = 'scoped memory for tpu_custom_call.1']
    #allocation5 [shape = 'u8[32768]{0}', space=vmem, size = 0x8000, scoped, tag = 'input window, operand 1, single buffered']
    #allocation6 [shape = 's32[1]{0}', space=sflag, size = 0x4, scoped, tag = 'scoped memory for tpu_custom_call.1']
    #allocation7 [shape = 'u8[294912]{0}', space=vmem, size = 0x48000, scoped, tag = 'input window, operand 2, single buffered']
    #allocation8 [shape = 'u8[32768]{0}', space=vmem, size = 0x8000, scoped, tag = 'input window, operand 3, single buffered']
    #allocation9 [shape = 's32[1]{0}', space=sflag, size = 0x4, scoped, tag = 'scoped memory for tpu_custom_call.1']
    #allocation10 [shape = 'u8[32768]{0}', space=vmem, size = 0x8000, scoped, tag = 'input window, operand 4, single buffered']
    #allocation11 [shape = 'u8[131072]{0}', space=vmem, size = 0x20000, scoped, tag = 'output window, operand 0']
    %13 = vsyncpa [#allocation3], 0
    %s14 = scalar_lea.sflag [#allocation3], 1
    %15 = vsyncpa %s14, 0
    %16 = vsyncpa [#allocation6], 0
    %17 = vsyncpa [#allocation9], 0
    %18 = vsyncpa [#allocation4], 0
    %s19 = scalar_lea.sflag [#allocation4], 1
    %20 = vsyncpa %s19, 0
    loop: start=0, step=1, limit=4
    $region2: #{tpu_custom_call.1} parent=1 // loop_pre_header
      _
    $region3: #{tpu_custom_call.1} parent=1 // loop_header
      %s22 = sphi 0, %s26
      %p23 = scmp.ge.s32.totalorder %s22, 4
      %s32 = sphi 0, %s34
      %s35 = sphi 0, %s32
      %s36 = sphi 0, %s35
      %s52 = sphi 0, %s36
      %s56 = sphi 0, %s56
      %s58 = sphi 0, %s56
      %s59 = sphi 0, %s58
      %s73 = sphi 0, %s59
      %s77 = sphi 0, %s77
      %s79 = sphi 0, %s77
      %s80 = sphi 0, %s79
      %s94 = sphi 0, %s80
      %s98 = sphi 0, %s98
      %s100 = sphi 0, %s98
      %s101 = sphi 0, %s100
      %s115 = sphi 0, %s101
      %s119 = sphi 0, %s119
      %s121 = sphi 0, %s119
      %s122 = sphi 0, %s121
      %s136 = sphi 0, %s122
      %s140 = sphi 0, %s140
      %s142 = sphi 0, %s140
      %s143 = sphi 0, %s142
      %s157 = sphi 0, %s143
      %s161 = sphi 0, %s161
      %s163 = sphi 0, %s161
      %s164 = sphi 0, %s163
      %s178 = sphi 0, %s164
      %s182 = sphi 0, %s182
      %s184 = sphi 0, %s182
      %s185 = sphi 0, %s184
      %s199 = sphi 0, %s185
      %s205 = sphi 0, %s207
      %s208 = sphi 0, %s205
      %s209 = sphi 0, %s208
      %s225 = sphi 0, %s209
    $region4: #{tpu_custom_call.1} parent=1 // loop_header_branch
      %25 = sbr.rel (%p23) target = $region8
    $region5: #{tpu_custom_call.1} parent=1 // loop_body
      %s27 = ssub.s32 %s22, 1
      %s28 = ssub.s32 %s22, 2
      %s29 = sadd.s32 %s22, 1
      %s30 = ssub.s32 %s22, %s29
      %p31 = scmp.eq.s32.totalorder %s30, 0
      %s33 = sadd.s32 %s32, 1
      %s34 = scalar_select %p31, %s32, %s33
      %p37 = pneg %p31
      %p38 = scmp.eq.s32.totalorder %s22, 1
      %p39 = por %p37, %p38
      %p40 = scmp.ne.s32.totalorder %s32, %s35
      %p41 = scmp.eq.s32.totalorder %s22, 0
      %p42 = por %p40, %p41
      %p43 = scmp.ne.s32.totalorder %s32, %s35
      %p44 = scmp.eq.s32.totalorder %s27, 1
      %p45 = por %p43, %p44
      %p46 = scmp.ne.s32.totalorder %s35, %s36
      %p47 = scmp.eq.s32.totalorder %s27, 0
      %p48 = por %p46, %p47
      %p49 = scmp.ne.s32.totalorder %s35, %s36
      %p50 = scmp.eq.s32.totalorder %s28, 1
      %p51 = por %p49, %p50
      %p53 = scmp.ne.s32.totalorder %s36, %s52
      %p54 = scmp.eq.s32.totalorder %s28, 0
      %p55 = por %p53, %p54
      %s57 = sadd.s32 %s56, 1
      %p60 = scmp.eq.s32.totalorder %s22, 1
      %p61 = scmp.ne.s32.totalorder %s56, %s58
      %p62 = scmp.eq.s32.totalorder %s22, 0
      %p63 = por %p61, %p62
      %p64 = scmp.ne.s32.totalorder %s56, %s58
      %p65 = scmp.eq.s32.totalorder %s27, 1
      %p66 = por %p64, %p65
      %p67 = scmp.ne.s32.totalorder %s58, %s59
      %p68 = scmp.eq.s32.totalorder %s27, 0
      %p69 = por %p67, %p68
      %p70 = scmp.ne.s32.totalorder %s58, %s59
      %p71 = scmp.eq.s32.totalorder %s28, 1
      %p72 = por %p70, %p71
      %p74 = scmp.ne.s32.totalorder %s59, %s73
      %p75 = scmp.eq.s32.totalorder %s28, 0
      %p76 = por %p74, %p75
      %s78 = sadd.s32 %s77, 1
      %p81 = scmp.eq.s32.totalorder %s22, 1
      %p82 = scmp.ne.s32.totalorder %s77, %s79
      %p83 = scmp.eq.s32.totalorder %s22, 0
      %p84 = por %p82, %p83
      %p85 = scmp.ne.s32.totalorder %s77, %s79
      %p86 = scmp.eq.s32.totalorder %s27, 1
      %p87 = por %p85, %p86
      %p88 = scmp.ne.s32.totalorder %s79, %s80
      %p89 = scmp.eq.s32.totalorder %s27, 0
      %p90 = por %p88, %p89
      %p91 = scmp.ne.s32.totalorder %s79, %s80
      %p92 = scmp.eq.s32.totalorder %s28, 1
      %p93 = por %p91, %p92
      %p95 = scmp.ne.s32.totalorder %s80, %s94
      %p96 = scmp.eq.s32.totalorder %s28, 0
      %p97 = por %p95, %p96
      %s99 = sadd.s32 %s98, 1
      %p102 = scmp.eq.s32.totalorder %s22, 1
      %p103 = scmp.ne.s32.totalorder %s98, %s100
      %p104 = scmp.eq.s32.totalorder %s22, 0
      %p105 = por %p103, %p104
      %p106 = scmp.ne.s32.totalorder %s98, %s100
      %p107 = scmp.eq.s32.totalorder %s27, 1
      %p108 = por %p106, %p107
      %p109 = scmp.ne.s32.totalorder %s100, %s101
      %p110 = scmp.eq.s32.totalorder %s27, 0
      %p111 = por %p109, %p110
      %p112 = scmp.ne.s32.totalorder %s100, %s101
      %p113 = scmp.eq.s32.totalorder %s28, 1
      %p114 = por %p112, %p113
      %p116 = scmp.ne.s32.totalorder %s101, %s115
      %p117 = scmp.eq.s32.totalorder %s28, 0
      %p118 = por %p116, %p117
      %s120 = sadd.s32 %s119, 1
      %p123 = scmp.eq.s32.totalorder %s22, 1
      %p124 = scmp.ne.s32.totalorder %s119, %s121
      %p125 = scmp.eq.s32.totalorder %s22, 0
      %p126 = por %p124, %p125
      %p127 = scmp.ne.s32.totalorder %s119, %s121
      %p128 = scmp.eq.s32.totalorder %s27, 1
      %p129 = por %p127, %p128
      %p130 = scmp.ne.s32.totalorder %s121, %s122
      %p131 = scmp.eq.s32.totalorder %s27, 0
      %p132 = por %p130, %p131
      %p133 = scmp.ne.s32.totalorder %s121, %s122
      %p134 = scmp.eq.s32.totalorder %s28, 1
      %p135 = por %p133, %p134
      %p137 = scmp.ne.s32.totalorder %s122, %s136
      %p138 = scmp.eq.s32.totalorder %s28, 0
      %p139 = por %p137, %p138
      %s141 = sadd.s32 %s140, 1
      %p144 = scmp.eq.s32.totalorder %s22, 1
      %p145 = scmp.ne.s32.totalorder %s140, %s142
      %p146 = scmp.eq.s32.totalorder %s22, 0
      %p147 = por %p145, %p146
      %p148 = scmp.ne.s32.totalorder %s140, %s142
      %p149 = scmp.eq.s32.totalorder %s27, 1
      %p150 = por %p148, %p149
      %p151 = scmp.ne.s32.totalorder %s142, %s143
      %p152 = scmp.eq.s32.totalorder %s27, 0
      %p153 = por %p151, %p152
      %p154 = scmp.ne.s32.totalorder %s142, %s143
      %p155 = scmp.eq.s32.totalorder %s28, 1
      %p156 = por %p154, %p155
      %p158 = scmp.ne.s32.totalorder %s143, %s157
      %p159 = scmp.eq.s32.totalorder %s28, 0
      %p160 = por %p158, %p159
      %s162 = sadd.s32 %s161, 1
      %p165 = scmp.eq.s32.totalorder %s22, 1
      %p166 = scmp.ne.s32.totalorder %s161, %s163
      %p167 = scmp.eq.s32.totalorder %s22, 0
      %p168 = por %p166, %p167
      %p169 = scmp.ne.s32.totalorder %s161, %s163
      %p170 = scmp.eq.s32.totalorder %s27, 1
      %p171 = por %p169, %p170
      %p172 = scmp.ne.s32.totalorder %s163, %s164
      %p173 = scmp.eq.s32.totalorder %s27, 0
      %p174 = por %p172, %p173
      %p175 = scmp.ne.s32.totalorder %s163, %s164
      %p176 = scmp.eq.s32.totalorder %s28, 1
      %p177 = por %p175, %p176
      %p179 = scmp.ne.s32.totalorder %s164, %s178
      %p180 = scmp.eq.s32.totalorder %s28, 0
      %p181 = por %p179, %p180
      %s183 = sadd.s32 %s182, 1
      %p186 = scmp.eq.s32.totalorder %s22, 1
      %p187 = scmp.ne.s32.totalorder %s182, %s184
      %p188 = scmp.eq.s32.totalorder %s22, 0
      %p189 = por %p187, %p188
      %p190 = scmp.ne.s32.totalorder %s182, %s184
      %p191 = scmp.eq.s32.totalorder %s27, 1
      %p192 = por %p190, %p191
      %p193 = scmp.ne.s32.totalorder %s184, %s185
      %p194 = scmp.eq.s32.totalorder %s27, 0
      %p195 = por %p193, %p194
      %p196 = scmp.ne.s32.totalorder %s184, %s185
      %p197 = scmp.eq.s32.totalorder %s28, 1
      %p198 = por %p196, %p197
      %p200 = scmp.ne.s32.totalorder %s185, %s199
      %p201 = scmp.eq.s32.totalorder %s28, 0
      %p202 = por %p200, %p201
      %s203 = ssub.s32 %s22, %s29
      %p204 = scmp.eq.s32.totalorder %s203, 0
      %s206 = sadd.s32 %s205, 1
      %s207 = scalar_select %p204, %s205, %s206
      %p210 = pneg %p204
      %p211 = scmp.eq.s32.totalorder %s22, 1
      %p212 = por %p210, %p211
      %p213 = scmp.ne.s32.totalorder %s205, %s208
      %p214 = scmp.eq.s32.totalorder %s22, 0
      %p215 = por %p213, %p214
      %p216 = scmp.ne.s32.totalorder %s205, %s208
      %p217 = scmp.eq.s32.totalorder %s27, 1
      %p218 = por %p216, %p217
      %p219 = scmp.ne.s32.totalorder %s208, %s209
      %p220 = scmp.eq.s32.totalorder %s27, 0
      %p221 = por %p219, %p220
      %p222 = scmp.ne.s32.totalorder %s208, %s209
      %p223 = scmp.eq.s32.totalorder %s28, 1
      %p224 = por %p222, %p223
      %p226 = scmp.ne.s32.totalorder %s209, %s225
      %p227 = scmp.eq.s32.totalorder %s28, 0
      %p228 = por %p226, %p227
      %p229 = scmp.le.s32.totalorder 1, %s22
      %p230 = scmp.lt.s32.totalorder %s22, 3
      %p231 = pnand %p229, %p230
      %p232 = pneg %p231
      // Predicated region
      $region9: #{tpu_custom_call.1} parent=5 // pred_check
        _
      $region10: #{tpu_custom_call.1} parent=5 // pred_check_branch
        %234 = sbr.rel (%p231) target = $region12
      $region11: #{tpu_custom_call.1} parent=5 // pred_region
        %s235 = ssub.s32 %s22, 1
        // Predicated region
        $region13: #{tpu_custom_call.1} parent=11 // pred_check
          %p236 = pneg %p69
        $region14: #{tpu_custom_call.1} parent=11 // pred_check_branch
          %238 = sbr.rel (%p236) target = $region16
        $region15: #{tpu_custom_call.1} parent=11 // pred_region
          %s240 = ssub.s32 1024, 1024
          %241 = vsyncadd [#allocation6], %s240
          %s242 = sshll.u32 [#allocation5], 4
          %s243 = int_to_ptr.vmem [resolvable:$true] %s242
          %248 = dma.hbm_to_vmem [thread:$0]  %s1, 1024, %s243, [#allocation6], 64, 64, 4
        $region16: #{tpu_custom_call.1} parent=11 // pred_fallthru
          _
        // Predicated region
        $region17: #{tpu_custom_call.1} parent=11 // pred_check
          %p249 = pneg %p90
        $region18: #{tpu_custom_call.1} parent=11 // pred_check_branch
          %251 = sbr.rel (%p249) target = $region20
        $region19: #{tpu_custom_call.1} parent=11 // pred_region
          %s253 = ssub.s32 9216, 9216
          %254 = vsyncadd [#allocation6], %s253
          %s255 = sshll.u32 [#allocation7], 4
          %s256 = int_to_ptr.vmem [resolvable:$true] %s255
          %261 = dma.hbm_to_vmem [thread:$0]  %s2, 9216, %s256, [#allocation6], 64, 64, 4
        $region20: #{tpu_custom_call.1} parent=11 // pred_fallthru
          _
        // Predicated region
        $region21: #{tpu_custom_call.1} parent=11 // pred_check
          %p262 = pneg %p111
        $region22: #{tpu_custom_call.1} parent=11 // pred_check_branch
          %264 = sbr.rel (%p262) target = $region24
        $region23: #{tpu_custom_call.1} parent=11 // pred_region
          %s266 = ssub.s32 1024, 1024
          %267 = vsyncadd [#allocation9], %s266
          %s268 = sshll.u32 [#allocation8], 4
          %s269 = int_to_ptr.vmem [resolvable:$true] %s268
          %274 = dma.hbm_to_vmem [thread:$0]  %s3, 1024, %s269, [#allocation9], 64, 64, 4
        $region24: #{tpu_custom_call.1} parent=11 // pred_fallthru
          _
        // Predicated region
        $region25: #{tpu_custom_call.1} parent=11 // pred_check
          %p275 = pneg %p132
        $region26: #{tpu_custom_call.1} parent=11 // pred_check_branch
          %277 = sbr.rel (%p275) target = $region28
        $region27: #{tpu_custom_call.1} parent=11 // pred_region
          %s279 = ssub.s32 1024, 1024
          %280 = vsyncadd [#allocation9], %s279
          %s281 = sshll.u32 [#allocation10], 4
          %s282 = int_to_ptr.vmem [resolvable:$true] %s281
          %287 = dma.hbm_to_vmem [thread:$0]  %s4, 1024, %s282, [#allocation9], 64, 64, 4
        $region28: #{tpu_custom_call.1} parent=11 // pred_fallthru
          _
        // Predicated region
        $region29: #{tpu_custom_call.1} parent=11 // pred_check
          %p288 = pneg %p153
        $region30: #{tpu_custom_call.1} parent=11 // pred_check_branch
          %290 = sbr.rel (%p288) target = $region32
        $region31: #{tpu_custom_call.1} parent=11 // pred_region
          _
        $region32: #{tpu_custom_call.1} parent=11 // pred_fallthru
          _
        // Predicated region
        $region33: #{tpu_custom_call.1} parent=11 // pred_check
          %p291 = pneg %p174
        $region34: #{tpu_custom_call.1} parent=11 // pred_check_branch
          %293 = sbr.rel (%p291) target = $region36
        $region35: #{tpu_custom_call.1} parent=11 // pred_region
          _
        $region36: #{tpu_custom_call.1} parent=11 // pred_fallthru
          _
        // Predicated region
        $region37: #{tpu_custom_call.1} parent=11 // pred_check
          %p294 = pneg %p195
        $region38: #{tpu_custom_call.1} parent=11 // pred_check_branch
          %296 = sbr.rel (%p294) target = $region40
        $region39: #{tpu_custom_call.1} parent=11 // pred_region
          _
        $region40: #{tpu_custom_call.1} parent=11 // pred_fallthru
          _
      $region12: #{tpu_custom_call.1} parent=5 // pred_fallthru
        _
      %p297 = scmp.lt.s32.totalorder %s22, 2
      // Predicated region
      $region41: #{tpu_custom_call.1} parent=5 // pred_check
        %p298 = pneg %p297
      $region42: #{tpu_custom_call.1} parent=5 // pred_check_branch
        %300 = sbr.rel (%p298) target = $region44
      $region43: #{tpu_custom_call.1} parent=5 // pred_region
        // Predicated region
        $region45: #{tpu_custom_call.1} parent=43 // pred_check
          %p301 = pneg %p42
        $region46: #{tpu_custom_call.1} parent=43 // pred_check_branch
          %303 = sbr.rel (%p301) target = $region48
        $region47: #{tpu_custom_call.1} parent=43 // pred_region
          %s304 = sand.u32 %s32, 1
          %s305 = scalar_lea.sflag [#allocation3], %s304
          %s306 = sand.u32 %s32, 1
          %s307 = smul.addr %s306, 128
          %s308 = scalar_lea.vmem [#allocation2], %s307
          %s310 = ssub.s32 2048, 2048
          %311 = vsyncadd %s305, %s310
          %s312 = smul.addr %s22, 32
          %s313 = smul.addr %s312, 64
          %s314 = scalar_lea.hbm %s0, %s313
          %s315 = sshll.u32 %s308, 4
          %s316 = int_to_ptr.vmem [resolvable:$true] %s315
          %321 = dma.hbm_to_vmem [thread:$0]  %s314, 2048, %s316, %s305, 64, 64, 4
        $region48: #{tpu_custom_call.1} parent=43 // pred_fallthru
          _
      $region44: #{tpu_custom_call.1} parent=5 // pred_fallthru
        _
      %p322 = scmp.le.s32.totalorder 1, %s22
      %p323 = scmp.lt.s32.totalorder %s22, 3
      %p324 = pnand %p322, %p323
      %p325 = pneg %p324
      // Predicated region
      $region49: #{tpu_custom_call.1} parent=5 // pred_check
        _
      $region50: #{tpu_custom_call.1} parent=5 // pred_check_branch
        %327 = sbr.rel (%p324) target = $region52
      $region51: #{tpu_custom_call.1} parent=5 // pred_region
        %s328 = ssub.s32 %s22, 1
        %s329 = sand.u32 %s35, 1
        %s330 = scalar_lea.sflag [#allocation3], %s329
        %s331 = sand.u32 %s35, 1
        %s332 = smul.addr %s331, 128
        %s333 = scalar_lea.vmem [#allocation2], %s332
        // Predicated region
        $region53: #{tpu_custom_call.1} parent=51 // pred_check
          %p334 = pneg %p48
        $region54: #{tpu_custom_call.1} parent=51 // pred_check_branch
          %336 = sbr.rel (%p334) target = $region56
        $region55: #{tpu_custom_call.1} parent=51 // pred_region
          %337 = dma.done %s330, 2048
        $region56: #{tpu_custom_call.1} parent=51 // pred_fallthru
          _
        // Predicated region
        $region57: #{tpu_custom_call.1} parent=51 // pred_check
          %p338 = pneg %p69
        $region58: #{tpu_custom_call.1} parent=51 // pred_check_branch
          %340 = sbr.rel (%p338) target = $region60
        $region59: #{tpu_custom_call.1} parent=51 // pred_region
          %341 = dma.done [#allocation6], 1024
        $region60: #{tpu_custom_call.1} parent=51 // pred_fallthru
          _
        // Predicated region
        $region61: #{tpu_custom_call.1} parent=51 // pred_check
          %p342 = pneg %p90
        $region62: #{tpu_custom_call.1} parent=51 // pred_check_branch
          %344 = sbr.rel (%p342) target = $region64
        $region63: #{tpu_custom_call.1} parent=51 // pred_region
          %345 = dma.done [#allocation6], 9216
        $region64: #{tpu_custom_call.1} parent=51 // pred_fallthru
          _
        // Predicated region
        $region65: #{tpu_custom_call.1} parent=51 // pred_check
          %p346 = pneg %p111
        $region66: #{tpu_custom_call.1} parent=51 // pred_check_branch
          %348 = sbr.rel (%p346) target = $region68
        $region67: #{tpu_custom_call.1} parent=51 // pred_region
          %349 = dma.done [#allocation9], 1024
        $region68: #{tpu_custom_call.1} parent=51 // pred_fallthru
          _
        // Predicated region
        $region69: #{tpu_custom_call.1} parent=51 // pred_check
          %p350 = pneg %p132
        $region70: #{tpu_custom_call.1} parent=51 // pred_check_branch
          %352 = sbr.rel (%p350) target = $region72
        $region71: #{tpu_custom_call.1} parent=51 // pred_region
          %353 = dma.done [#allocation9], 1024
        $region72: #{tpu_custom_call.1} parent=51 // pred_fallthru
          _
        %s354 = sand.u32 %s35, 1
        %s355 = scalar_lea.sflag [#allocation3], %s354
        %s356 = sand.u32 %s35, 1
        %s357 = smul.addr %s356, 128
        %s358 = scalar_lea.vmem [#allocation2], %s357
        %p359 = pneg %p48
        %p360 = pneg %p45
        %p361 = pneg %p69
        %p362 = pneg %p66
        %p363 = pneg %p90
        %p364 = pneg %p87
        %p365 = pneg %p111
        %p366 = pneg %p108
        %p367 = pneg %p132
        %p368 = pneg %p129
        %p369 = pneg %p153
        %p370 = pneg %p150
        %p371 = pneg %p174
        %p372 = pneg %p171
        %p373 = pneg %p195
        %p374 = pneg %p192
        %p375 = pneg %p221
        %p376 = pneg %p218
        %s377 = sand.u32 %s208, 1
        %s378 = scalar_lea.sflag [#allocation4], %s377
        %s379 = sand.u32 %s208, 1
        %s380 = smul.addr %s379, 128
        %s381 = scalar_lea.vmem [#allocation11], %s380
        %v383 = vld [vmem:[%s333] sm:$0xf]
        %v384 = vld [vmem:[%s333 + $0x4] sm:$0xf]
        %v385 = vld [vmem:[%s333 + $0x8] sm:$0xf]
        %v386 = vld [vmem:[%s333 + $0xc] sm:$0xf]
        %v387 = vld [vmem:[%s333 + $0x10] sm:$0xf]
        %v388 = vld [vmem:[%s333 + $0x14] sm:$0xf]
        %v389 = vld [vmem:[%s333 + $0x18] sm:$0xf]
        %v390 = vld [vmem:[%s333 + $0x1c] sm:$0xf]
        %v391 = vld [vmem:[%s333 + $0x20] sm:$0xf]
        %v392 = vld [vmem:[%s333 + $0x24] sm:$0xf]
        %v393 = vld [vmem:[%s333 + $0x28] sm:$0xf]
        %v394 = vld [vmem:[%s333 + $0x2c] sm:$0xf]
        %v395 = vld [vmem:[%s333 + $0x30] sm:$0xf]
        %v396 = vld [vmem:[%s333 + $0x34] sm:$0xf]
        %v397 = vld [vmem:[%s333 + $0x38] sm:$0xf]
        %v398 = vld [vmem:[%s333 + $0x3c] sm:$0xf]
        %v399 = vld [vmem:[%s333 + $0x40] sm:$0xf]
        %v400 = vld [vmem:[%s333 + $0x44] sm:$0xf]
        %v401 = vld [vmem:[%s333 + $0x48] sm:$0xf]
        %v402 = vld [vmem:[%s333 + $0x4c] sm:$0xf]
        %v403 = vld [vmem:[%s333 + $0x50] sm:$0xf]
        %v404 = vld [vmem:[%s333 + $0x54] sm:$0xf]
        %v405 = vld [vmem:[%s333 + $0x58] sm:$0xf]
        %v406 = vld [vmem:[%s333 + $0x5c] sm:$0xf]
        %v407 = vld [vmem:[%s333 + $0x60] sm:$0xf]
        %v408 = vld [vmem:[%s333 + $0x64] sm:$0xf]
        %v409 = vld [vmem:[%s333 + $0x68] sm:$0xf]
        %v410 = vld [vmem:[%s333 + $0x6c] sm:$0xf]
        %v411 = vld [vmem:[%s333 + $0x70] sm:$0xf]
        %v412 = vld [vmem:[%s333 + $0x74] sm:$0xf]
        %v413 = vld [vmem:[%s333 + $0x78] sm:$0xf]
        %v414 = vld [vmem:[%s333 + $0x7c] sm:$0xf]
        %v415 = vld [vmem:[#allocation5] sm:$0xf]
        %v416 = vld [vmem:[#allocation5 + $0x4] sm:$0xf]
        %v417 = vld [vmem:[#allocation5 + $0x8] sm:$0xf]
        %v418 = vld [vmem:[#allocation5 + $0xc] sm:$0xf]
        %v419 = vld [vmem:[#allocation5 + $0x10] sm:$0xf]
        %v420 = vld [vmem:[#allocation5 + $0x14] sm:$0xf]
        %v421 = vld [vmem:[#allocation5 + $0x18] sm:$0xf]
        %v422 = vld [vmem:[#allocation5 + $0x1c] sm:$0xf]
        %v423 = vld [vmem:[#allocation5 + $0x20] sm:$0xf]
        %v424 = vld [vmem:[#allocation5 + $0x24] sm:$0xf]
        %v425 = vld [vmem:[#allocation5 + $0x28] sm:$0xf]
        %v426 = vld [vmem:[#allocation5 + $0x2c] sm:$0xf]
        %v427 = vld [vmem:[#allocation5 + $0x30] sm:$0xf]
        %v428 = vld [vmem:[#allocation5 + $0x34] sm:$0xf]
        %v429 = vld [vmem:[#allocation5 + $0x38] sm:$0xf]
        %v430 = vld [vmem:[#allocation5 + $0x3c] sm:$0xf]
        %v431 = vld [vmem:[%s5] sm:$0x1]
        %v433 = vlaneseq
        %v434 = vshrl.u32 %v433, 7
        %v435 = vsub.s32 0, %v434
        %v436 = vrot.slane %v431, %v435
        %v470 = vunpack.c.l.b16 %v383
        %v471 = vunpack.c.l.b16 %v384
        %v472 = vunpack.c.l.b16 %v385
        %v473 = vunpack.c.l.b16 %v386
        %v474 = vunpack.c.l.b16 %v387
        %v475 = vunpack.c.l.b16 %v388
        %v476 = vunpack.c.l.b16 %v389
        %v477 = vunpack.c.l.b16 %v390
        %v478 = vunpack.c.l.b16 %v391
        %v479 = vunpack.c.l.b16 %v392
        %v480 = vunpack.c.l.b16 %v393
        %v481 = vunpack.c.l.b16 %v394
        %v482 = vunpack.c.l.b16 %v395
        %v483 = vunpack.c.l.b16 %v396
        %v484 = vunpack.c.l.b16 %v397
        %v485 = vunpack.c.l.b16 %v398
        %v486 = vunpack.c.l.b16 %v399
        %v487 = vunpack.c.l.b16 %v400
        %v488 = vunpack.c.l.b16 %v401
        %v489 = vunpack.c.l.b16 %v402
        %v490 = vunpack.c.l.b16 %v403
        %v491 = vunpack.c.l.b16 %v404
        %v492 = vunpack.c.l.b16 %v405
        %v493 = vunpack.c.l.b16 %v406
        %v494 = vunpack.c.l.b16 %v407
        %v495 = vunpack.c.l.b16 %v408
        %v496 = vunpack.c.l.b16 %v409
        %v497 = vunpack.c.l.b16 %v410
        %v498 = vunpack.c.l.b16 %v411
        %v499 = vunpack.c.l.b16 %v412
        %v500 = vunpack.c.l.b16 %v413
        %v501 = vunpack.c.l.b16 %v414
        %v502 = vpack.c.b16 %v471, %v470
        %v503 = vpack.c.b16 %v473, %v472
        %v504 = vpack.c.b16 %v475, %v474
        %v505 = vpack.c.b16 %v477, %v476
        %v506 = vpack.c.b16 %v479, %v478
        %v507 = vpack.c.b16 %v481, %v480
        %v508 = vpack.c.b16 %v483, %v482
        %v509 = vpack.c.b16 %v485, %v484
        %v510 = vpack.c.b16 %v487, %v486
        %v511 = vpack.c.b16 %v489, %v488
        %v512 = vpack.c.b16 %v491, %v490
        %v513 = vpack.c.b16 %v493, %v492
        %v514 = vpack.c.b16 %v495, %v494
        %v515 = vpack.c.b16 %v497, %v496
        %v516 = vpack.c.b16 %v499, %v498
        %v517 = vpack.c.b16 %v501, %v500
        %v550 = vunpack.c.l.b16 %v415
        %v551 = vunpack.c.l.b16 %v416
        %v552 = vunpack.c.l.b16 %v417
        %v553 = vunpack.c.l.b16 %v418
        %v554 = vunpack.c.l.b16 %v419
        %v555 = vunpack.c.l.b16 %v420
        %v556 = vunpack.c.l.b16 %v421
        %v557 = vunpack.c.l.b16 %v422
        %v558 = vunpack.c.l.b16 %v423
        %v559 = vunpack.c.l.b16 %v424
        %v560 = vunpack.c.l.b16 %v425
        %v561 = vunpack.c.l.b16 %v426
        %v562 = vunpack.c.l.b16 %v427
        %v563 = vunpack.c.l.b16 %v428
        %v564 = vunpack.c.l.b16 %v429
        %v565 = vunpack.c.l.b16 %v430
        %v566 = vpack.c.b16 %v551, %v550
        %v567 = vpack.c.b16 %v553, %v552
        %v568 = vpack.c.b16 %v555, %v554
        %v569 = vpack.c.b16 %v557, %v556
        %v570 = vpack.c.b16 %v559, %v558
        %v571 = vpack.c.b16 %v561, %v560
        %v572 = vpack.c.b16 %v563, %v562
        %v573 = vpack.c.b16 %v565, %v564
        %582 = vmatprep.subr.bf16.mxu0 0
        %583 = vmatpush1.bf16.msra.mxu0 %v566
        %584 = vmatprep.subr.bf16.mxu0 0
        %585 = vmatpush1.bf16.msra.mxu0 %v567
        %586 = vmatprep.subr.bf16.mxu0 0
        %587 = vmatpush1.bf16.msra.mxu0 %v568
        %588 = vmatprep.subr.bf16.mxu0 0
        %589 = vmatpush1.bf16.msra.mxu0 %v569
        %590 = vmatprep.subr.bf16.mxu0 0
        %591 = vmatpush1.bf16.msra.mxu0 %v570
        %592 = vmatprep.subr.bf16.mxu0 0
        %593 = vmatpush1.bf16.msra.mxu0 %v571
        %594 = vmatprep.subr.bf16.mxu0 0
        %595 = vmatpush1.bf16.msra.mxu0 %v572
        %596 = vmatprep.subr.bf16.mxu0 0
        %597 = vmatpush1.bf16.msra.mxu0 %v573
        %598 = vmatprep.subr.bf16.mxu0 0
        %599 = vmatpush1.bf16.msra.mxu0 0
        %600 = vmatprep.subr.bf16.mxu0 0
        %601 = vmatpush1.bf16.msra.mxu0 0
        %602 = vmatprep.subr.bf16.mxu0 0
        %603 = vmatpush1.bf16.msra.mxu0 0
        %604 = vmatprep.subr.bf16.mxu0 0
        %605 = vmatpush1.bf16.msra.mxu0 0
        %606 = vmatprep.subr.bf16.mxu0 0
        %607 = vmatpush1.bf16.msra.mxu0 0
        %608 = vmatprep.subr.bf16.mxu0 0
        %609 = vmatpush1.bf16.msra.mxu0 0
        %610 = vmatprep.subr.bf16.mxu0 0
        %611 = vmatpush1.bf16.msra.mxu0 0
        %612 = vmatprep.subr.bf16.mxu0 0
        %613 = vmatpush1.bf16.msra.mxu0 0
        %614 = vmatprep.mubr.bf16.mxu0 0
        %615 = vmatmul.mubr.bf16.gmra.mrb[0].mxu0 %v502
        %v616 = vpop.f32.mrb[0].mxu0
        %v617 = vadd.f32 %v436, %v616
        %v618 = vpop.f32.mrb[0].mxu0
        %v619 = vpop.f32.mrb[0].mxu0
        %v620 = vadd.f32 %v436, %v619
        %v621 = vpop.f32.mrb[0].mxu0
        %622 = vmatprep.mubr.bf16.mxu0 0
        %623 = vmatmul.mubr.bf16.gmra.mrb[0].mxu0 %v503
        %v624 = vpop.f32.mrb[0].mxu0
        %v625 = vadd.f32 %v436, %v624
        %v626 = vpop.f32.mrb[0].mxu0
        %v627 = vpop.f32.mrb[0].mxu0
        %v628 = vadd.f32 %v436, %v627
        %v629 = vpop.f32.mrb[0].mxu0
        %630 = vmatprep.mubr.bf16.mxu0 0
        %631 = vmatmul.mubr.bf16.gmra.mrb[0].mxu0 %v504
        %v632 = vpop.f32.mrb[0].mxu0
        %v633 = vadd.f32 %v436, %v632
        %v634 = vpop.f32.mrb[0].mxu0
        %v635 = vpop.f32.mrb[0].mxu0
        %v636 = vadd.f32 %v436, %v635
        %v637 = vpop.f32.mrb[0].mxu0
        %638 = vmatprep.mubr.bf16.mxu0 0
        %639 = vmatmul.mubr.bf16.gmra.mrb[0].mxu0 %v505
        %v640 = vpop.f32.mrb[0].mxu0
        %v641 = vadd.f32 %v436, %v640
        %v642 = vpop.f32.mrb[0].mxu0
        %v643 = vpop.f32.mrb[0].mxu0
        %v644 = vadd.f32 %v436, %v643
        %v645 = vpop.f32.mrb[0].mxu0
        %646 = vmatprep.mubr.bf16.mxu0 0
        %647 = vmatmul.mubr.bf16.gmra.mrb[0].mxu0 %v506
        %v648 = vpop.f32.mrb[0].mxu0
        %v649 = vadd.f32 %v436, %v648
        %v650 = vpop.f32.mrb[0].mxu0
        %v651 = vpop.f32.mrb[0].mxu0
        %v652 = vadd.f32 %v436, %v651
        %v653 = vpop.f32.mrb[0].mxu0
        %654 = vmatprep.mubr.bf16.mxu0 0
        %655 = vmatmul.mubr.bf16.gmra.mrb[0].mxu0 %v507
        %v656 = vpop.f32.mrb[0].mxu0
        %v657 = vadd.f32 %v436, %v656
        %v658 = vpop.f32.mrb[0].mxu0
        %v659 = vpop.f32.mrb[0].mxu0
        %v660 = vadd.f32 %v436, %v659
        %v661 = vpop.f32.mrb[0].mxu0
        %662 = vmatprep.mubr.bf16.mxu0 0
        %663 = vmatmul.mubr.bf16.gmra.mrb[0].mxu0 %v508
        %v664 = vpop.f32.mrb[0].mxu0
        %v665 = vadd.f32 %v436, %v664
        %v666 = vpop.f32.mrb[0].mxu0
        %v667 = vpop.f32.mrb[0].mxu0
        %v668 = vadd.f32 %v436, %v667
        %v669 = vpop.f32.mrb[0].mxu0
        %670 = vmatprep.mubr.bf16.mxu0 0
        %671 = vmatmul.mubr.bf16.gmra.mrb[0].mxu0 %v509
        %v672 = vpop.f32.mrb[0].mxu0
        %v673 = vadd.f32 %v436, %v672
        %v674 = vpop.f32.mrb[0].mxu0
        %v675 = vpop.f32.mrb[0].mxu0
        %v676 = vadd.f32 %v436, %v675
        %v677 = vpop.f32.mrb[0].mxu0
        %678 = vmatprep.mubr.bf16.mxu0 0
        %679 = vmatmul.mubr.bf16.gmra.mrb[0].mxu0 %v510
        %v680 = vpop.f32.mrb[0].mxu0
        %v681 = vadd.f32 %v436, %v680
        %v682 = vpop.f32.mrb[0].mxu0
        %v683 = vpop.f32.mrb[0].mxu0
        %v684 = vadd.f32 %v436, %v683
        %v685 = vpop.f32.mrb[0].mxu0
        %686 = vmatprep.mubr.bf16.mxu0 0
        %687 = vmatmul.mubr.bf16.gmra.mrb[0].mxu0 %v511
        %v688 = vpop.f32.mrb[0].mxu0
        %v689 = vadd.f32 %v436, %v688
        %v690 = vpop.f32.mrb[0].mxu0
        %v691 = vpop.f32.mrb[0].mxu0
        %v692 = vadd.f32 %v436, %v691
        %v693 = vpop.f32.mrb[0].mxu0
        %694 = vmatprep.mubr.bf16.mxu0 0
        %695 = vmatmul.mubr.bf16.gmra.mrb[0].mxu0 %v512
        %v696 = vpop.f32.mrb[0].mxu0
        %v697 = vadd.f32 %v436, %v696
        %v698 = vpop.f32.mrb[0].mxu0
        %v699 = vpop.f32.mrb[0].mxu0
        %v700 = vadd.f32 %v436, %v699
        %v701 = vpop.f32.mrb[0].mxu0
        %702 = vmatprep.mubr.bf16.mxu0 0
        %703 = vmatmul.mubr.bf16.gmra.mrb[0].mxu0 %v513
        %v704 = vpop.f32.mrb[0].mxu0
        %v705 = vadd.f32 %v436, %v704
        %v706 = vpop.f32.mrb[0].mxu0
        %v707 = vpop.f32.mrb[0].mxu0
        %v708 = vadd.f32 %v436, %v707
        %v709 = vpop.f32.mrb[0].mxu0
        %710 = vmatprep.mubr.bf16.mxu0 0
        %711 = vmatmul.mubr.bf16.gmra.mrb[0].mxu0 %v514
        %v712 = vpop.f32.mrb[0].mxu0
        %v713 = vadd.f32 %v436, %v712
        %v714 = vpop.f32.mrb[0].mxu0
        %v715 = vpop.f32.mrb[0].mxu0
        %v716 = vadd.f32 %v436, %v715
        %v717 = vpop.f32.mrb[0].mxu0
        %718 = vmatprep.mubr.bf16.mxu0 0
        %719 = vmatmul.mubr.bf16.gmra.mrb[0].mxu0 %v515
        %v720 = vpop.f32.mrb[0].mxu0
        %v721 = vadd.f32 %v436, %v720
        %v722 = vpop.f32.mrb[0].mxu0
        %v723 = vpop.f32.mrb[0].mxu0
        %v724 = vadd.f32 %v436, %v723
        %v725 = vpop.f32.mrb[0].mxu0
        %726 = vmatprep.mubr.bf16.mxu0 0
        %727 = vmatmul.mubr.bf16.gmra.mrb[0].mxu0 %v516
        %v728 = vpop.f32.mrb[0].mxu0
        %v729 = vadd.f32 %v436, %v728
        %v730 = vpop.f32.mrb[0].mxu0
        %v731 = vpop.f32.mrb[0].mxu0
        %v732 = vadd.f32 %v436, %v731
        %v733 = vpop.f32.mrb[0].mxu0
        %734 = vmatprep.mubr.bf16.mxu0 0
        %735 = vmatmul.mubr.bf16.gmra.mrb[0].mxu0 %v517
        %v736 = vpop.f32.mrb[0].mxu0
        %v737 = vadd.f32 %v436, %v736
        %v738 = vpop.f32.mrb[0].mxu0
        %v739 = vpop.f32.mrb[0].mxu0
        %v740 = vadd.f32 %v436, %v739
        %v741 = vpop.f32.mrb[0].mxu0
        %742 = vdwg.mxu0
        %v743 = vmax.f32 %v617, 0.0
        %v744 = vmax.f32 %v620, 0.0
        %v745 = vmax.f32 %v625, 0.0
        %v746 = vmax.f32 %v628, 0.0
        %v747 = vmax.f32 %v633, 0.0
        %v748 = vmax.f32 %v636, 0.0
        %v749 = vmax.f32 %v641, 0.0
        %v750 = vmax.f32 %v644, 0.0
        %v751 = vmax.f32 %v649, 0.0
        %v752 = vmax.f32 %v652, 0.0
        %v753 = vmax.f32 %v657, 0.0
        %v754 = vmax.f32 %v660, 0.0
        %v755 = vmax.f32 %v665, 0.0
        %v756 = vmax.f32 %v668, 0.0
        %v757 = vmax.f32 %v673, 0.0
        %v758 = vmax.f32 %v676, 0.0
        %v759 = vmax.f32 %v681, 0.0
        %v760 = vmax.f32 %v684, 0.0
        %v761 = vmax.f32 %v689, 0.0
        %v762 = vmax.f32 %v692, 0.0
        %v763 = vmax.f32 %v697, 0.0
        %v764 = vmax.f32 %v700, 0.0
        %v765 = vmax.f32 %v705, 0.0
        %v766 = vmax.f32 %v708, 0.0
        %v767 = vmax.f32 %v713, 0.0
        %v768 = vmax.f32 %v716, 0.0
        %v769 = vmax.f32 %v721, 0.0
        %v770 = vmax.f32 %v724, 0.0
        %v771 = vmax.f32 %v729, 0.0
        %v772 = vmax.f32 %v732, 0.0
        %v773 = vmax.f32 %v737, 0.0
        %v774 = vmax.f32 %v740, 0.0
        %v775 = vpack.c.bf16 %v744, %v743
        %v776 = vpack.c.bf16 %v746, %v745
        %v777 = vpack.c.bf16 %v748, %v747
        %v778 = vpack.c.bf16 %v750, %v749
        %v779 = vpack.c.bf16 %v752, %v751
        %v780 = vpack.c.bf16 %v754, %v753
        %v781 = vpack.c.bf16 %v756, %v755
        %v782 = vpack.c.bf16 %v758, %v757
        %v783 = vpack.c.bf16 %v760, %v759
        %v784 = vpack.c.bf16 %v762, %v761
        %v785 = vpack.c.bf16 %v764, %v763
        %v786 = vpack.c.bf16 %v766, %v765
        %v787 = vpack.c.bf16 %v768, %v767
        %v788 = vpack.c.bf16 %v770, %v769
        %v789 = vpack.c.bf16 %v772, %v771
        %v790 = vpack.c.bf16 %v774, %v773
        %v792 = vshrl.u32 0, 16
        %v794 = vrot.slane %v792, 7
        %v795 = vshll.u32 0, 16
        %v797 = vor.u32 %v794, %v795
        %v799 = vshrl.u32 %v775, 16
        %v801 = vrot.slane %v799, 7
        %v802 = vshll.u32 %v775, 16
        %v804 = vor.u32 %v801, %v802
        %v806 = vshrl.u32 %v776, 16
        %v808 = vrot.slane %v806, 7
        %v809 = vshll.u32 %v776, 16
        %v811 = vor.u32 %v808, %v809
        %v813 = vshrl.u32 %v777, 16
        %v815 = vrot.slane %v813, 7
        %v816 = vshll.u32 %v777, 16
        %v818 = vor.u32 %v815, %v816
        %v820 = vshrl.u32 %v778, 16
        %v822 = vrot.slane %v820, 7
        %v823 = vshll.u32 %v778, 16
        %v825 = vor.u32 %v822, %v823
        %v827 = vshrl.u32 %v779, 16
        %v829 = vrot.slane %v827, 7
        %v830 = vshll.u32 %v779, 16
        %v832 = vor.u32 %v829, %v830
        %v834 = vshrl.u32 %v780, 16
        %v836 = vrot.slane %v834, 7
        %v837 = vshll.u32 %v780, 16
        %v839 = vor.u32 %v836, %v837
        %v841 = vshrl.u32 %v781, 16
        %v843 = vrot.slane %v841, 7
        %v844 = vshll.u32 %v781, 16
        %v846 = vor.u32 %v843, %v844
        %v848 = vshrl.u32 %v782, 16
        %v850 = vrot.slane %v848, 7
        %v851 = vshll.u32 %v782, 16
        %v853 = vor.u32 %v850, %v851
        %v855 = vshrl.u32 %v783, 16
        %v857 = vrot.slane %v855, 7
        %v858 = vshll.u32 %v783, 16
        %v860 = vor.u32 %v857, %v858
        %v862 = vshrl.u32 %v784, 16
        %v864 = vrot.slane %v862, 7
        %v865 = vshll.u32 %v784, 16
        %v867 = vor.u32 %v864, %v865
        %v869 = vshrl.u32 %v785, 16
        %v871 = vrot.slane %v869, 7
        %v872 = vshll.u32 %v785, 16
        %v874 = vor.u32 %v871, %v872
        %v876 = vshrl.u32 %v786, 16
        %v878 = vrot.slane %v876, 7
        %v879 = vshll.u32 %v786, 16
        %v881 = vor.u32 %v878, %v879
        %v883 = vshrl.u32 %v787, 16
        %v885 = vrot.slane %v883, 7
        %v886 = vshll.u32 %v787, 16
        %v888 = vor.u32 %v885, %v886
        %v890 = vshrl.u32 %v788, 16
        %v892 = vrot.slane %v890, 7
        %v893 = vshll.u32 %v788, 16
        %v895 = vor.u32 %v892, %v893
        %v897 = vshrl.u32 %v789, 16
        %v899 = vrot.slane %v897, 7
        %v900 = vshll.u32 %v789, 16
        %v902 = vor.u32 %v899, %v900
        %v904 = vshrl.u32 %v790, 16
        %v906 = vrot.slane %v904, 7
        %v907 = vshll.u32 %v790, 16
        %v909 = vor.u32 %v906, %v907
        %vm927 = vcmask 1040384
        %vm928 = vsmask.f32 256
        %vm929 = vmand %vm927, %vm928
        %v930 = vsel %vm929, 0, %v797
        %v931 = vsel %vm929, 0, %v804
        %v932 = vsel %vm929, 0, %v811
        %v933 = vsel %vm929, 0, %v818
        %v934 = vsel %vm929, 0, %v825
        %v935 = vsel %vm929, 0, %v832
        %v936 = vsel %vm929, 0, %v839
        %v937 = vsel %vm929, 0, %v846
        %v938 = vsel %vm929, 0, %v853
        %v939 = vsel %vm929, 0, %v860
        %v940 = vsel %vm929, 0, %v867
        %v941 = vsel %vm929, 0, %v874
        %v942 = vsel %vm929, 0, %v881
        %v943 = vsel %vm929, 0, %v888
        %v944 = vsel %vm929, 0, %v895
        %v945 = vsel %vm929, 0, %v902
        %v946 = vsel %vm929, 0, %v909
        %v947 = vrot.slane %v795, 1
        %v948 = vor.u32 %v792, %v947
        %v949 = vrot.slane %v802, 1
        %v950 = vor.u32 %v799, %v949
        %v951 = vrot.slane %v809, 1
        %v952 = vor.u32 %v806, %v951
        %v953 = vrot.slane %v816, 1
        %v954 = vor.u32 %v813, %v953
        %v955 = vrot.slane %v823, 1
        %v956 = vor.u32 %v820, %v955
        %v957 = vrot.slane %v830, 1
        %v958 = vor.u32 %v827, %v957
        %v959 = vrot.slane %v837, 1
        %v960 = vor.u32 %v834, %v959
        %v961 = vrot.slane %v844, 1
        %v962 = vor.u32 %v841, %v961
        %v963 = vrot.slane %v851, 1
        %v964 = vor.u32 %v848, %v963
        %v965 = vrot.slane %v858, 1
        %v966 = vor.u32 %v855, %v965
        %v967 = vrot.slane %v865, 1
        %v968 = vor.u32 %v862, %v967
        %v969 = vrot.slane %v872, 1
        %v970 = vor.u32 %v869, %v969
        %v971 = vrot.slane %v879, 1
        %v972 = vor.u32 %v876, %v971
        %v973 = vrot.slane %v886, 1
        %v974 = vor.u32 %v883, %v973
        %v975 = vrot.slane %v893, 1
        %v976 = vor.u32 %v890, %v975
        %v977 = vrot.slane %v900, 1
        %v978 = vor.u32 %v897, %v977
        %v979 = vrot.slane %v907, 1
        %v980 = vor.u32 %v904, %v979
        %vm998 = vcmask 1047552
        %vm999 = vsmask.f32 7424
        %vm1000 = vmand %vm998, %vm999
        %v1001 = vsel %vm1000, %v948, 0
        %v1002 = vsel %vm1000, %v950, 0
        %v1003 = vsel %vm1000, %v952, 0
        %v1004 = vsel %vm1000, %v954, 0
        %v1005 = vsel %vm1000, %v956, 0
        %v1006 = vsel %vm1000, %v958, 0
        %v1007 = vsel %vm1000, %v960, 0
        %v1008 = vsel %vm1000, %v962, 0
        %v1009 = vsel %vm1000, %v964, 0
        %v1010 = vsel %vm1000, %v966, 0
        %v1011 = vsel %vm1000, %v968, 0
        %v1012 = vsel %vm1000, %v970, 0
        %v1013 = vsel %vm1000, %v972, 0
        %v1014 = vsel %vm1000, %v974, 0
        %v1015 = vsel %vm1000, %v976, 0
        %v1016 = vsel %vm1000, %v978, 0
        %v1017 = vsel %vm1000, %v980, 0
        %v1018 = vld [vmem:[#allocation7] sm:$0xf]
        %v1019 = vld [vmem:[#allocation7 + $0x4] sm:$0xf]
        %v1020 = vld [vmem:[#allocation7 + $0x8] sm:$0xf]
        %v1021 = vld [vmem:[#allocation7 + $0xc] sm:$0xf]
        %v1022 = vld [vmem:[#allocation7 + $0x10] sm:$0xf]
        %v1023 = vld [vmem:[#allocation7 + $0x14] sm:$0xf]
        %v1024 = vld [vmem:[#allocation7 + $0x18] sm:$0xf]
        %v1025 = vld [vmem:[#allocation7 + $0x1c] sm:$0xf]
        %v1026 = vld [vmem:[#allocation7 + $0x20] sm:$0xf]
        %v1027 = vld [vmem:[#allocation7 + $0x24] sm:$0xf]
        %v1028 = vld [vmem:[#allocation7 + $0x28] sm:$0xf]
        %v1029 = vld [vmem:[#allocation7 + $0x2c] sm:$0xf]
        %v1030 = vld [vmem:[#allocation7 + $0x30] sm:$0xf]
        %v1031 = vld [vmem:[#allocation7 + $0x34] sm:$0xf]
        %v1032 = vld [vmem:[#allocation7 + $0x38] sm:$0xf]
        %v1033 = vld [vmem:[#allocation7 + $0x3c] sm:$0xf]
        %v1034 = vld [vmem:[#allocation7 + $0x40] sm:$0xf]
        %v1035 = vld [vmem:[#allocation7 + $0x44] sm:$0xf]
        %v1036 = vld [vmem:[#allocation7 + $0x48] sm:$0xf]
        %v1037 = vld [vmem:[#allocation7 + $0x4c] sm:$0xf]
        %v1038 = vld [vmem:[#allocation7 + $0x50] sm:$0xf]
        %v1039 = vld [vmem:[#allocation7 + $0x54] sm:$0xf]
        %v1040 = vld [vmem:[#allocation7 + $0x58] sm:$0xf]
        %v1041 = vld [vmem:[#allocation7 + $0x5c] sm:$0xf]
        %v1042 = vld [vmem:[#allocation7 + $0x60] sm:$0xf]
        %v1043 = vld [vmem:[#allocation7 + $0x64] sm:$0xf]
        %v1044 = vld [vmem:[#allocation7 + $0x68] sm:$0xf]
        %v1045 = vld [vmem:[#allocation7 + $0x6c] sm:$0xf]
        %v1046 = vld [vmem:[#allocation7 + $0x70] sm:$0xf]
        %v1047 = vld [vmem:[#allocation7 + $0x74] sm:$0xf]
        %v1048 = vld [vmem:[#allocation7 + $0x78] sm:$0xf]
        %v1049 = vld [vmem:[#allocation7 + $0x7c] sm:$0xf]
        %v1050 = vld [vmem:[#allocation7 + $0x80] sm:$0xf]
        %v1051 = vld [vmem:[#allocation7 + $0x84] sm:$0xf]
        %v1052 = vld [vmem:[#allocation7 + $0x88] sm:$0xf]
        %v1053 = vld [vmem:[#allocation7 + $0x8c] sm:$0xf]
        %v1054 = vld [vmem:[#allocation7 + $0x90] sm:$0xf]
        %v1055 = vld [vmem:[#allocation7 + $0x94] sm:$0xf]
        %v1056 = vld [vmem:[#allocation7 + $0x98] sm:$0xf]
        %v1057 = vld [vmem:[#allocation7 + $0x9c] sm:$0xf]
        %v1058 = vld [vmem:[#allocation7 + $0xa0] sm:$0xf]
        %v1059 = vld [vmem:[#allocation7 + $0xa4] sm:$0xf]
        %v1060 = vld [vmem:[#allocation7 + $0xa8] sm:$0xf]
        %v1061 = vld [vmem:[#allocation7 + $0xac] sm:$0xf]
        %v1062 = vld [vmem:[#allocation7 + $0xb0] sm:$0xf]
        %v1063 = vld [vmem:[#allocation7 + $0xb4] sm:$0xf]
        %v1064 = vld [vmem:[#allocation7 + $0xb8] sm:$0xf]
        %v1065 = vld [vmem:[#allocation7 + $0xbc] sm:$0xf]
        %v1066 = vld [vmem:[#allocation7 + $0xc0] sm:$0xf]
        %v1067 = vld [vmem:[#allocation7 + $0xc4] sm:$0xf]
        %v1068 = vld [vmem:[#allocation7 + $0xc8] sm:$0xf]
        %v1069 = vld [vmem:[#allocation7 + $0xcc] sm:$0xf]
        %v1070 = vld [vmem:[#allocation7 + $0xd0] sm:$0xf]
        %v1071 = vld [vmem:[#allocation7 + $0xd4] sm:$0xf]
        %v1072 = vld [vmem:[#allocation7 + $0xd8] sm:$0xf]
        %v1073 = vld [vmem:[#allocation7 + $0xdc] sm:$0xf]
        %v1074 = vld [vmem:[#allocation7 + $0xe0] sm:$0xf]
        %v1075 = vld [vmem:[#allocation7 + $0xe4] sm:$0xf]
        %v1076 = vld [vmem:[#allocation7 + $0xe8] sm:$0xf]
        %v1077 = vld [vmem:[#allocation7 + $0xec] sm:$0xf]
        %v1078 = vld [vmem:[#allocation7 + $0xf0] sm:$0xf]
        %v1079 = vld [vmem:[#allocation7 + $0xf4] sm:$0xf]
        %v1080 = vld [vmem:[#allocation7 + $0xf8] sm:$0xf]
        %v1081 = vld [vmem:[#allocation7 + $0xfc] sm:$0xf]
        %v1082 = vld [vmem:[#allocation7 + $0x100] sm:$0xf]
        %v1083 = vld [vmem:[#allocation7 + $0x104] sm:$0xf]
        %v1084 = vld [vmem:[#allocation7 + $0x108] sm:$0xf]
        %v1085 = vld [vmem:[#allocation7 + $0x10c] sm:$0xf]
        %v1086 = vld [vmem:[#allocation7 + $0x110] sm:$0xf]
        %v1087 = vld [vmem:[#allocation7 + $0x114] sm:$0xf]
        %v1088 = vld [vmem:[#allocation7 + $0x118] sm:$0xf]
        %v1089 = vld [vmem:[#allocation7 + $0x11c] sm:$0xf]
        %v1090 = vld [vmem:[#allocation7 + $0x120] sm:$0xf]
        %v1091 = vld [vmem:[#allocation7 + $0x124] sm:$0xf]
        %v1092 = vld [vmem:[#allocation7 + $0x128] sm:$0xf]
        %v1093 = vld [vmem:[#allocation7 + $0x12c] sm:$0xf]
        %v1094 = vld [vmem:[#allocation7 + $0x130] sm:$0xf]
        %v1095 = vld [vmem:[#allocation7 + $0x134] sm:$0xf]
        %v1096 = vld [vmem:[#allocation7 + $0x138] sm:$0xf]
        %v1097 = vld [vmem:[#allocation7 + $0x13c] sm:$0xf]
        %v1098 = vld [vmem:[#allocation7 + $0x140] sm:$0xf]
        %v1099 = vld [vmem:[#allocation7 + $0x144] sm:$0xf]
        %v1100 = vld [vmem:[#allocation7 + $0x148] sm:$0xf]
        %v1101 = vld [vmem:[#allocation7 + $0x14c] sm:$0xf]
        %v1102 = vld [vmem:[#allocation7 + $0x150] sm:$0xf]
        %v1103 = vld [vmem:[#allocation7 + $0x154] sm:$0xf]
        %v1104 = vld [vmem:[#allocation7 + $0x158] sm:$0xf]
        %v1105 = vld [vmem:[#allocation7 + $0x15c] sm:$0xf]
        %v1106 = vld [vmem:[#allocation7 + $0x160] sm:$0xf]
        %v1107 = vld [vmem:[#allocation7 + $0x164] sm:$0xf]
        %v1108 = vld [vmem:[#allocation7 + $0x168] sm:$0xf]
        %v1109 = vld [vmem:[#allocation7 + $0x16c] sm:$0xf]
        %v1110 = vld [vmem:[#allocation7 + $0x170] sm:$0xf]
        %v1111 = vld [vmem:[#allocation7 + $0x174] sm:$0xf]
        %v1112 = vld [vmem:[#allocation7 + $0x178] sm:$0xf]
        %v1113 = vld [vmem:[#allocation7 + $0x17c] sm:$0xf]
        %v1114 = vld [vmem:[#allocation7 + $0x180] sm:$0xf]
        %v1115 = vld [vmem:[#allocation7 + $0x184] sm:$0xf]
        %v1116 = vld [vmem:[#allocation7 + $0x188] sm:$0xf]
        %v1117 = vld [vmem:[#allocation7 + $0x18c] sm:$0xf]
        %v1118 = vld [vmem:[#allocation7 + $0x190] sm:$0xf]
        %v1119 = vld [vmem:[#allocation7 + $0x194] sm:$0xf]
        %v1120 = vld [vmem:[#allocation7 + $0x198] sm:$0xf]
        %v1121 = vld [vmem:[#allocation7 + $0x19c] sm:$0xf]
        %v1122 = vld [vmem:[#allocation7 + $0x1a0] sm:$0xf]
        %v1123 = vld [vmem:[#allocation7 + $0x1a4] sm:$0xf]
        %v1124 = vld [vmem:[#allocation7 + $0x1a8] sm:$0xf]
        %v1125 = vld [vmem:[#allocation7 + $0x1ac] sm:$0xf]
        %v1126 = vld [vmem:[#allocation7 + $0x1b0] sm:$0xf]
        %v1127 = vld [vmem:[#allocation7 + $0x1b4] sm:$0xf]
        %v1128 = vld [vmem:[#allocation7 + $0x1b8] sm:$0xf]
        %v1129 = vld [vmem:[#allocation7 + $0x1bc] sm:$0xf]
        %v1130 = vld [vmem:[#allocation7 + $0x1c0] sm:$0xf]
        %v1131 = vld [vmem:[#allocation7 + $0x1c4] sm:$0xf]
        %v1132 = vld [vmem:[#allocation7 + $0x1c8] sm:$0xf]
        %v1133 = vld [vmem:[#allocation7 + $0x1cc] sm:$0xf]
        %v1134 = vld [vmem:[#allocation7 + $0x1d0] sm:$0xf]
        %v1135 = vld [vmem:[#allocation7 + $0x1d4] sm:$0xf]
        %v1136 = vld [vmem:[#allocation7 + $0x1d8] sm:$0xf]
        %v1137 = vld [vmem:[#allocation7 + $0x1dc] sm:$0xf]
        %v1138 = vld [vmem:[#allocation7 + $0x1e0] sm:$0xf]
        %v1139 = vld [vmem:[#allocation7 + $0x1e4] sm:$0xf]
        %v1140 = vld [vmem:[#allocation7 + $0x1e8] sm:$0xf]
        %v1141 = vld [vmem:[#allocation7 + $0x1ec] sm:$0xf]
        %v1142 = vld [vmem:[#allocation7 + $0x1f0] sm:$0xf]
        %v1143 = vld [vmem:[#allocation7 + $0x1f4] sm:$0xf]
        %v1144 = vld [vmem:[#allocation7 + $0x1f8] sm:$0xf]
        %v1145 = vld [vmem:[#allocation7 + $0x1fc] sm:$0xf]
        %v1146 = vld [vmem:[#allocation7 + $0x200] sm:$0xf]
        %v1147 = vld [vmem:[#allocation7 + $0x204] sm:$0xf]
        %v1148 = vld [vmem:[#allocation7 + $0x208] sm:$0xf]
        %v1149 = vld [vmem:[#allocation7 + $0x20c] sm:$0xf]
        %v1150 = vld [vmem:[#allocation7 + $0x210] sm:$0xf]
        %v1151 = vld [vmem:[#allocation7 + $0x214] sm:$0xf]
        %v1152 = vld [vmem:[#allocation7 + $0x218] sm:$0xf]
        %v1153 = vld [vmem:[#allocation7 + $0x21c] sm:$0xf]
        %v1154 = vld [vmem:[#allocation7 + $0x220] sm:$0xf]
        %v1155 = vld [vmem:[#allocation7 + $0x224] sm:$0xf]
        %v1156 = vld [vmem:[#allocation7 + $0x228] sm:$0xf]
        %v1157 = vld [vmem:[#allocation7 + $0x22c] sm:$0xf]
        %v1158 = vld [vmem:[#allocation7 + $0x230] sm:$0xf]
        %v1159 = vld [vmem:[#allocation7 + $0x234] sm:$0xf]
        %v1160 = vld [vmem:[#allocation7 + $0x238] sm:$0xf]
        %v1161 = vld [vmem:[#allocation7 + $0x23c] sm:$0xf]
        %v1162 = vld [vmem:[%s6] sm:$0x1]
        %v1164 = vlaneseq
        %v1165 = vshrl.u32 %v1164, 7
        %v1166 = vsub.s32 0, %v1165
        %v1167 = vrot.slane %v1162, %v1166
        %v1313 = vunpack.c.l.b16 %v1018
        %v1314 = vunpack.c.l.b16 %v1019
        %v1315 = vunpack.c.l.b16 %v1020
        %v1316 = vunpack.c.l.b16 %v1021
        %v1317 = vunpack.c.l.b16 %v1022
        %v1318 = vunpack.c.l.b16 %v1023
        %v1319 = vunpack.c.l.b16 %v1024
        %v1320 = vunpack.c.l.b16 %v1025
        %v1321 = vunpack.c.l.b16 %v1026
        %v1322 = vunpack.c.l.b16 %v1027
        %v1323 = vunpack.c.l.b16 %v1028
        %v1324 = vunpack.c.l.b16 %v1029
        %v1325 = vunpack.c.l.b16 %v1030
        %v1326 = vunpack.c.l.b16 %v1031
        %v1327 = vunpack.c.l.b16 %v1032
        %v1328 = vunpack.c.l.b16 %v1033
        %v1329 = vunpack.c.l.b16 %v1034
        %v1330 = vunpack.c.l.b16 %v1035
        %v1331 = vunpack.c.l.b16 %v1036
        %v1332 = vunpack.c.l.b16 %v1037
        %v1333 = vunpack.c.l.b16 %v1038
        %v1334 = vunpack.c.l.b16 %v1039
        %v1335 = vunpack.c.l.b16 %v1040
        %v1336 = vunpack.c.l.b16 %v1041
        %v1337 = vunpack.c.l.b16 %v1042
        %v1338 = vunpack.c.l.b16 %v1043
        %v1339 = vunpack.c.l.b16 %v1044
        %v1340 = vunpack.c.l.b16 %v1045
        %v1341 = vunpack.c.l.b16 %v1046
        %v1342 = vunpack.c.l.b16 %v1047
        %v1343 = vunpack.c.l.b16 %v1048
        %v1344 = vunpack.c.l.b16 %v1049
        %v1345 = vunpack.c.l.b16 %v1050
        %v1346 = vunpack.c.l.b16 %v1051
        %v1347 = vunpack.c.l.b16 %v1052
        %v1348 = vunpack.c.l.b16 %v1053
        %v1349 = vunpack.c.l.b16 %v1054
        %v1350 = vunpack.c.l.b16 %v1055
        %v1351 = vunpack.c.l.b16 %v1056
        %v1352 = vunpack.c.l.b16 %v1057
        %v1353 = vunpack.c.l.b16 %v1058
        %v1354 = vunpack.c.l.b16 %v1059
        %v1355 = vunpack.c.l.b16 %v1060
        %v1356 = vunpack.c.l.b16 %v1061
        %v1357 = vunpack.c.l.b16 %v1062
        %v1358 = vunpack.c.l.b16 %v1063
        %v1359 = vunpack.c.l.b16 %v1064
        %v1360 = vunpack.c.l.b16 %v1065
        %v1361 = vunpack.c.l.b16 %v1066
        %v1362 = vunpack.c.l.b16 %v1067
        %v1363 = vunpack.c.l.b16 %v1068
        %v1364 = vunpack.c.l.b16 %v1069
        %v1365 = vunpack.c.l.b16 %v1070
        %v1366 = vunpack.c.l.b16 %v1071
        %v1367 = vunpack.c.l.b16 %v1072
        %v1368 = vunpack.c.l.b16 %v1073
        %v1369 = vunpack.c.l.b16 %v1074
        %v1370 = vunpack.c.l.b16 %v1075
        %v1371 = vunpack.c.l.b16 %v1076
        %v1372 = vunpack.c.l.b16 %v1077
        %v1373 = vunpack.c.l.b16 %v1078
        %v1374 = vunpack.c.l.b16 %v1079
        %v1375 = vunpack.c.l.b16 %v1080
        %v1376 = vunpack.c.l.b16 %v1081
        %v1377 = vunpack.c.l.b16 %v1082
        %v1378 = vunpack.c.l.b16 %v1083
        %v1379 = vunpack.c.l.b16 %v1084
        %v1380 = vunpack.c.l.b16 %v1085
        %v1381 = vunpack.c.l.b16 %v1086
        %v1382 = vunpack.c.l.b16 %v1087
        %v1383 = vunpack.c.l.b16 %v1088
        %v1384 = vunpack.c.l.b16 %v1089
        %v1385 = vunpack.c.l.b16 %v1090
        %v1386 = vunpack.c.l.b16 %v1091
        %v1387 = vunpack.c.l.b16 %v1092
        %v1388 = vunpack.c.l.b16 %v1093
        %v1389 = vunpack.c.l.b16 %v1094
        %v1390 = vunpack.c.l.b16 %v1095
        %v1391 = vunpack.c.l.b16 %v1096
        %v1392 = vunpack.c.l.b16 %v1097
        %v1393 = vunpack.c.l.b16 %v1098
        %v1394 = vunpack.c.l.b16 %v1099
        %v1395 = vunpack.c.l.b16 %v1100
        %v1396 = vunpack.c.l.b16 %v1101
        %v1397 = vunpack.c.l.b16 %v1102
        %v1398 = vunpack.c.l.b16 %v1103
        %v1399 = vunpack.c.l.b16 %v1104
        %v1400 = vunpack.c.l.b16 %v1105
        %v1401 = vunpack.c.l.b16 %v1106
        %v1402 = vunpack.c.l.b16 %v1107
        %v1403 = vunpack.c.l.b16 %v1108
        %v1404 = vunpack.c.l.b16 %v1109
        %v1405 = vunpack.c.l.b16 %v1110
        %v1406 = vunpack.c.l.b16 %v1111
        %v1407 = vunpack.c.l.b16 %v1112
        %v1408 = vunpack.c.l.b16 %v1113
        %v1409 = vunpack.c.l.b16 %v1114
        %v1410 = vunpack.c.l.b16 %v1115
        %v1411 = vunpack.c.l.b16 %v1116
        %v1412 = vunpack.c.l.b16 %v1117
        %v1413 = vunpack.c.l.b16 %v1118
        %v1414 = vunpack.c.l.b16 %v1119
        %v1415 = vunpack.c.l.b16 %v1120
        %v1416 = vunpack.c.l.b16 %v1121
        %v1417 = vunpack.c.l.b16 %v1122
        %v1418 = vunpack.c.l.b16 %v1123
        %v1419 = vunpack.c.l.b16 %v1124
        %v1420 = vunpack.c.l.b16 %v1125
        %v1421 = vunpack.c.l.b16 %v1126
        %v1422 = vunpack.c.l.b16 %v1127
        %v1423 = vunpack.c.l.b16 %v1128
        %v1424 = vunpack.c.l.b16 %v1129
        %v1425 = vunpack.c.l.b16 %v1130
        %v1426 = vunpack.c.l.b16 %v1131
        %v1427 = vunpack.c.l.b16 %v1132
        %v1428 = vunpack.c.l.b16 %v1133
        %v1429 = vunpack.c.l.b16 %v1134
        %v1430 = vunpack.c.l.b16 %v1135
        %v1431 = vunpack.c.l.b16 %v1136
        %v1432 = vunpack.c.l.b16 %v1137
        %v1433 = vunpack.c.l.b16 %v1138
        %v1434 = vunpack.c.l.b16 %v1139
        %v1435 = vunpack.c.l.b16 %v1140
        %v1436 = vunpack.c.l.b16 %v1141
        %v1437 = vunpack.c.l.b16 %v1142
        %v1438 = vunpack.c.l.b16 %v1143
        %v1439 = vunpack.c.l.b16 %v1144
        %v1440 = vunpack.c.l.b16 %v1145
        %v1441 = vunpack.c.l.b16 %v1146
        %v1442 = vunpack.c.l.b16 %v1147
        %v1443 = vunpack.c.l.b16 %v1148
        %v1444 = vunpack.c.l.b16 %v1149
        %v1445 = vunpack.c.l.b16 %v1150
        %v1446 = vunpack.c.l.b16 %v1151
        %v1447 = vunpack.c.l.b16 %v1152
        %v1448 = vunpack.c.l.b16 %v1153
        %v1449 = vunpack.c.l.b16 %v1154
        %v1450 = vunpack.c.l.b16 %v1155
        %v1451 = vunpack.c.l.b16 %v1156
        %v1452 = vunpack.c.l.b16 %v1157
        %v1453 = vunpack.c.l.b16 %v1158
        %v1454 = vunpack.c.l.b16 %v1159
        %v1455 = vunpack.c.l.b16 %v1160
        %v1456 = vunpack.c.l.b16 %v1161
        %v1457 = vpack.c.b16 %v1314, %v1313
        %v1458 = vpack.c.b16 %v1316, %v1315
        %v1459 = vpack.c.b16 %v1318, %v1317
        %v1460 = vpack.c.b16 %v1320, %v1319
        %v1461 = vpack.c.b16 %v1322, %v1321
        %v1462 = vpack.c.b16 %v1324, %v1323
        %v1463 = vpack.c.b16 %v1326, %v1325
        %v1464 = vpack.c.b16 %v1328, %v1327
        %v1465 = vpack.c.b16 %v1330, %v1329
        %v1466 = vpack.c.b16 %v1332, %v1331
        %v1467 = vpack.c.b16 %v1334, %v1333
        %v1468 = vpack.c.b16 %v1336, %v1335
        %v1469 = vpack.c.b16 %v1338, %v1337
        %v1470 = vpack.c.b16 %v1340, %v1339
        %v1471 = vpack.c.b16 %v1342, %v1341
        %v1472 = vpack.c.b16 %v1344, %v1343
        %v1473 = vpack.c.b16 %v1346, %v1345
        %v1474 = vpack.c.b16 %v1348, %v1347
        %v1475 = vpack.c.b16 %v1350, %v1349
        %v1476 = vpack.c.b16 %v1352, %v1351
        %v1477 = vpack.c.b16 %v1354, %v1353
        %v1478 = vpack.c.b16 %v1356, %v1355
        %v1479 = vpack.c.b16 %v1358, %v1357
        %v1480 = vpack.c.b16 %v1360, %v1359
        %v1481 = vpack.c.b16 %v1362, %v1361
        %v1482 = vpack.c.b16 %v1364, %v1363
        %v1483 = vpack.c.b16 %v1366, %v1365
        %v1484 = vpack.c.b16 %v1368, %v1367
        %v1485 = vpack.c.b16 %v1370, %v1369
        %v1486 = vpack.c.b16 %v1372, %v1371
        %v1487 = vpack.c.b16 %v1374, %v1373
        %v1488 = vpack.c.b16 %v1376, %v1375
        %v1489 = vpack.c.b16 %v1378, %v1377
        %v1490 = vpack.c.b16 %v1380, %v1379
        %v1491 = vpack.c.b16 %v1382, %v1381
        %v1492 = vpack.c.b16 %v1384, %v1383
        %v1493 = vpack.c.b16 %v1386, %v1385
        %v1494 = vpack.c.b16 %v1388, %v1387
        %v1495 = vpack.c.b16 %v1390, %v1389
        %v1496 = vpack.c.b16 %v1392, %v1391
        %v1497 = vpack.c.b16 %v1394, %v1393
        %v1498 = vpack.c.b16 %v1396, %v1395
        %v1499 = vpack.c.b16 %v1398, %v1397
        %v1500 = vpack.c.b16 %v1400, %v1399
        %v1501 = vpack.c.b16 %v1402, %v1401
        %v1502 = vpack.c.b16 %v1404, %v1403
        %v1503 = vpack.c.b16 %v1406, %v1405
        %v1504 = vpack.c.b16 %v1408, %v1407
        %v1505 = vpack.c.b16 %v1410, %v1409
        %v1506 = vpack.c.b16 %v1412, %v1411
        %v1507 = vpack.c.b16 %v1414, %v1413
        %v1508 = vpack.c.b16 %v1416, %v1415
        %v1509 = vpack.c.b16 %v1418, %v1417
        %v1510 = vpack.c.b16 %v1420, %v1419
        %v1511 = vpack.c.b16 %v1422, %v1421
        %v1512 = vpack.c.b16 %v1424, %v1423
        %v1513 = vpack.c.b16 %v1426, %v1425
        %v1514 = vpack.c.b16 %v1428, %v1427
        %v1515 = vpack.c.b16 %v1430, %v1429
        %v1516 = vpack.c.b16 %v1432, %v1431
        %v1517 = vpack.c.b16 %v1434, %v1433
        %v1518 = vpack.c.b16 %v1436, %v1435
        %v1519 = vpack.c.b16 %v1438, %v1437
        %v1520 = vpack.c.b16 %v1440, %v1439
        %v1521 = vpack.c.b16 %v1442, %v1441
        %v1522 = vpack.c.b16 %v1444, %v1443
        %v1523 = vpack.c.b16 %v1446, %v1445
        %v1524 = vpack.c.b16 %v1448, %v1447
        %v1525 = vpack.c.b16 %v1450, %v1449
        %v1526 = vpack.c.b16 %v1452, %v1451
        %v1527 = vpack.c.b16 %v1454, %v1453
        %v1528 = vpack.c.b16 %v1456, %v1455
        %1601 = vmatprep.subr.bf16.mxu0 0
        %1602 = vmatpush1.bf16.msra.mxu0 %v1457
        %1603 = vmatprep.subr.bf16.mxu0 0
        %1604 = vmatpush1.bf16.msra.mxu0 %v1458
        %1605 = vmatprep.subr.bf16.mxu0 0
        %1606 = vmatpush1.bf16.msra.mxu0 %v1459
        %1607 = vmatprep.subr.bf16.mxu0 0
        %1608 = vmatpush1.bf16.msra.mxu0 %v1460
        %1609 = vmatprep.subr.bf16.mxu0 0
        %1610 = vmatpush1.bf16.msra.mxu0 %v1461
        %1611 = vmatprep.subr.bf16.mxu0 0
        %1612 = vmatpush1.bf16.msra.mxu0 %v1462
        %1613 = vmatprep.subr.bf16.mxu0 0
        %1614 = vmatpush1.bf16.msra.mxu0 %v1463
        %1615 = vmatprep.subr.bf16.mxu0 0
        %1616 = vmatpush1.bf16.msra.mxu0 %v1464
        %1617 = vmatprep.subr.bf16.mxu0 0
        %1618 = vmatpush1.bf16.msra.mxu0 %v1465
        %1619 = vmatprep.subr.bf16.mxu0 0
        %1620 = vmatpush1.bf16.msra.mxu0 %v1466
        %1621 = vmatprep.subr.bf16.mxu0 0
        %1622 = vmatpush1.bf16.msra.mxu0 %v1467
        %1623 = vmatprep.subr.bf16.mxu0 0
        %1624 = vmatpush1.bf16.msra.mxu0 %v1468
        %1625 = vmatprep.subr.bf16.mxu0 0
        %1626 = vmatpush1.bf16.msra.mxu0 %v1469
        %1627 = vmatprep.subr.bf16.mxu0 0
        %1628 = vmatpush1.bf16.msra.mxu0 %v1470
        %1629 = vmatprep.subr.bf16.mxu0 0
        %1630 = vmatpush1.bf16.msra.mxu0 %v1471
        %1631 = vmatprep.subr.bf16.mxu0 0
        %1632 = vmatpush1.bf16.msra.mxu0 %v1472
        %1633 = vmatprep.mubr.bf16.mxu0 0
        %1634 = vmatmul.mubr.bf16.gmra.mrb[0].mxu0 %v930
        %v1635 = vpop.f32.mrb[0].mxu0
        %v1636 = vadd.f32 %v1167, %v1635
        %v1637 = vpop.f32.mrb[0].mxu0
        %v1638 = vpop.f32.mrb[0].mxu0
        %v1639 = vadd.f32 %v1167, %v1638
        %v1640 = vpop.f32.mrb[0].mxu0
        %1641 = vmatprep.mubr.bf16.mxu0 %v775
        %1642 = vmatmul.mubr.bf16.gmra.mrb[0].mxu0 %v931
        %v1643 = vpop.f32.mrb[0].mxu0
        %v1644 = vadd.f32 %v1167, %v1643
        %v1645 = vpop.f32.mrb[0].mxu0
        %v1646 = vpop.f32.mrb[0].mxu0
        %v1647 = vadd.f32 %v1167, %v1646
        %v1648 = vpop.f32.mrb[0].mxu0
        %1649 = vmatprep.mubr.bf16.mxu0 %v776
        %1650 = vmatmul.mubr.bf16.gmra.mrb[0].mxu0 %v932
        %v1651 = vpop.f32.mrb[0].mxu0
        %v1652 = vadd.f32 %v1167, %v1651
        %v1653 = vpop.f32.mrb[0].mxu0
        %v1654 = vpop.f32.mrb[0].mxu0
        %v1655 = vadd.f32 %v1167, %v1654
        %v1656 = vpop.f32.mrb[0].mxu0
        %1657 = vmatprep.mubr.bf16.mxu0 %v777
        %1658 = vmatmul.mubr.bf16.gmra.mrb[0].mxu0 %v933
        %v1659 = vpop.f32.mrb[0].mxu0
        %v1660 = vadd.f32 %v1167, %v1659
        %v1661 = vpop.f32.mrb[0].mxu0
        %v1662 = vpop.f32.mrb[0].mxu0
        %v1663 = vadd.f32 %v1167, %v1662
        %v1664 = vpop.f32.mrb[0].mxu0
        %1665 = vmatprep.mubr.bf16.mxu0 %v778
        %1666 = vmatmul.mubr.bf16.gmra.mrb[0].mxu0 %v934
        %v1667 = vpop.f32.mrb[0].mxu0
        %v1668 = vadd.f32 %v1167, %v1667
        %v1669 = vpop.f32.mrb[0].mxu0
        %v1670 = vpop.f32.mrb[0].mxu0
        %v1671 = vadd.f32 %v1167, %v1670
        %v1672 = vpop.f32.mrb[0].mxu0
        %1673 = vmatprep.mubr.bf16.mxu0 %v779
        %1674 = vmatmul.mubr.bf16.gmra.mrb[0].mxu0 %v935
        %v1675 = vpop.f32.mrb[0].mxu0
        %v1676 = vadd.f32 %v1167, %v1675
        %v1677 = vpop.f32.mrb[0].mxu0
        %v1678 = vpop.f32.mrb[0].mxu0
        %v1679 = vadd.f32 %v1167, %v1678
        %v1680 = vpop.f32.mrb[0].mxu0
        %1681 = vmatprep.mubr.bf16.mxu0 %v780
        %1682 = vmatmul.mubr.bf16.gmra.mrb[0].mxu0 %v936
        %v1683 = vpop.f32.mrb[0].mxu0
        %v1684 = vadd.f32 %v1167, %v1683
        %v1685 = vpop.f32.mrb[0].mxu0
        %v1686 = vpop.f32.mrb[0].mxu0
        %v1687 = vadd.f32 %v1167, %v1686
        %v1688 = vpop.f32.mrb[0].mxu0
        %1689 = vmatprep.mubr.bf16.mxu0 %v781
        %1690 = vmatmul.mubr.bf16.gmra.mrb[0].mxu0 %v937
        %v1691 = vpop.f32.mrb[0].mxu0
        %v1692 = vadd.f32 %v1167, %v1691
        %v1693 = vpop.f32.mrb[0].mxu0
        %v1694 = vpop.f32.mrb[0].mxu0
        %v1695 = vadd.f32 %v1167, %v1694
        %v1696 = vpop.f32.mrb[0].mxu0
        %1697 = vmatprep.mubr.bf16.mxu0 %v782
        %1698 = vmatmul.mubr.bf16.gmra.mrb[0].mxu0 %v938
        %v1699 = vpop.f32.mrb[0].mxu0
        %v1700 = vadd.f32 %v1167, %v1699
        %v1701 = vpop.f32.mrb[0].mxu0
        %v1702 = vpop.f32.mrb[0].mxu0
        %v1703 = vadd.f32 %v1167, %v1702
        %v1704 = vpop.f32.mrb[0].mxu0
        %1705 = vmatprep.mubr.bf16.mxu0 %v783
        %1706 = vmatmul.mubr.bf16.gmra.mrb[0].mxu0 %v939
        %v1707 = vpop.f32.mrb[0].mxu0
        %v1708 = vadd.f32 %v1167, %v1707
        %v1709 = vpop.f32.mrb[0].mxu0
        %v1710 = vpop.f32.mrb[0].mxu0
        %v1711 = vadd.f32 %v1167, %v1710
        %v1712 = vpop.f32.mrb[0].mxu0
        %1713 = vmatprep.mubr.bf16.mxu0 %v784
        %1714 = vmatmul.mubr.bf16.gmra.mrb[0].mxu0 %v940
        %v1715 = vpop.f32.mrb[0].mxu0
        %v1716 = vadd.f32 %v1167, %v1715
        %v1717 = vpop.f32.mrb[0].mxu0
        %v1718 = vpop.f32.mrb[0].mxu0
        %v1719 = vadd.f32 %v1167, %v1718
        %v1720 = vpop.f32.mrb[0].mxu0
        %1721 = vmatprep.mubr.bf16.mxu0 %v785
        %1722 = vmatmul.mubr.bf16.gmra.mrb[0].mxu0 %v941
        %v1723 = vpop.f32.mrb[0].mxu0
        %v1724 = vadd.f32 %v1167, %v1723
        %v1725 = vpop.f32.mrb[0].mxu0
        %v1726 = vpop.f32.mrb[0].mxu0
        %v1727 = vadd.f32 %v1167, %v1726
        %v1728 = vpop.f32.mrb[0].mxu0
        %1729 = vmatprep.mubr.bf16.mxu0 %v786
        %1730 = vmatmul.mubr.bf16.gmra.mrb[0].mxu0 %v942
        %v1731 = vpop.f32.mrb[0].mxu0
        %v1732 = vadd.f32 %v1167, %v1731
        %v1733 = vpop.f32.mrb[0].mxu0
        %v1734 = vpop.f32.mrb[0].mxu0
        %v1735 = vadd.f32 %v1167, %v1734
        %v1736 = vpop.f32.mrb[0].mxu0
        %1737 = vmatprep.mubr.bf16.mxu0 %v787
        %1738 = vmatmul.mubr.bf16.gmra.mrb[0].mxu0 %v943
        %v1739 = vpop.f32.mrb[0].mxu0
        %v1740 = vadd.f32 %v1167, %v1739
        %v1741 = vpop.f32.mrb[0].mxu0
        %v1742 = vpop.f32.mrb[0].mxu0
        %v1743 = vadd.f32 %v1167, %v1742
        %v1744 = vpop.f32.mrb[0].mxu0
        %1745 = vmatprep.mubr.bf16.mxu0 %v788
        %1746 = vmatmul.mubr.bf16.gmra.mrb[0].mxu0 %v944
        %v1747 = vpop.f32.mrb[0].mxu0
        %v1748 = vadd.f32 %v1167, %v1747
        %v1749 = vpop.f32.mrb[0].mxu0
        %v1750 = vpop.f32.mrb[0].mxu0
        %v1751 = vadd.f32 %v1167, %v1750
        %v1752 = vpop.f32.mrb[0].mxu0
        %1753 = vmatprep.mubr.bf16.mxu0 %v789
        %1754 = vmatmul.mubr.bf16.gmra.mrb[0].mxu0 %v945
        %v1755 = vpop.f32.mrb[0].mxu0
        %v1756 = vadd.f32 %v1167, %v1755
        %v1757 = vpop.f32.mrb[0].mxu0
        %v1758 = vpop.f32.mrb[0].mxu0
        %v1759 = vadd.f32 %v1167, %v1758
        %v1760 = vpop.f32.mrb[0].mxu0
        %1761 = vdwg.mxu0
        %1762 = vmatprep.subr.bf16.mxu0 0
        %1763 = vmatpush1.bf16.msra.mxu0 %v1473
        %1764 = vmatprep.subr.bf16.mxu0 0
        %1765 = vmatpush1.bf16.msra.mxu0 %v1474
        %1766 = vmatprep.subr.bf16.mxu0 0
        %1767 = vmatpush1.bf16.msra.mxu0 %v1475
        %1768 = vmatprep.subr.bf16.mxu0 0
        %1769 = vmatpush1.bf16.msra.mxu0 %v1476
        %1770 = vmatprep.subr.bf16.mxu0 0
        %1771 = vmatpush1.bf16.msra.mxu0 %v1477
        %1772 = vmatprep.subr.bf16.mxu0 0
        %1773 = vmatpush1.bf16.msra.mxu0 %v1478
        %1774 = vmatprep.subr.bf16.mxu0 0
        %1775 = vmatpush1.bf16.msra.mxu0 %v1479
        %1776 = vmatprep.subr.bf16.mxu0 0
        %1777 = vmatpush1.bf16.msra.mxu0 %v1480
        %1778 = vmatprep.subr.bf16.mxu0 0
        %1779 = vmatpush1.bf16.msra.mxu0 %v1481
        %1780 = vmatprep.subr.bf16.mxu0 0
        %1781 = vmatpush1.bf16.msra.mxu0 %v1482
        %1782 = vmatprep.subr.bf16.mxu0 0
        %1783 = vmatpush1.bf16.msra.mxu0 %v1483
        %1784 = vmatprep.subr.bf16.mxu0 0
        %1785 = vmatpush1.bf16.msra.mxu0 %v1484
        %1786 = vmatprep.subr.bf16.mxu0 0
        %1787 = vmatpush1.bf16.msra.mxu0 %v1485
        %1788 = vmatprep.subr.bf16.mxu0 0
        %1789 = vmatpush1.bf16.msra.mxu0 %v1486
        %1790 = vmatprep.subr.bf16.mxu0 0
        %1791 = vmatpush1.bf16.msra.mxu0 %v1487
        %1792 = vmatprep.subr.bf16.mxu0 0
        %1793 = vmatpush1.bf16.msra.mxu0 %v1488
        %1794 = vmatprep.mubr.bf16.mxu0 %v931
        %1795 = vmatmul.mubr.bf16.gmra.mrb[0].mxu0 %v1001
        %v1796 = vpop.f32.mrb[0].mxu0
        %v1797 = vadd.f32 %v1636, %v1796
        %v1798 = vpop.f32.mrb[0].mxu0
        %v1799 = vpop.f32.mrb[0].mxu0
        %v1800 = vadd.f32 %v1639, %v1799
        %v1801 = vpop.f32.mrb[0].mxu0
        %1802 = vmatprep.mubr.bf16.mxu0 %v932
        %1803 = vmatmul.mubr.bf16.gmra.mrb[0].mxu0 %v1002
        %v1804 = vpop.f32.mrb[0].mxu0
        %v1805 = vadd.f32 %v1644, %v1804
        %v1806 = vpop.f32.mrb[0].mxu0
        %v1807 = vpop.f32.mrb[0].mxu0
        %v1808 = vadd.f32 %v1647, %v1807
        %v1809 = vpop.f32.mrb[0].mxu0
        %1810 = vmatprep.mubr.bf16.mxu0 %v933
        %1811 = vmatmul.mubr.bf16.gmra.mrb[0].mxu0 %v1003
        %v1812 = vpop.f32.mrb[0].mxu0
        %v1813 = vadd.f32 %v1652, %v1812
        %v1814 = vpop.f32.mrb[0].mxu0
        %v1815 = vpop.f32.mrb[0].mxu0
        %v1816 = vadd.f32 %v1655, %v1815
        %v1817 = vpop.f32.mrb[0].mxu0
        %1818 = vmatprep.mubr.bf16.mxu0 %v934
        %1819 = vmatmul.mubr.bf16.gmra.mrb[0].mxu0 %v1004
        %v1820 = vpop.f32.mrb[0].mxu0
        %v1821 = vadd.f32 %v1660, %v1820
        %v1822 = vpop.f32.mrb[0].mxu0
        %v1823 = vpop.f32.mrb[0].mxu0
        %v1824 = vadd.f32 %v1663, %v1823
        %v1825 = vpop.f32.mrb[0].mxu0
        %1826 = vmatprep.mubr.bf16.mxu0 %v935
        %1827 = vmatmul.mubr.bf16.gmra.mrb[0].mxu0 %v1005
        %v1828 = vpop.f32.mrb[0].mxu0
        %v1829 = vadd.f32 %v1668, %v1828
        %v1830 = vpop.f32.mrb[0].mxu0
        %v1831 = vpop.f32.mrb[0].mxu0
        %v1832 = vadd.f32 %v1671, %v1831
        %v1833 = vpop.f32.mrb[0].mxu0
        %1834 = vmatprep.mubr.bf16.mxu0 %v936
        %1835 = vmatmul.mubr.bf16.gmra.mrb[0].mxu0 %v1006
        %v1836 = vpop.f32.mrb[0].mxu0
        %v1837 = vadd.f32 %v1676, %v1836
        %v1838 = vpop.f32.mrb[0].mxu0
        %v1839 = vpop.f32.mrb[0].mxu0
        %v1840 = vadd.f32 %v1679, %v1839
        %v1841 = vpop.f32.mrb[0].mxu0
        %1842 = vmatprep.mubr.bf16.mxu0 %v937
        %1843 = vmatmul.mubr.bf16.gmra.mrb[0].mxu0 %v1007
        %v1844 = vpop.f32.mrb[0].mxu0
        %v1845 = vadd.f32 %v1684, %v1844
        %v1846 = vpop.f32.mrb[0].mxu0
        %v1847 = vpop.f32.mrb[0].mxu0
        %v1848 = vadd.f32 %v1687, %v1847
        %v1849 = vpop.f32.mrb[0].mxu0
        %1850 = vmatprep.mubr.bf16.mxu0 %v938
        %1851 = vmatmul.mubr.bf16.gmra.mrb[0].mxu0 %v1008
        %v1852 = vpop.f32.mrb[0].mxu0
        %v1853 = vadd.f32 %v1692, %v1852
        %v1854 = vpop.f32.mrb[0].mxu0
        %v1855 = vpop.f32.mrb[0].mxu0
        %v1856 = vadd.f32 %v1695, %v1855
        %v1857 = vpop.f32.mrb[0].mxu0
        %1858 = vmatprep.mubr.bf16.mxu0 %v939
        %1859 = vmatmul.mubr.bf16.gmra.mrb[0].mxu0 %v1009
        %v1860 = vpop.f32.mrb[0].mxu0
        %v1861 = vadd.f32 %v1700, %v1860
        %v1862 = vpop.f32.mrb[0].mxu0
        %v1863 = vpop.f32.mrb[0].mxu0
        %v1864 = vadd.f32 %v1703, %v1863
        %v1865 = vpop.f32.mrb[0].mxu0
        %1866 = vmatprep.mubr.bf16.mxu0 %v940
        %1867 = vmatmul.mubr.bf16.gmra.mrb[0].mxu0 %v1010
        %v1868 = vpop.f32.mrb[0].mxu0
        %v1869 = vadd.f32 %v1708, %v1868
        %v1870 = vpop.f32.mrb[0].mxu0
        %v1871 = vpop.f32.mrb[0].mxu0
        %v1872 = vadd.f32 %v1711, %v1871
        %v1873 = vpop.f32.mrb[0].mxu0
        %1874 = vmatprep.mubr.bf16.mxu0 %v941
        %1875 = vmatmul.mubr.bf16.gmra.mrb[0].mxu0 %v1011
        %v1876 = vpop.f32.mrb[0].mxu0
        %v1877 = vadd.f32 %v1716, %v1876
        %v1878 = vpop.f32.mrb[0].mxu0
        %v1879 = vpop.f32.mrb[0].mxu0
        %v1880 = vadd.f32 %v1719, %v1879
        %v1881 = vpop.f32.mrb[0].mxu0
        %1882 = vmatprep.mubr.bf16.mxu0 %v942
        %1883 = vmatmul.mubr.bf16.gmra.mrb[0].mxu0 %v1012
        %v1884 = vpop.f32.mrb[0].mxu0
        %v1885 = vadd.f32 %v1724, %v1884
        %v1886 = vpop.f32.mrb[0].mxu0
        %v1887 = vpop.f32.mrb[0].mxu0
        %v1888 = vadd.f32 %v1727, %v1887
        %v1889 = vpop.f32.mrb[0].mxu0
        %1890 = vmatprep.mubr.bf16.mxu0 %v943
        %1891 = vmatmul.mubr.bf16.gmra.mrb[0].mxu0 %v1013
        %v1892 = vpop.f32.mrb[0].mxu0
        %v1893 = vadd.f32 %v1732, %v1892
        %v1894 = vpop.f32.mrb[0].mxu0
        %v1895 = vpop.f32.mrb[0].mxu0
        %v1896 = vadd.f32 %v1735, %v1895
        %v1897 = vpop.f32.mrb[0].mxu0
        %1898 = vmatprep.mubr.bf16.mxu0 %v944
        %1899 = vmatmul.mubr.bf16.gmra.mrb[0].mxu0 %v1014
        %v1900 = vpop.f32.mrb[0].mxu0
        %v1901 = vadd.f32 %v1740, %v1900
        %v1902 = vpop.f32.mrb[0].mxu0
        %v1903 = vpop.f32.mrb[0].mxu0
        %v1904 = vadd.f32 %v1743, %v1903
        %v1905 = vpop.f32.mrb[0].mxu0
        %1906 = vmatprep.mubr.bf16.mxu0 %v945
        %1907 = vmatmul.mubr.bf16.gmra.mrb[0].mxu0 %v1015
        %v1908 = vpop.f32.mrb[0].mxu0
        %v1909 = vadd.f32 %v1748, %v1908
        %v1910 = vpop.f32.mrb[0].mxu0
        %v1911 = vpop.f32.mrb[0].mxu0
        %v1912 = vadd.f32 %v1751, %v1911
        %v1913 = vpop.f32.mrb[0].mxu0
        %1914 = vmatprep.mubr.bf16.mxu0 %v946
        %1915 = vmatmul.mubr.bf16.gmra.mrb[0].mxu0 %v1016
        %v1916 = vpop.f32.mrb[0].mxu0
        %v1917 = vadd.f32 %v1756, %v1916
        %v1918 = vpop.f32.mrb[0].mxu0
        %v1919 = vpop.f32.mrb[0].mxu0
        %v1920 = vadd.f32 %v1759, %v1919
        %v1921 = vpop.f32.mrb[0].mxu0
        %1922 = vdwg.mxu0
        %1923 = vmatprep.subr.bf16.mxu0 0
        %1924 = vmatpush1.bf16.msra.mxu0 %v1489
        %1925 = vmatprep.subr.bf16.mxu0 0
        %1926 = vmatpush1.bf16.msra.mxu0 %v1490
        %1927 = vmatprep.subr.bf16.mxu0 0
        %1928 = vmatpush1.bf16.msra.mxu0 %v1491
        %1929 = vmatprep.subr.bf16.mxu0 0
        %1930 = vmatpush1.bf16.msra.mxu0 %v1492
        %1931 = vmatprep.subr.bf16.mxu0 0
        %1932 = vmatpush1.bf16.msra.mxu0 %v1493
        %1933 = vmatprep.subr.bf16.mxu0 0
        %1934 = vmatpush1.bf16.msra.mxu0 %v1494
        %1935 = vmatprep.subr.bf16.mxu0 0
        %1936 = vmatpush1.bf16.msra.mxu0 %v1495
        %1937 = vmatprep.subr.bf16.mxu0 0
        %1938 = vmatpush1.bf16.msra.mxu0 %v1496
        %1939 = vmatprep.subr.bf16.mxu0 0
        %1940 = vmatpush1.bf16.msra.mxu0 %v1497
        %1941 = vmatprep.subr.bf16.mxu0 0
        %1942 = vmatpush1.bf16.msra.mxu0 %v1498
        %1943 = vmatprep.subr.bf16.mxu0 0
        %1944 = vmatpush1.bf16.msra.mxu0 %v1499
        %1945 = vmatprep.subr.bf16.mxu0 0
        %1946 = vmatpush1.bf16.msra.mxu0 %v1500
        %1947 = vmatprep.subr.bf16.mxu0 0
        %1948 = vmatpush1.bf16.msra.mxu0 %v1501
        %1949 = vmatprep.subr.bf16.mxu0 0
        %1950 = vmatpush1.bf16.msra.mxu0 %v1502
        %1951 = vmatprep.subr.bf16.mxu0 0
        %1952 = vmatpush1.bf16.msra.mxu0 %v1503
        %1953 = vmatprep.subr.bf16.mxu0 0
        %1954 = vmatpush1.bf16.msra.mxu0 %v1504
        %1955 = vmatprep.mubr.bf16.mxu0 %v1002
        %1956 = vmatmul.mubr.bf16.gmra.mrb[0].mxu0 %v775
        %v1957 = vpop.f32.mrb[0].mxu0
        %v1958 = vadd.f32 %v1797, %v1957
        %v1959 = vpop.f32.mrb[0].mxu0
        %v1960 = vpop.f32.mrb[0].mxu0
        %v1961 = vadd.f32 %v1800, %v1960
        %v1962 = vpop.f32.mrb[0].mxu0
        %1963 = vmatprep.mubr.bf16.mxu0 %v1003
        %1964 = vmatmul.mubr.bf16.gmra.mrb[0].mxu0 %v776
        %v1965 = vpop.f32.mrb[0].mxu0
        %v1966 = vadd.f32 %v1805, %v1965
        %v1967 = vpop.f32.mrb[0].mxu0
        %v1968 = vpop.f32.mrb[0].mxu0
        %v1969 = vadd.f32 %v1808, %v1968
        %v1970 = vpop.f32.mrb[0].mxu0
        %1971 = vmatprep.mubr.bf16.mxu0 %v1004
        %1972 = vmatmul.mubr.bf16.gmra.mrb[0].mxu0 %v777
        %v1973 = vpop.f32.mrb[0].mxu0
        %v1974 = vadd.f32 %v1813, %v1973
        %v1975 = vpop.f32.mrb[0].mxu0
        %v1976 = vpop.f32.mrb[0].mxu0
        %v1977 = vadd.f32 %v1816, %v1976
        %v1978 = vpop.f32.mrb[0].mxu0
        %1979 = vmatprep.mubr.bf16.mxu0 %v1005
        %1980 = vmatmul.mubr.bf16.gmra.mrb[0].mxu0 %v778
        %v1981 = vpop.f32.mrb[0].mxu0
        %v1982 = vadd.f32 %v1821, %v1981
        %v1983 = vpop.f32.mrb[0].mxu0
        %v1984 = vpop.f32.mrb[0].mxu0
        %v1985 = vadd.f32 %v1824, %v1984
        %v1986 = vpop.f32.mrb[0].mxu0
        %1987 = vmatprep.mubr.bf16.mxu0 %v1006
        %1988 = vmatmul.mubr.bf16.gmra.mrb[0].mxu0 %v779
        %v1989 = vpop.f32.mrb[0].mxu0
        %v1990 = vadd.f32 %v1829, %v1989
        %v1991 = vpop.f32.mrb[0].mxu0
        %v1992 = vpop.f32.mrb[0].mxu0
        %v1993 = vadd.f32 %v1832, %v1992
        %v1994 = vpop.f32.mrb[0].mxu0
        %1995 = vmatprep.mubr.bf16.mxu0 %v1007
        %1996 = vmatmul.mubr.bf16.gmra.mrb[0].mxu0 %v780
        %v1997 = vpop.f32.mrb[0].mxu0
        %v1998 = vadd.f32 %v1837, %v1997
        %v1999 = vpop.f32.mrb[0].mxu0
        %v2000 = vpop.f32.mrb[0].mxu0
        %v2001 = vadd.f32 %v1840, %v2000
        %v2002 = vpop.f32.mrb[0].mxu0
        %2003 = vmatprep.mubr.bf16.mxu0 %v1008
        %2004 = vmatmul.mubr.bf16.gmra.mrb[0].mxu0 %v781
        %v2005 = vpop.f32.mrb[0].mxu0
        %v2006 = vadd.f32 %v1845, %v2005
        %v2007 = vpop.f32.mrb[0].mxu0
        %v2008 = vpop.f32.mrb[0].mxu0
        %v2009 = vadd.f32 %v1848, %v2008
        %v2010 = vpop.f32.mrb[0].mxu0
        %2011 = vmatprep.mubr.bf16.mxu0 %v1009
        %2012 = vmatmul.mubr.bf16.gmra.mrb[0].mxu0 %v782
        %v2013 = vpop.f32.mrb[0].mxu0
        %v2014 = vadd.f32 %v1853, %v2013
        %v2015 = vpop.f32.mrb[0].mxu0
        %v2016 = vpop.f32.mrb[0].mxu0
        %v2017 = vadd.f32 %v1856, %v2016
        %v2018 = vpop.f32.mrb[0].mxu0
        %2019 = vmatprep.mubr.bf16.mxu0 %v1010
        %2020 = vmatmul.mubr.bf16.gmra.mrb[0].mxu0 %v783
        %v2021 = vpop.f32.mrb[0].mxu0
        %v2022 = vadd.f32 %v1861, %v2021
        %v2023 = vpop.f32.mrb[0].mxu0
        %v2024 = vpop.f32.mrb[0].mxu0
        %v2025 = vadd.f32 %v1864, %v2024
        %v2026 = vpop.f32.mrb[0].mxu0
        %2027 = vmatprep.mubr.bf16.mxu0 %v1011
        %2028 = vmatmul.mubr.bf16.gmra.mrb[0].mxu0 %v784
        %v2029 = vpop.f32.mrb[0].mxu0
        %v2030 = vadd.f32 %v1869, %v2029
        %v2031 = vpop.f32.mrb[0].mxu0
        %v2032 = vpop.f32.mrb[0].mxu0
        %v2033 = vadd.f32 %v1872, %v2032
        %v2034 = vpop.f32.mrb[0].mxu0
        %2035 = vmatprep.mubr.bf16.mxu0 %v1012
        %2036 = vmatmul.mubr.bf16.gmra.mrb[0].mxu0 %v785
        %v2037 = vpop.f32.mrb[0].mxu0
        %v2038 = vadd.f32 %v1877, %v2037
        %v2039 = vpop.f32.mrb[0].mxu0
        %v2040 = vpop.f32.mrb[0].mxu0
        %v2041 = vadd.f32 %v1880, %v2040
        %v2042 = vpop.f32.mrb[0].mxu0
        %2043 = vmatprep.mubr.bf16.mxu0 %v1013
        %2044 = vmatmul.mubr.bf16.gmra.mrb[0].mxu0 %v786
        %v2045 = vpop.f32.mrb[0].mxu0
        %v2046 = vadd.f32 %v1885, %v2045
        %v2047 = vpop.f32.mrb[0].mxu0
        %v2048 = vpop.f32.mrb[0].mxu0
        %v2049 = vadd.f32 %v1888, %v2048
        %v2050 = vpop.f32.mrb[0].mxu0
        %2051 = vmatprep.mubr.bf16.mxu0 %v1014
        %2052 = vmatmul.mubr.bf16.gmra.mrb[0].mxu0 %v787
        %v2053 = vpop.f32.mrb[0].mxu0
        %v2054 = vadd.f32 %v1893, %v2053
        %v2055 = vpop.f32.mrb[0].mxu0
        %v2056 = vpop.f32.mrb[0].mxu0
        %v2057 = vadd.f32 %v1896, %v2056
        %v2058 = vpop.f32.mrb[0].mxu0
        %2059 = vmatprep.mubr.bf16.mxu0 %v1015
        %2060 = vmatmul.mubr.bf16.gmra.mrb[0].mxu0 %v788
        %v2061 = vpop.f32.mrb[0].mxu0
        %v2062 = vadd.f32 %v1901, %v2061
        %v2063 = vpop.f32.mrb[0].mxu0
        %v2064 = vpop.f32.mrb[0].mxu0
        %v2065 = vadd.f32 %v1904, %v2064
        %v2066 = vpop.f32.mrb[0].mxu0
        %2067 = vmatprep.mubr.bf16.mxu0 %v1016
        %2068 = vmatmul.mubr.bf16.gmra.mrb[0].mxu0 %v789
        %v2069 = vpop.f32.mrb[0].mxu0
        %v2070 = vadd.f32 %v1909, %v2069
        %v2071 = vpop.f32.mrb[0].mxu0
        %v2072 = vpop.f32.mrb[0].mxu0
        %v2073 = vadd.f32 %v1912, %v2072
        %v2074 = vpop.f32.mrb[0].mxu0
        %2075 = vmatprep.mubr.bf16.mxu0 %v1017
        %2076 = vmatmul.mubr.bf16.gmra.mrb[0].mxu0 %v790
        %v2077 = vpop.f32.mrb[0].mxu0
        %v2078 = vadd.f32 %v1917, %v2077
        %v2079 = vpop.f32.mrb[0].mxu0
        %v2080 = vpop.f32.mrb[0].mxu0
        %v2081 = vadd.f32 %v1920, %v2080
        %v2082 = vpop.f32.mrb[0].mxu0
        %2083 = vdwg.mxu0
        %2084 = vmatprep.subr.bf16.mxu0 0
        %2085 = vmatpush1.bf16.msra.mxu0 %v1505
        %2086 = vmatprep.subr.bf16.mxu0 0
        %2087 = vmatpush1.bf16.msra.mxu0 %v1506
        %2088 = vmatprep.subr.bf16.mxu0 0
        %2089 = vmatpush1.bf16.msra.mxu0 %v1507
        %2090 = vmatprep.subr.bf16.mxu0 0
        %2091 = vmatpush1.bf16.msra.mxu0 %v1508
        %2092 = vmatprep.subr.bf16.mxu0 0
        %2093 = vmatpush1.bf16.msra.mxu0 %v1509
        %2094 = vmatprep.subr.bf16.mxu0 0
        %2095 = vmatpush1.bf16.msra.mxu0 %v1510
        %2096 = vmatprep.subr.bf16.mxu0 0
        %2097 = vmatpush1.bf16.msra.mxu0 %v1511
        %2098 = vmatprep.subr.bf16.mxu0 0
        %2099 = vmatpush1.bf16.msra.mxu0 %v1512
        %2100 = vmatprep.subr.bf16.mxu0 0
        %2101 = vmatpush1.bf16.msra.mxu0 %v1513
        %2102 = vmatprep.subr.bf16.mxu0 0
        %2103 = vmatpush1.bf16.msra.mxu0 %v1514
        %2104 = vmatprep.subr.bf16.mxu0 0
        %2105 = vmatpush1.bf16.msra.mxu0 %v1515
        %2106 = vmatprep.subr.bf16.mxu0 0
        %2107 = vmatpush1.bf16.msra.mxu0 %v1516
        %2108 = vmatprep.subr.bf16.mxu0 0
        %2109 = vmatpush1.bf16.msra.mxu0 %v1517
        %2110 = vmatprep.subr.bf16.mxu0 0
        %2111 = vmatpush1.bf16.msra.mxu0 %v1518
        %2112 = vmatprep.subr.bf16.mxu0 0
        %2113 = vmatpush1.bf16.msra.mxu0 %v1519
        %2114 = vmatprep.subr.bf16.mxu0 0
        %2115 = vmatpush1.bf16.msra.mxu0 %v1520
        %2116 = vmatprep.mubr.bf16.mxu0 %v776
        %2117 = vmatmul.mubr.bf16.gmra.mrb[0].mxu0 %v932
        %v2118 = vpop.f32.mrb[0].mxu0
        %v2119 = vadd.f32 %v1958, %v2118
        %v2120 = vpop.f32.mrb[0].mxu0
        %v2121 = vpop.f32.mrb[0].mxu0
        %v2122 = vadd.f32 %v1961, %v2121
        %v2123 = vpop.f32.mrb[0].mxu0
        %2124 = vmatprep.mubr.bf16.mxu0 %v777
        %2125 = vmatmul.mubr.bf16.gmra.mrb[0].mxu0 %v933
        %v2126 = vpop.f32.mrb[0].mxu0
        %v2127 = vadd.f32 %v1966, %v2126
        %v2128 = vpop.f32.mrb[0].mxu0
        %v2129 = vpop.f32.mrb[0].mxu0
        %v2130 = vadd.f32 %v1969, %v2129
        %v2131 = vpop.f32.mrb[0].mxu0
        %2132 = vmatprep.mubr.bf16.mxu0 %v778
        %2133 = vmatmul.mubr.bf16.gmra.mrb[0].mxu0 %v934
        %v2134 = vpop.f32.mrb[0].mxu0
        %v2135 = vadd.f32 %v1974, %v2134
        %v2136 = vpop.f32.mrb[0].mxu0
        %v2137 = vpop.f32.mrb[0].mxu0
        %v2138 = vadd.f32 %v1977, %v2137
        %v2139 = vpop.f32.mrb[0].mxu0
        %2140 = vmatprep.mubr.bf16.mxu0 %v779
        %2141 = vmatmul.mubr.bf16.gmra.mrb[0].mxu0 %v935
        %v2142 = vpop.f32.mrb[0].mxu0
        %v2143 = vadd.f32 %v1982, %v2142
        %v2144 = vpop.f32.mrb[0].mxu0
        %v2145 = vpop.f32.mrb[0].mxu0
        %v2146 = vadd.f32 %v1985, %v2145
        %v2147 = vpop.f32.mrb[0].mxu0
        %2148 = vmatprep.mubr.bf16.mxu0 %v780
        %2149 = vmatmul.mubr.bf16.gmra.mrb[0].mxu0 %v936
        %v2150 = vpop.f32.mrb[0].mxu0
        %v2151 = vadd.f32 %v1990, %v2150
        %v2152 = vpop.f32.mrb[0].mxu0
        %v2153 = vpop.f32.mrb[0].mxu0
        %v2154 = vadd.f32 %v1993, %v2153
        %v2155 = vpop.f32.mrb[0].mxu0
        %2156 = vmatprep.mubr.bf16.mxu0 %v781
        %2157 = vmatmul.mubr.bf16.gmra.mrb[0].mxu0 %v937
        %v2158 = vpop.f32.mrb[0].mxu0
        %v2159 = vadd.f32 %v1998, %v2158
        %v2160 = vpop.f32.mrb[0].mxu0
        %v2161 = vpop.f32.mrb[0].mxu0
        %v2162 = vadd.f32 %v2001, %v2161
        %v2163 = vpop.f32.mrb[0].mxu0
        %2164 = vmatprep.mubr.bf16.mxu0 %v782
        %2165 = vmatmul.mubr.bf16.gmra.mrb[0].mxu0 %v938
        %v2166 = vpop.f32.mrb[0].mxu0
        %v2167 = vadd.f32 %v2006, %v2166
        %v2168 = vpop.f32.mrb[0].mxu0
        %v2169 = vpop.f32.mrb[0].mxu0
        %v2170 = vadd.f32 %v2009, %v2169
        %v2171 = vpop.f32.mrb[0].mxu0
        %2172 = vmatprep.mubr.bf16.mxu0 %v783
        %2173 = vmatmul.mubr.bf16.gmra.mrb[0].mxu0 %v939
        %v2174 = vpop.f32.mrb[0].mxu0
        %v2175 = vadd.f32 %v2014, %v2174
        %v2176 = vpop.f32.mrb[0].mxu0
        %v2177 = vpop.f32.mrb[0].mxu0
        %v2178 = vadd.f32 %v2017, %v2177
        %v2179 = vpop.f32.mrb[0].mxu0
        %2180 = vmatprep.mubr.bf16.mxu0 %v784
        %2181 = vmatmul.mubr.bf16.gmra.mrb[0].mxu0 %v940
        %v2182 = vpop.f32.mrb[0].mxu0
        %v2183 = vadd.f32 %v2022, %v2182
        %v2184 = vpop.f32.mrb[0].mxu0
        %v2185 = vpop.f32.mrb[0].mxu0
        %v2186 = vadd.f32 %v2025, %v2185
        %v2187 = vpop.f32.mrb[0].mxu0
        %2188 = vmatprep.mubr.bf16.mxu0 %v785
        %2189 = vmatmul.mubr.bf16.gmra.mrb[0].mxu0 %v941
        %v2190 = vpop.f32.mrb[0].mxu0
        %v2191 = vadd.f32 %v2030, %v2190
        %v2192 = vpop.f32.mrb[0].mxu0
        %v2193 = vpop.f32.mrb[0].mxu0
        %v2194 = vadd.f32 %v2033, %v2193
        %v2195 = vpop.f32.mrb[0].mxu0
        %2196 = vmatprep.mubr.bf16.mxu0 %v786
        %2197 = vmatmul.mubr.bf16.gmra.mrb[0].mxu0 %v942
        %v2198 = vpop.f32.mrb[0].mxu0
        %v2199 = vadd.f32 %v2038, %v2198
        %v2200 = vpop.f32.mrb[0].mxu0
        %v2201 = vpop.f32.mrb[0].mxu0
        %v2202 = vadd.f32 %v2041, %v2201
        %v2203 = vpop.f32.mrb[0].mxu0
        %2204 = vmatprep.mubr.bf16.mxu0 %v787
        %2205 = vmatmul.mubr.bf16.gmra.mrb[0].mxu0 %v943
        %v2206 = vpop.f32.mrb[0].mxu0
        %v2207 = vadd.f32 %v2046, %v2206
        %v2208 = vpop.f32.mrb[0].mxu0
        %v2209 = vpop.f32.mrb[0].mxu0
        %v2210 = vadd.f32 %v2049, %v2209
        %v2211 = vpop.f32.mrb[0].mxu0
        %2212 = vmatprep.mubr.bf16.mxu0 %v788
        %2213 = vmatmul.mubr.bf16.gmra.mrb[0].mxu0 %v944
        %v2214 = vpop.f32.mrb[0].mxu0
        %v2215 = vadd.f32 %v2054, %v2214
        %v2216 = vpop.f32.mrb[0].mxu0
        %v2217 = vpop.f32.mrb[0].mxu0
        %v2218 = vadd.f32 %v2057, %v2217
        %v2219 = vpop.f32.mrb[0].mxu0
        %2220 = vmatprep.mubr.bf16.mxu0 %v789
        %2221 = vmatmul.mubr.bf16.gmra.mrb[0].mxu0 %v945
        %v2222 = vpop.f32.mrb[0].mxu0
        %v2223 = vadd.f32 %v2062, %v2222
        %v2224 = vpop.f32.mrb[0].mxu0
        %v2225 = vpop.f32.mrb[0].mxu0
        %v2226 = vadd.f32 %v2065, %v2225
        %v2227 = vpop.f32.mrb[0].mxu0
        %2228 = vmatprep.mubr.bf16.mxu0 %v790
        %2229 = vmatmul.mubr.bf16.gmra.mrb[0].mxu0 %v946
        %v2230 = vpop.f32.mrb[0].mxu0
        %v2231 = vadd.f32 %v2070, %v2230
        %v2232 = vpop.f32.mrb[0].mxu0
        %v2233 = vpop.f32.mrb[0].mxu0
        %v2234 = vadd.f32 %v2073, %v2233
        %v2235 = vpop.f32.mrb[0].mxu0
        %2236 = vmatprep.mubr.bf16.mxu0 0
        %2237 = vmatmul.mubr.bf16.gmra.mrb[0].mxu0 %v930
        %v2238 = vpop.f32.mrb[0].mxu0
        %v2239 = vadd.f32 %v2078, %v2238
        %v2240 = vpop.f32.mrb[0].mxu0
        %v2241 = vpop.f32.mrb[0].mxu0
        %v2242 = vadd.f32 %v2081, %v2241
        %v2243 = vpop.f32.mrb[0].mxu0
        %2244 = vdwg.mxu0
        %2245 = vmatprep.subr.bf16.mxu0 0
        %2246 = vmatpush1.bf16.msra.mxu0 %v1521
        %2247 = vmatprep.subr.bf16.mxu0 0
        %2248 = vmatpush1.bf16.msra.mxu0 %v1522
        %2249 = vmatprep.subr.bf16.mxu0 0
        %2250 = vmatpush1.bf16.msra.mxu0 %v1523
        %2251 = vmatprep.subr.bf16.mxu0 0
        %2252 = vmatpush1.bf16.msra.mxu0 %v1524
        %2253 = vmatprep.subr.bf16.mxu0 0
        %2254 = vmatpush1.bf16.msra.mxu0 %v1525
        %2255 = vmatprep.subr.bf16.mxu0 0
        %2256 = vmatpush1.bf16.msra.mxu0 %v1526
        %2257 = vmatprep.subr.bf16.mxu0 0
        %2258 = vmatpush1.bf16.msra.mxu0 %v1527
        %2259 = vmatprep.subr.bf16.mxu0 0
        %2260 = vmatpush1.bf16.msra.mxu0 %v1528
        %2261 = vmatprep.subr.bf16.mxu0 0
        %2262 = vmatpush1.bf16.msra.mxu0 0
        %2263 = vmatprep.subr.bf16.mxu0 0
        %2264 = vmatpush1.bf16.msra.mxu0 0
        %2265 = vmatprep.subr.bf16.mxu0 0
        %2266 = vmatpush1.bf16.msra.mxu0 0
        %2267 = vmatprep.subr.bf16.mxu0 0
        %2268 = vmatpush1.bf16.msra.mxu0 0
        %2269 = vmatprep.subr.bf16.mxu0 0
        %2270 = vmatpush1.bf16.msra.mxu0 0
        %2271 = vmatprep.subr.bf16.mxu0 0
        %2272 = vmatpush1.bf16.msra.mxu0 0
        %2273 = vmatprep.subr.bf16.mxu0 0
        %2274 = vmatpush1.bf16.msra.mxu0 0
        %2275 = vmatprep.subr.bf16.mxu0 0
        %2276 = vmatpush1.bf16.msra.mxu0 0
        %2277 = vmatprep.mubr.bf16.mxu0 0
        %2278 = vmatmul.mubr.bf16.gmra.mrb[0].mxu0 %v1003
        %v2279 = vpop.f32.mrb[0].mxu0
        %v2280 = vadd.f32 %v2119, %v2279
        %v2281 = vpop.f32.mrb[0].mxu0
        %v2282 = vpop.f32.mrb[0].mxu0
        %v2283 = vadd.f32 %v2122, %v2282
        %v2284 = vpop.f32.mrb[0].mxu0
        %2285 = vmatprep.mubr.bf16.mxu0 0
        %2286 = vmatmul.mubr.bf16.gmra.mrb[0].mxu0 %v1004
        %v2287 = vpop.f32.mrb[0].mxu0
        %v2288 = vadd.f32 %v2127, %v2287
        %v2289 = vpop.f32.mrb[0].mxu0
        %v2290 = vpop.f32.mrb[0].mxu0
        %v2291 = vadd.f32 %v2130, %v2290
        %v2292 = vpop.f32.mrb[0].mxu0
        %2293 = vmatprep.mubr.bf16.mxu0 0
        %2294 = vmatmul.mubr.bf16.gmra.mrb[0].mxu0 %v1005
        %v2295 = vpop.f32.mrb[0].mxu0
        %v2296 = vadd.f32 %v2135, %v2295
        %v2297 = vpop.f32.mrb[0].mxu0
        %v2298 = vpop.f32.mrb[0].mxu0
        %v2299 = vadd.f32 %v2138, %v2298
        %v2300 = vpop.f32.mrb[0].mxu0
        %2301 = vmatprep.mubr.bf16.mxu0 0
        %2302 = vmatmul.mubr.bf16.gmra.mrb[0].mxu0 %v1006
        %v2303 = vpop.f32.mrb[0].mxu0
        %v2304 = vadd.f32 %v2143, %v2303
        %v2305 = vpop.f32.mrb[0].mxu0
        %v2306 = vpop.f32.mrb[0].mxu0
        %v2307 = vadd.f32 %v2146, %v2306
        %v2308 = vpop.f32.mrb[0].mxu0
        %2309 = vmatprep.mubr.bf16.mxu0 0
        %2310 = vmatmul.mubr.bf16.gmra.mrb[0].mxu0 %v1007
        %v2311 = vpop.f32.mrb[0].mxu0
        %v2312 = vadd.f32 %v2151, %v2311
        %v2313 = vpop.f32.mrb[0].mxu0
        %v2314 = vpop.f32.mrb[0].mxu0
        %v2315 = vadd.f32 %v2154, %v2314
        %v2316 = vpop.f32.mrb[0].mxu0
        %2317 = vmatprep.mubr.bf16.mxu0 0
        %2318 = vmatmul.mubr.bf16.gmra.mrb[0].mxu0 %v1008
        %v2319 = vpop.f32.mrb[0].mxu0
        %v2320 = vadd.f32 %v2159, %v2319
        %v2321 = vpop.f32.mrb[0].mxu0
        %v2322 = vpop.f32.mrb[0].mxu0
        %v2323 = vadd.f32 %v2162, %v2322
        %v2324 = vpop.f32.mrb[0].mxu0
        %2325 = vmatprep.mubr.bf16.mxu0 0
        %2326 = vmatmul.mubr.bf16.gmra.mrb[0].mxu0 %v1009
        %v2327 = vpop.f32.mrb[0].mxu0
        %v2328 = vadd.f32 %v2167, %v2327
        %v2329 = vpop.f32.mrb[0].mxu0
        %v2330 = vpop.f32.mrb[0].mxu0
        %v2331 = vadd.f32 %v2170, %v2330
        %v2332 = vpop.f32.mrb[0].mxu0
        %2333 = vmatprep.mubr.bf16.mxu0 0
        %2334 = vmatmul.mubr.bf16.gmra.mrb[0].mxu0 %v1010
        %v2335 = vpop.f32.mrb[0].mxu0
        %v2336 = vadd.f32 %v2175, %v2335
        %v2337 = vpop.f32.mrb[0].mxu0
        %v2338 = vpop.f32.mrb[0].mxu0
        %v2339 = vadd.f32 %v2178, %v2338
        %v2340 = vpop.f32.mrb[0].mxu0
        %2341 = vmatprep.mubr.bf16.mxu0 0
        %2342 = vmatmul.mubr.bf16.gmra.mrb[0].mxu0 %v1011
        %v2343 = vpop.f32.mrb[0].mxu0
        %v2344 = vadd.f32 %v2183, %v2343
        %v2345 = vpop.f32.mrb[0].mxu0
        %v2346 = vpop.f32.mrb[0].mxu0
        %v2347 = vadd.f32 %v2186, %v2346
        %v2348 = vpop.f32.mrb[0].mxu0
        %2349 = vmatprep.mubr.bf16.mxu0 0
        %2350 = vmatmul.mubr.bf16.gmra.mrb[0].mxu0 %v1012
        %v2351 = vpop.f32.mrb[0].mxu0
        %v2352 = vadd.f32 %v2191, %v2351
        %v2353 = vpop.f32.mrb[0].mxu0
        %v2354 = vpop.f32.mrb[0].mxu0
        %v2355 = vadd.f32 %v2194, %v2354
        %v2356 = vpop.f32.mrb[0].mxu0
        %2357 = vmatprep.mubr.bf16.mxu0 0
        %2358 = vmatmul.mubr.bf16.gmra.mrb[0].mxu0 %v1013
        %v2359 = vpop.f32.mrb[0].mxu0
        %v2360 = vadd.f32 %v2199, %v2359
        %v2361 = vpop.f32.mrb[0].mxu0
        %v2362 = vpop.f32.mrb[0].mxu0
        %v2363 = vadd.f32 %v2202, %v2362
        %v2364 = vpop.f32.mrb[0].mxu0
        %2365 = vmatprep.mubr.bf16.mxu0 0
        %2366 = vmatmul.mubr.bf16.gmra.mrb[0].mxu0 %v1014
        %v2367 = vpop.f32.mrb[0].mxu0
        %v2368 = vadd.f32 %v2207, %v2367
        %v2369 = vpop.f32.mrb[0].mxu0
        %v2370 = vpop.f32.mrb[0].mxu0
        %v2371 = vadd.f32 %v2210, %v2370
        %v2372 = vpop.f32.mrb[0].mxu0
        %2373 = vmatprep.mubr.bf16.mxu0 0
        %2374 = vmatmul.mubr.bf16.gmra.mrb[0].mxu0 %v1015
        %v2375 = vpop.f32.mrb[0].mxu0
        %v2376 = vadd.f32 %v2215, %v2375
        %v2377 = vpop.f32.mrb[0].mxu0
        %v2378 = vpop.f32.mrb[0].mxu0
        %v2379 = vadd.f32 %v2218, %v2378
        %v2380 = vpop.f32.mrb[0].mxu0
        %2381 = vmatprep.mubr.bf16.mxu0 0
        %2382 = vmatmul.mubr.bf16.gmra.mrb[0].mxu0 %v1016
        %v2383 = vpop.f32.mrb[0].mxu0
        %v2384 = vadd.f32 %v2223, %v2383
        %v2385 = vpop.f32.mrb[0].mxu0
        %v2386 = vpop.f32.mrb[0].mxu0
        %v2387 = vadd.f32 %v2226, %v2386
        %v2388 = vpop.f32.mrb[0].mxu0
        %2389 = vmatprep.mubr.bf16.mxu0 0
        %2390 = vmatmul.mubr.bf16.gmra.mrb[0].mxu0 %v1017
        %v2391 = vpop.f32.mrb[0].mxu0
        %v2392 = vadd.f32 %v2231, %v2391
        %v2393 = vpop.f32.mrb[0].mxu0
        %v2394 = vpop.f32.mrb[0].mxu0
        %v2395 = vadd.f32 %v2234, %v2394
        %v2396 = vpop.f32.mrb[0].mxu0
        %2397 = vmatprep.mubr.bf16.mxu0 0
        %2398 = vmatmul.mubr.bf16.gmra.mrb[0].mxu0 %v1001
        %v2399 = vpop.f32.mrb[0].mxu0
        %v2400 = vadd.f32 %v2239, %v2399
        %v2401 = vpop.f32.mrb[0].mxu0
        %v2402 = vpop.f32.mrb[0].mxu0
        %v2403 = vadd.f32 %v2242, %v2402
        %v2404 = vpop.f32.mrb[0].mxu0
        %2405 = vdwg.mxu0
        %v2406 = vmax.f32 %v2280, 0.0
        %v2407 = vmax.f32 %v2283, 0.0
        %v2408 = vmax.f32 %v2288, 0.0
        %v2409 = vmax.f32 %v2291, 0.0
        %v2410 = vmax.f32 %v2296, 0.0
        %v2411 = vmax.f32 %v2299, 0.0
        %v2412 = vmax.f32 %v2304, 0.0
        %v2413 = vmax.f32 %v2307, 0.0
        %v2414 = vmax.f32 %v2312, 0.0
        %v2415 = vmax.f32 %v2315, 0.0
        %v2416 = vmax.f32 %v2320, 0.0
        %v2417 = vmax.f32 %v2323, 0.0
        %v2418 = vmax.f32 %v2328, 0.0
        %v2419 = vmax.f32 %v2331, 0.0
        %v2420 = vmax.f32 %v2336, 0.0
        %v2421 = vmax.f32 %v2339, 0.0
        %v2422 = vmax.f32 %v2344, 0.0
        %v2423 = vmax.f32 %v2347, 0.0
        %v2424 = vmax.f32 %v2352, 0.0
        %v2425 = vmax.f32 %v2355, 0.0
        %v2426 = vmax.f32 %v2360, 0.0
        %v2427 = vmax.f32 %v2363, 0.0
        %v2428 = vmax.f32 %v2368, 0.0
        %v2429 = vmax.f32 %v2371, 0.0
        %v2430 = vmax.f32 %v2376, 0.0
        %v2431 = vmax.f32 %v2379, 0.0
        %v2432 = vmax.f32 %v2384, 0.0
        %v2433 = vmax.f32 %v2387, 0.0
        %v2434 = vmax.f32 %v2392, 0.0
        %v2435 = vmax.f32 %v2395, 0.0
        %v2436 = vmax.f32 %v2400, 0.0
        %v2437 = vmax.f32 %v2403, 0.0
        %v2438 = vpack.c.bf16 %v2407, %v2406
        %v2439 = vpack.c.bf16 %v2409, %v2408
        %v2440 = vpack.c.bf16 %v2411, %v2410
        %v2441 = vpack.c.bf16 %v2413, %v2412
        %v2442 = vpack.c.bf16 %v2415, %v2414
        %v2443 = vpack.c.bf16 %v2417, %v2416
        %v2444 = vpack.c.bf16 %v2419, %v2418
        %v2445 = vpack.c.bf16 %v2421, %v2420
        %v2446 = vpack.c.bf16 %v2423, %v2422
        %v2447 = vpack.c.bf16 %v2425, %v2424
        %v2448 = vpack.c.bf16 %v2427, %v2426
        %v2449 = vpack.c.bf16 %v2429, %v2428
        %v2450 = vpack.c.bf16 %v2431, %v2430
        %v2451 = vpack.c.bf16 %v2433, %v2432
        %v2452 = vpack.c.bf16 %v2435, %v2434
        %v2453 = vpack.c.bf16 %v2437, %v2436
        %v2454 = vld [vmem:[#allocation8] sm:$0xf]
        %v2455 = vld [vmem:[#allocation8 + $0x4] sm:$0xf]
        %v2456 = vld [vmem:[#allocation8 + $0x8] sm:$0xf]
        %v2457 = vld [vmem:[#allocation8 + $0xc] sm:$0xf]
        %v2458 = vld [vmem:[#allocation8 + $0x10] sm:$0xf]
        %v2459 = vld [vmem:[#allocation8 + $0x14] sm:$0xf]
        %v2460 = vld [vmem:[#allocation8 + $0x18] sm:$0xf]
        %v2461 = vld [vmem:[#allocation8 + $0x1c] sm:$0xf]
        %v2462 = vld [vmem:[#allocation8 + $0x20] sm:$0xf]
        %v2463 = vld [vmem:[#allocation8 + $0x24] sm:$0xf]
        %v2464 = vld [vmem:[#allocation8 + $0x28] sm:$0xf]
        %v2465 = vld [vmem:[#allocation8 + $0x2c] sm:$0xf]
        %v2466 = vld [vmem:[#allocation8 + $0x30] sm:$0xf]
        %v2467 = vld [vmem:[#allocation8 + $0x34] sm:$0xf]
        %v2468 = vld [vmem:[#allocation8 + $0x38] sm:$0xf]
        %v2469 = vld [vmem:[#allocation8 + $0x3c] sm:$0xf]
        %v2470 = vld [vmem:[%s7] sm:$0x1]
        %v2472 = vlaneseq
        %v2473 = vshrl.u32 %v2472, 7
        %v2474 = vsub.s32 0, %v2473
        %v2475 = vrot.slane %v2470, %v2474
        %v2493 = vunpack.c.l.b16 %v2454
        %v2494 = vunpack.c.l.b16 %v2455
        %v2495 = vunpack.c.l.b16 %v2456
        %v2496 = vunpack.c.l.b16 %v2457
        %v2497 = vunpack.c.l.b16 %v2458
        %v2498 = vunpack.c.l.b16 %v2459
        %v2499 = vunpack.c.l.b16 %v2460
        %v2500 = vunpack.c.l.b16 %v2461
        %v2501 = vunpack.c.l.b16 %v2462
        %v2502 = vunpack.c.l.b16 %v2463
        %v2503 = vunpack.c.l.b16 %v2464
        %v2504 = vunpack.c.l.b16 %v2465
        %v2505 = vunpack.c.l.b16 %v2466
        %v2506 = vunpack.c.l.b16 %v2467
        %v2507 = vunpack.c.l.b16 %v2468
        %v2508 = vunpack.c.l.b16 %v2469
        %v2509 = vpack.c.b16 %v2494, %v2493
        %v2510 = vpack.c.b16 %v2496, %v2495
        %v2511 = vpack.c.b16 %v2498, %v2497
        %v2512 = vpack.c.b16 %v2500, %v2499
        %v2513 = vpack.c.b16 %v2502, %v2501
        %v2514 = vpack.c.b16 %v2504, %v2503
        %v2515 = vpack.c.b16 %v2506, %v2505
        %v2516 = vpack.c.b16 %v2508, %v2507
        %2525 = vmatprep.subr.bf16.mxu0 0
        %2526 = vmatpush1.bf16.msra.mxu0 %v2509
        %2527 = vmatprep.subr.bf16.mxu0 0
        %2528 = vmatpush1.bf16.msra.mxu0 %v2510
        %2529 = vmatprep.subr.bf16.mxu0 0
        %2530 = vmatpush1.bf16.msra.mxu0 %v2511
        %2531 = vmatprep.subr.bf16.mxu0 0
        %2532 = vmatpush1.bf16.msra.mxu0 %v2512
        %2533 = vmatprep.subr.bf16.mxu0 0
        %2534 = vmatpush1.bf16.msra.mxu0 %v2513
        %2535 = vmatprep.subr.bf16.mxu0 0
        %2536 = vmatpush1.bf16.msra.mxu0 %v2514
        %2537 = vmatprep.subr.bf16.mxu0 0
        %2538 = vmatpush1.bf16.msra.mxu0 %v2515
        %2539 = vmatprep.subr.bf16.mxu0 0
        %2540 = vmatpush1.bf16.msra.mxu0 %v2516
        %2541 = vmatprep.subr.bf16.mxu0 0
        %2542 = vmatpush1.bf16.msra.mxu0 0
        %2543 = vmatprep.subr.bf16.mxu0 0
        %2544 = vmatpush1.bf16.msra.mxu0 0
        %2545 = vmatprep.subr.bf16.mxu0 0
        %2546 = vmatpush1.bf16.msra.mxu0 0
        %2547 = vmatprep.subr.bf16.mxu0 0
        %2548 = vmatpush1.bf16.msra.mxu0 0
        %2549 = vmatprep.subr.bf16.mxu0 0
        %2550 = vmatpush1.bf16.msra.mxu0 0
        %2551 = vmatprep.subr.bf16.mxu0 0
        %2552 = vmatpush1.bf16.msra.mxu0 0
        %2553 = vmatprep.subr.bf16.mxu0 0
        %2554 = vmatpush1.bf16.msra.mxu0 0
        %2555 = vmatprep.subr.bf16.mxu0 0
        %2556 = vmatpush1.bf16.msra.mxu0 0
        %2557 = vmatprep.mubr.bf16.mxu0 0
        %2558 = vmatmul.mubr.bf16.gmra.mrb[0].mxu0 %v2438
        %v2559 = vpop.f32.mrb[0].mxu0
        %v2560 = vadd.f32 %v2475, %v2559
        %v2561 = vpop.f32.mrb[0].mxu0
        %v2562 = vpop.f32.mrb[0].mxu0
        %v2563 = vadd.f32 %v2475, %v2562
        %v2564 = vpop.f32.mrb[0].mxu0
        %2565 = vmatprep.mubr.bf16.mxu0 0
        %2566 = vmatmul.mubr.bf16.gmra.mrb[0].mxu0 %v2439
        %v2567 = vpop.f32.mrb[0].mxu0
        %v2568 = vadd.f32 %v2475, %v2567
        %v2569 = vpop.f32.mrb[0].mxu0
        %v2570 = vpop.f32.mrb[0].mxu0
        %v2571 = vadd.f32 %v2475, %v2570
        %v2572 = vpop.f32.mrb[0].mxu0
        %2573 = vmatprep.mubr.bf16.mxu0 0
        %2574 = vmatmul.mubr.bf16.gmra.mrb[0].mxu0 %v2440
        %v2575 = vpop.f32.mrb[0].mxu0
        %v2576 = vadd.f32 %v2475, %v2575
        %v2577 = vpop.f32.mrb[0].mxu0
        %v2578 = vpop.f32.mrb[0].mxu0
        %v2579 = vadd.f32 %v2475, %v2578
        %v2580 = vpop.f32.mrb[0].mxu0
        %2581 = vmatprep.mubr.bf16.mxu0 0
        %2582 = vmatmul.mubr.bf16.gmra.mrb[0].mxu0 %v2441
        %v2583 = vpop.f32.mrb[0].mxu0
        %v2584 = vadd.f32 %v2475, %v2583
        %v2585 = vpop.f32.mrb[0].mxu0
        %v2586 = vpop.f32.mrb[0].mxu0
        %v2587 = vadd.f32 %v2475, %v2586
        %v2588 = vpop.f32.mrb[0].mxu0
        %2589 = vmatprep.mubr.bf16.mxu0 0
        %2590 = vmatmul.mubr.bf16.gmra.mrb[0].mxu0 %v2442
        %v2591 = vpop.f32.mrb[0].mxu0
        %v2592 = vadd.f32 %v2475, %v2591
        %v2593 = vpop.f32.mrb[0].mxu0
        %v2594 = vpop.f32.mrb[0].mxu0
        %v2595 = vadd.f32 %v2475, %v2594
        %v2596 = vpop.f32.mrb[0].mxu0
        %2597 = vmatprep.mubr.bf16.mxu0 0
        %2598 = vmatmul.mubr.bf16.gmra.mrb[0].mxu0 %v2443
        %v2599 = vpop.f32.mrb[0].mxu0
        %v2600 = vadd.f32 %v2475, %v2599
        %v2601 = vpop.f32.mrb[0].mxu0
        %v2602 = vpop.f32.mrb[0].mxu0
        %v2603 = vadd.f32 %v2475, %v2602
        %v2604 = vpop.f32.mrb[0].mxu0
        %2605 = vmatprep.mubr.bf16.mxu0 0
        %2606 = vmatmul.mubr.bf16.gmra.mrb[0].mxu0 %v2444
        %v2607 = vpop.f32.mrb[0].mxu0
        %v2608 = vadd.f32 %v2475, %v2607
        %v2609 = vpop.f32.mrb[0].mxu0
        %v2610 = vpop.f32.mrb[0].mxu0
        %v2611 = vadd.f32 %v2475, %v2610
        %v2612 = vpop.f32.mrb[0].mxu0
        %2613 = vmatprep.mubr.bf16.mxu0 0
        %2614 = vmatmul.mubr.bf16.gmra.mrb[0].mxu0 %v2445
        %v2615 = vpop.f32.mrb[0].mxu0
        %v2616 = vadd.f32 %v2475, %v2615
        %v2617 = vpop.f32.mrb[0].mxu0
        %v2618 = vpop.f32.mrb[0].mxu0
        %v2619 = vadd.f32 %v2475, %v2618
        %v2620 = vpop.f32.mrb[0].mxu0
        %2621 = vmatprep.mubr.bf16.mxu0 0
        %2622 = vmatmul.mubr.bf16.gmra.mrb[0].mxu0 %v2446
        %v2623 = vpop.f32.mrb[0].mxu0
        %v2624 = vadd.f32 %v2475, %v2623
        %v2625 = vpop.f32.mrb[0].mxu0
        %v2626 = vpop.f32.mrb[0].mxu0
        %v2627 = vadd.f32 %v2475, %v2626
        %v2628 = vpop.f32.mrb[0].mxu0
        %2629 = vmatprep.mubr.bf16.mxu0 0
        %2630 = vmatmul.mubr.bf16.gmra.mrb[0].mxu0 %v2447
        %v2631 = vpop.f32.mrb[0].mxu0
        %v2632 = vadd.f32 %v2475, %v2631
        %v2633 = vpop.f32.mrb[0].mxu0
        %v2634 = vpop.f32.mrb[0].mxu0
        %v2635 = vadd.f32 %v2475, %v2634
        %v2636 = vpop.f32.mrb[0].mxu0
        %2637 = vmatprep.mubr.bf16.mxu0 0
        %2638 = vmatmul.mubr.bf16.gmra.mrb[0].mxu0 %v2448
        %v2639 = vpop.f32.mrb[0].mxu0
        %v2640 = vadd.f32 %v2475, %v2639
        %v2641 = vpop.f32.mrb[0].mxu0
        %v2642 = vpop.f32.mrb[0].mxu0
        %v2643 = vadd.f32 %v2475, %v2642
        %v2644 = vpop.f32.mrb[0].mxu0
        %2645 = vmatprep.mubr.bf16.mxu0 0
        %2646 = vmatmul.mubr.bf16.gmra.mrb[0].mxu0 %v2449
        %v2647 = vpop.f32.mrb[0].mxu0
        %v2648 = vadd.f32 %v2475, %v2647
        %v2649 = vpop.f32.mrb[0].mxu0
        %v2650 = vpop.f32.mrb[0].mxu0
        %v2651 = vadd.f32 %v2475, %v2650
        %v2652 = vpop.f32.mrb[0].mxu0
        %2653 = vmatprep.mubr.bf16.mxu0 0
        %2654 = vmatmul.mubr.bf16.gmra.mrb[0].mxu0 %v2450
        %v2655 = vpop.f32.mrb[0].mxu0
        %v2656 = vadd.f32 %v2475, %v2655
        %v2657 = vpop.f32.mrb[0].mxu0
        %v2658 = vpop.f32.mrb[0].mxu0
        %v2659 = vadd.f32 %v2475, %v2658
        %v2660 = vpop.f32.mrb[0].mxu0
        %2661 = vmatprep.mubr.bf16.mxu0 0
        %2662 = vmatmul.mubr.bf16.gmra.mrb[0].mxu0 %v2451
        %v2663 = vpop.f32.mrb[0].mxu0
        %v2664 = vadd.f32 %v2475, %v2663
        %v2665 = vpop.f32.mrb[0].mxu0
        %v2666 = vpop.f32.mrb[0].mxu0
        %v2667 = vadd.f32 %v2475, %v2666
        %v2668 = vpop.f32.mrb[0].mxu0
        %2669 = vmatprep.mubr.bf16.mxu0 0
        %2670 = vmatmul.mubr.bf16.gmra.mrb[0].mxu0 %v2452
        %v2671 = vpop.f32.mrb[0].mxu0
        %v2672 = vadd.f32 %v2475, %v2671
        %v2673 = vpop.f32.mrb[0].mxu0
        %v2674 = vpop.f32.mrb[0].mxu0
        %v2675 = vadd.f32 %v2475, %v2674
        %v2676 = vpop.f32.mrb[0].mxu0
        %2677 = vmatprep.mubr.bf16.mxu0 0
        %2678 = vmatmul.mubr.bf16.gmra.mrb[0].mxu0 %v2453
        %v2679 = vpop.f32.mrb[0].mxu0
        %v2680 = vadd.f32 %v2475, %v2679
        %v2681 = vpop.f32.mrb[0].mxu0
        %v2682 = vpop.f32.mrb[0].mxu0
        %v2683 = vadd.f32 %v2475, %v2682
        %v2684 = vpop.f32.mrb[0].mxu0
        %2685 = vdwg.mxu0
        %v2686 = vld [vmem:[#allocation10] sm:$0xf]
        %v2687 = vld [vmem:[#allocation10 + $0x4] sm:$0xf]
        %v2688 = vld [vmem:[#allocation10 + $0x8] sm:$0xf]
        %v2689 = vld [vmem:[#allocation10 + $0xc] sm:$0xf]
        %v2690 = vld [vmem:[#allocation10 + $0x10] sm:$0xf]
        %v2691 = vld [vmem:[#allocation10 + $0x14] sm:$0xf]
        %v2692 = vld [vmem:[#allocation10 + $0x18] sm:$0xf]
        %v2693 = vld [vmem:[#allocation10 + $0x1c] sm:$0xf]
        %v2694 = vld [vmem:[#allocation10 + $0x20] sm:$0xf]
        %v2695 = vld [vmem:[#allocation10 + $0x24] sm:$0xf]
        %v2696 = vld [vmem:[#allocation10 + $0x28] sm:$0xf]
        %v2697 = vld [vmem:[#allocation10 + $0x2c] sm:$0xf]
        %v2698 = vld [vmem:[#allocation10 + $0x30] sm:$0xf]
        %v2699 = vld [vmem:[#allocation10 + $0x34] sm:$0xf]
        %v2700 = vld [vmem:[#allocation10 + $0x38] sm:$0xf]
        %v2701 = vld [vmem:[#allocation10 + $0x3c] sm:$0xf]
        %v2718 = vunpack.c.l.b16 %v2686
        %v2719 = vunpack.c.l.b16 %v2687
        %v2720 = vunpack.c.l.b16 %v2688
        %v2721 = vunpack.c.l.b16 %v2689
        %v2722 = vunpack.c.l.b16 %v2690
        %v2723 = vunpack.c.l.b16 %v2691
        %v2724 = vunpack.c.l.b16 %v2692
        %v2725 = vunpack.c.l.b16 %v2693
        %v2726 = vunpack.c.l.b16 %v2694
        %v2727 = vunpack.c.l.b16 %v2695
        %v2728 = vunpack.c.l.b16 %v2696
        %v2729 = vunpack.c.l.b16 %v2697
        %v2730 = vunpack.c.l.b16 %v2698
        %v2731 = vunpack.c.l.b16 %v2699
        %v2732 = vunpack.c.l.b16 %v2700
        %v2733 = vunpack.c.l.b16 %v2701
        %v2734 = vpack.c.b16 %v2719, %v2718
        %v2735 = vpack.c.b16 %v2721, %v2720
        %v2736 = vpack.c.b16 %v2723, %v2722
        %v2737 = vpack.c.b16 %v2725, %v2724
        %v2738 = vpack.c.b16 %v2727, %v2726
        %v2739 = vpack.c.b16 %v2729, %v2728
        %v2740 = vpack.c.b16 %v2731, %v2730
        %v2741 = vpack.c.b16 %v2733, %v2732
        %2750 = vmatprep.subr.bf16.mxu0 0
        %2751 = vmatpush1.bf16.msra.mxu0 %v2734
        %2752 = vmatprep.subr.bf16.mxu0 0
        %2753 = vmatpush1.bf16.msra.mxu0 %v2735
        %2754 = vmatprep.subr.bf16.mxu0 0
        %2755 = vmatpush1.bf16.msra.mxu0 %v2736
        %2756 = vmatprep.subr.bf16.mxu0 0
        %2757 = vmatpush1.bf16.msra.mxu0 %v2737
        %2758 = vmatprep.subr.bf16.mxu0 0
        %2759 = vmatpush1.bf16.msra.mxu0 %v2738
        %2760 = vmatprep.subr.bf16.mxu0 0
        %2761 = vmatpush1.bf16.msra.mxu0 %v2739
        %2762 = vmatprep.subr.bf16.mxu0 0
        %2763 = vmatpush1.bf16.msra.mxu0 %v2740
        %2764 = vmatprep.subr.bf16.mxu0 0
        %2765 = vmatpush1.bf16.msra.mxu0 %v2741
        %2766 = vmatprep.subr.bf16.mxu0 0
        %2767 = vmatpush1.bf16.msra.mxu0 0
        %2768 = vmatprep.subr.bf16.mxu0 0
        %2769 = vmatpush1.bf16.msra.mxu0 0
        %2770 = vmatprep.subr.bf16.mxu0 0
        %2771 = vmatpush1.bf16.msra.mxu0 0
        %2772 = vmatprep.subr.bf16.mxu0 0
        %2773 = vmatpush1.bf16.msra.mxu0 0
        %2774 = vmatprep.subr.bf16.mxu0 0
        %2775 = vmatpush1.bf16.msra.mxu0 0
        %2776 = vmatprep.subr.bf16.mxu0 0
        %2777 = vmatpush1.bf16.msra.mxu0 0
        %2778 = vmatprep.subr.bf16.mxu0 0
        %2779 = vmatpush1.bf16.msra.mxu0 0
        %2780 = vmatprep.subr.bf16.mxu0 0
        %2781 = vmatpush1.bf16.msra.mxu0 0
        %2782 = vmatprep.mubr.bf16.mxu0 0
        %2783 = vmatmul.mubr.bf16.gmra.mrb[0].mxu0 %v502
        %v2784 = vpop.f32.mrb[0].mxu0
        %v2785 = vadd.f32 0.0, %v2784
        %v2786 = vpop.f32.mrb[0].mxu0
        %v2787 = vpop.f32.mrb[0].mxu0
        %v2788 = vadd.f32 0.0, %v2787
        %v2789 = vpop.f32.mrb[0].mxu0
        %2790 = vmatprep.mubr.bf16.mxu0 0
        %2791 = vmatmul.mubr.bf16.gmra.mrb[0].mxu0 %v503
        %v2792 = vpop.f32.mrb[0].mxu0
        %v2793 = vadd.f32 0.0, %v2792
        %v2794 = vpop.f32.mrb[0].mxu0
        %v2795 = vpop.f32.mrb[0].mxu0
        %v2796 = vadd.f32 0.0, %v2795
        %v2797 = vpop.f32.mrb[0].mxu0
        %2798 = vmatprep.mubr.bf16.mxu0 0
        %2799 = vmatmul.mubr.bf16.gmra.mrb[0].mxu0 %v504
        %v2800 = vpop.f32.mrb[0].mxu0
        %v2801 = vadd.f32 0.0, %v2800
        %v2802 = vpop.f32.mrb[0].mxu0
        %v2803 = vpop.f32.mrb[0].mxu0
        %v2804 = vadd.f32 0.0, %v2803
        %v2805 = vpop.f32.mrb[0].mxu0
        %2806 = vmatprep.mubr.bf16.mxu0 0
        %2807 = vmatmul.mubr.bf16.gmra.mrb[0].mxu0 %v505
        %v2808 = vpop.f32.mrb[0].mxu0
        %v2809 = vadd.f32 0.0, %v2808
        %v2810 = vpop.f32.mrb[0].mxu0
        %v2811 = vpop.f32.mrb[0].mxu0
        %v2812 = vadd.f32 0.0, %v2811
        %v2813 = vpop.f32.mrb[0].mxu0
        %2814 = vmatprep.mubr.bf16.mxu0 0
        %2815 = vmatmul.mubr.bf16.gmra.mrb[0].mxu0 %v506
        %v2816 = vpop.f32.mrb[0].mxu0
        %v2817 = vadd.f32 0.0, %v2816
        %v2818 = vpop.f32.mrb[0].mxu0
        %v2819 = vpop.f32.mrb[0].mxu0
        %v2820 = vadd.f32 0.0, %v2819
        %v2821 = vpop.f32.mrb[0].mxu0
        %2822 = vmatprep.mubr.bf16.mxu0 0
        %2823 = vmatmul.mubr.bf16.gmra.mrb[0].mxu0 %v507
        %v2824 = vpop.f32.mrb[0].mxu0
        %v2825 = vadd.f32 0.0, %v2824
        %v2826 = vpop.f32.mrb[0].mxu0
        %v2827 = vpop.f32.mrb[0].mxu0
        %v2828 = vadd.f32 0.0, %v2827
        %v2829 = vpop.f32.mrb[0].mxu0
        %2830 = vmatprep.mubr.bf16.mxu0 0
        %2831 = vmatmul.mubr.bf16.gmra.mrb[0].mxu0 %v508
        %v2832 = vpop.f32.mrb[0].mxu0
        %v2833 = vadd.f32 0.0, %v2832
        %v2834 = vpop.f32.mrb[0].mxu0
        %v2835 = vpop.f32.mrb[0].mxu0
        %v2836 = vadd.f32 0.0, %v2835
        %v2837 = vpop.f32.mrb[0].mxu0
        %2838 = vmatprep.mubr.bf16.mxu0 0
        %2839 = vmatmul.mubr.bf16.gmra.mrb[0].mxu0 %v509
        %v2840 = vpop.f32.mrb[0].mxu0
        %v2841 = vadd.f32 0.0, %v2840
        %v2842 = vpop.f32.mrb[0].mxu0
        %v2843 = vpop.f32.mrb[0].mxu0
        %v2844 = vadd.f32 0.0, %v2843
        %v2845 = vpop.f32.mrb[0].mxu0
        %2846 = vmatprep.mubr.bf16.mxu0 0
        %2847 = vmatmul.mubr.bf16.gmra.mrb[0].mxu0 %v510
        %v2848 = vpop.f32.mrb[0].mxu0
        %v2849 = vadd.f32 0.0, %v2848
        %v2850 = vpop.f32.mrb[0].mxu0
        %v2851 = vpop.f32.mrb[0].mxu0
        %v2852 = vadd.f32 0.0, %v2851
        %v2853 = vpop.f32.mrb[0].mxu0
        %2854 = vmatprep.mubr.bf16.mxu0 0
        %2855 = vmatmul.mubr.bf16.gmra.mrb[0].mxu0 %v511
        %v2856 = vpop.f32.mrb[0].mxu0
        %v2857 = vadd.f32 0.0, %v2856
        %v2858 = vpop.f32.mrb[0].mxu0
        %v2859 = vpop.f32.mrb[0].mxu0
        %v2860 = vadd.f32 0.0, %v2859
        %v2861 = vpop.f32.mrb[0].mxu0
        %2862 = vmatprep.mubr.bf16.mxu0 0
        %2863 = vmatmul.mubr.bf16.gmra.mrb[0].mxu0 %v512
        %v2864 = vpop.f32.mrb[0].mxu0
        %v2865 = vadd.f32 0.0, %v2864
        %v2866 = vpop.f32.mrb[0].mxu0
        %v2867 = vpop.f32.mrb[0].mxu0
        %v2868 = vadd.f32 0.0, %v2867
        %v2869 = vpop.f32.mrb[0].mxu0
        %2870 = vmatprep.mubr.bf16.mxu0 0
        %2871 = vmatmul.mubr.bf16.gmra.mrb[0].mxu0 %v513
        %v2872 = vpop.f32.mrb[0].mxu0
        %v2873 = vadd.f32 0.0, %v2872
        %v2874 = vpop.f32.mrb[0].mxu0
        %v2875 = vpop.f32.mrb[0].mxu0
        %v2876 = vadd.f32 0.0, %v2875
        %v2877 = vpop.f32.mrb[0].mxu0
        %2878 = vmatprep.mubr.bf16.mxu0 0
        %2879 = vmatmul.mubr.bf16.gmra.mrb[0].mxu0 %v514
        %v2880 = vpop.f32.mrb[0].mxu0
        %v2881 = vadd.f32 0.0, %v2880
        %v2882 = vpop.f32.mrb[0].mxu0
        %v2883 = vpop.f32.mrb[0].mxu0
        %v2884 = vadd.f32 0.0, %v2883
        %v2885 = vpop.f32.mrb[0].mxu0
        %2886 = vmatprep.mubr.bf16.mxu0 0
        %2887 = vmatmul.mubr.bf16.gmra.mrb[0].mxu0 %v515
        %v2888 = vpop.f32.mrb[0].mxu0
        %v2889 = vadd.f32 0.0, %v2888
        %v2890 = vpop.f32.mrb[0].mxu0
        %v2891 = vpop.f32.mrb[0].mxu0
        %v2892 = vadd.f32 0.0, %v2891
        %v2893 = vpop.f32.mrb[0].mxu0
        %2894 = vmatprep.mubr.bf16.mxu0 0
        %2895 = vmatmul.mubr.bf16.gmra.mrb[0].mxu0 %v516
        %v2896 = vpop.f32.mrb[0].mxu0
        %v2897 = vadd.f32 0.0, %v2896
        %v2898 = vpop.f32.mrb[0].mxu0
        %v2899 = vpop.f32.mrb[0].mxu0
        %v2900 = vadd.f32 0.0, %v2899
        %v2901 = vpop.f32.mrb[0].mxu0
        %2902 = vmatprep.mubr.bf16.mxu0 0
        %2903 = vmatmul.mubr.bf16.gmra.mrb[0].mxu0 %v517
        %v2904 = vpop.f32.mrb[0].mxu0
        %v2905 = vadd.f32 0.0, %v2904
        %v2906 = vpop.f32.mrb[0].mxu0
        %v2907 = vpop.f32.mrb[0].mxu0
        %v2908 = vadd.f32 0.0, %v2907
        %v2909 = vpop.f32.mrb[0].mxu0
        %2910 = vdwg.mxu0
        %v2911 = vadd.f32 %v2560, %v2785
        %v2912 = vadd.f32 %v2563, %v2788
        %v2913 = vadd.f32 %v2568, %v2793
        %v2914 = vadd.f32 %v2571, %v2796
        %v2915 = vadd.f32 %v2576, %v2801
        %v2916 = vadd.f32 %v2579, %v2804
        %v2917 = vadd.f32 %v2584, %v2809
        %v2918 = vadd.f32 %v2587, %v2812
        %v2919 = vadd.f32 %v2592, %v2817
        %v2920 = vadd.f32 %v2595, %v2820
        %v2921 = vadd.f32 %v2600, %v2825
        %v2922 = vadd.f32 %v2603, %v2828
        %v2923 = vadd.f32 %v2608, %v2833
        %v2924 = vadd.f32 %v2611, %v2836
        %v2925 = vadd.f32 %v2616, %v2841
        %v2926 = vadd.f32 %v2619, %v2844
        %v2927 = vadd.f32 %v2624, %v2849
        %v2928 = vadd.f32 %v2627, %v2852
        %v2929 = vadd.f32 %v2632, %v2857
        %v2930 = vadd.f32 %v2635, %v2860
        %v2931 = vadd.f32 %v2640, %v2865
        %v2932 = vadd.f32 %v2643, %v2868
        %v2933 = vadd.f32 %v2648, %v2873
        %v2934 = vadd.f32 %v2651, %v2876
        %v2935 = vadd.f32 %v2656, %v2881
        %v2936 = vadd.f32 %v2659, %v2884
        %v2937 = vadd.f32 %v2664, %v2889
        %v2938 = vadd.f32 %v2667, %v2892
        %v2939 = vadd.f32 %v2672, %v2897
        %v2940 = vadd.f32 %v2675, %v2900
        %v2941 = vadd.f32 %v2680, %v2905
        %v2942 = vadd.f32 %v2683, %v2908
        %v2943 = vpack.c.bf16 %v2912, %v2911
        %v2944 = vpack.c.bf16 %v2914, %v2913
        %v2945 = vpack.c.bf16 %v2916, %v2915
        %v2946 = vpack.c.bf16 %v2918, %v2917
        %v2947 = vpack.c.bf16 %v2920, %v2919
        %v2948 = vpack.c.bf16 %v2922, %v2921
        %v2949 = vpack.c.bf16 %v2924, %v2923
        %v2950 = vpack.c.bf16 %v2926, %v2925
        %v2951 = vpack.c.bf16 %v2928, %v2927
        %v2952 = vpack.c.bf16 %v2930, %v2929
        %v2953 = vpack.c.bf16 %v2932, %v2931
        %v2954 = vpack.c.bf16 %v2934, %v2933
        %v2955 = vpack.c.bf16 %v2936, %v2935
        %v2956 = vpack.c.bf16 %v2938, %v2937
        %v2957 = vpack.c.bf16 %v2940, %v2939
        %v2958 = vpack.c.bf16 %v2942, %v2941
        %v2975 = vunpack.c.l.b16 %v2943
        %v2976 = vunpack.c.h.b16 %v2943
        %v2977 = vunpack.c.l.b16 %v2944
        %v2978 = vunpack.c.h.b16 %v2944
        %v2979 = vunpack.c.l.b16 %v2945
        %v2980 = vunpack.c.h.b16 %v2945
        %v2981 = vunpack.c.l.b16 %v2946
        %v2982 = vunpack.c.h.b16 %v2946
        %v2983 = vunpack.c.l.b16 %v2947
        %v2984 = vunpack.c.h.b16 %v2947
        %v2985 = vunpack.c.l.b16 %v2948
        %v2986 = vunpack.c.h.b16 %v2948
        %v2987 = vunpack.c.l.b16 %v2949
        %v2988 = vunpack.c.h.b16 %v2949
        %v2989 = vunpack.c.l.b16 %v2950
        %v2990 = vunpack.c.h.b16 %v2950
        %v2991 = vunpack.c.l.b16 %v2951
        %v2992 = vunpack.c.h.b16 %v2951
        %v2993 = vunpack.c.l.b16 %v2952
        %v2994 = vunpack.c.h.b16 %v2952
        %v2995 = vunpack.c.l.b16 %v2953
        %v2996 = vunpack.c.h.b16 %v2953
        %v2997 = vunpack.c.l.b16 %v2954
        %v2998 = vunpack.c.h.b16 %v2954
        %v2999 = vunpack.c.l.b16 %v2955
        %v3000 = vunpack.c.h.b16 %v2955
        %v3001 = vunpack.c.l.b16 %v2956
        %v3002 = vunpack.c.h.b16 %v2956
        %v3003 = vunpack.c.l.b16 %v2957
        %v3004 = vunpack.c.h.b16 %v2957
        %v3005 = vunpack.c.l.b16 %v2958
        %v3006 = vunpack.c.h.b16 %v2958
        %v3007 = vpack.c.b16 %v2975, %v2975
        %v3008 = vpack.c.b16 %v2976, %v2976
        %v3009 = vpack.c.b16 %v2977, %v2977
        %v3010 = vpack.c.b16 %v2978, %v2978
        %v3011 = vpack.c.b16 %v2979, %v2979
        %v3012 = vpack.c.b16 %v2980, %v2980
        %v3013 = vpack.c.b16 %v2981, %v2981
        %v3014 = vpack.c.b16 %v2982, %v2982
        %v3015 = vpack.c.b16 %v2983, %v2983
        %v3016 = vpack.c.b16 %v2984, %v2984
        %v3017 = vpack.c.b16 %v2985, %v2985
        %v3018 = vpack.c.b16 %v2986, %v2986
        %v3019 = vpack.c.b16 %v2987, %v2987
        %v3020 = vpack.c.b16 %v2988, %v2988
        %v3021 = vpack.c.b16 %v2989, %v2989
        %v3022 = vpack.c.b16 %v2990, %v2990
        %v3023 = vpack.c.b16 %v2991, %v2991
        %v3024 = vpack.c.b16 %v2992, %v2992
        %v3025 = vpack.c.b16 %v2993, %v2993
        %v3026 = vpack.c.b16 %v2994, %v2994
        %v3027 = vpack.c.b16 %v2995, %v2995
        %v3028 = vpack.c.b16 %v2996, %v2996
        %v3029 = vpack.c.b16 %v2997, %v2997
        %v3030 = vpack.c.b16 %v2998, %v2998
        %v3031 = vpack.c.b16 %v2999, %v2999
        %v3032 = vpack.c.b16 %v3000, %v3000
        %v3033 = vpack.c.b16 %v3001, %v3001
        %v3034 = vpack.c.b16 %v3002, %v3002
        %v3035 = vpack.c.b16 %v3003, %v3003
        %v3036 = vpack.c.b16 %v3004, %v3004
        %v3037 = vpack.c.b16 %v3005, %v3005
        %v3038 = vpack.c.b16 %v3006, %v3006
        %3071 = vst [vmem:[%s381] sm:$0xf] %v3007
        %3072 = vst [vmem:[%s381 + $0x4] sm:$0xf] %v3008
        %3073 = vst [vmem:[%s381 + $0x8] sm:$0xf] %v3009
        %3074 = vst [vmem:[%s381 + $0xc] sm:$0xf] %v3010
        %3075 = vst [vmem:[%s381 + $0x10] sm:$0xf] %v3011
        %3076 = vst [vmem:[%s381 + $0x14] sm:$0xf] %v3012
        %3077 = vst [vmem:[%s381 + $0x18] sm:$0xf] %v3013
        %3078 = vst [vmem:[%s381 + $0x1c] sm:$0xf] %v3014
        %3079 = vst [vmem:[%s381 + $0x20] sm:$0xf] %v3015
        %3080 = vst [vmem:[%s381 + $0x24] sm:$0xf] %v3016
        %3081 = vst [vmem:[%s381 + $0x28] sm:$0xf] %v3017
        %3082 = vst [vmem:[%s381 + $0x2c] sm:$0xf] %v3018
        %3083 = vst [vmem:[%s381 + $0x30] sm:$0xf] %v3019
        %3084 = vst [vmem:[%s381 + $0x34] sm:$0xf] %v3020
        %3085 = vst [vmem:[%s381 + $0x38] sm:$0xf] %v3021
        %3086 = vst [vmem:[%s381 + $0x3c] sm:$0xf] %v3022
        %3087 = vst [vmem:[%s381 + $0x40] sm:$0xf] %v3023
        %3088 = vst [vmem:[%s381 + $0x44] sm:$0xf] %v3024
        %3089 = vst [vmem:[%s381 + $0x48] sm:$0xf] %v3025
        %3090 = vst [vmem:[%s381 + $0x4c] sm:$0xf] %v3026
        %3091 = vst [vmem:[%s381 + $0x50] sm:$0xf] %v3027
        %3092 = vst [vmem:[%s381 + $0x54] sm:$0xf] %v3028
        %3093 = vst [vmem:[%s381 + $0x58] sm:$0xf] %v3029
        %3094 = vst [vmem:[%s381 + $0x5c] sm:$0xf] %v3030
        %3095 = vst [vmem:[%s381 + $0x60] sm:$0xf] %v3031
        %3096 = vst [vmem:[%s381 + $0x64] sm:$0xf] %v3032
        %3097 = vst [vmem:[%s381 + $0x68] sm:$0xf] %v3033
        %3098 = vst [vmem:[%s381 + $0x6c] sm:$0xf] %v3034
        %3099 = vst [vmem:[%s381 + $0x70] sm:$0xf] %v3035
        %3100 = vst [vmem:[%s381 + $0x74] sm:$0xf] %v3036
        %3101 = vst [vmem:[%s381 + $0x78] sm:$0xf] %v3037
        %3102 = vst [vmem:[%s381 + $0x7c] sm:$0xf] %v3038
        %s3103 = sand.u32 %s208, 1
        %s3104 = scalar_lea.sflag [#allocation4], %s3103
        %s3105 = sand.u32 %s208, 1
        %s3106 = smul.addr %s3105, 128
        %s3107 = scalar_lea.vmem [#allocation11], %s3106
        // Predicated region
        $region73: #{tpu_custom_call.1} parent=51 // pred_check
          %p3108 = pneg %p218
        $region74: #{tpu_custom_call.1} parent=51 // pred_check_branch
          %3110 = sbr.rel (%p3108) target = $region76
        $region75: #{tpu_custom_call.1} parent=51 // pred_region
          %s3112 = ssub.s32 2048, 2048
          %3113 = vsyncadd %s3104, %s3112
          %s3114 = smul.addr %s27, 32
          %s3115 = smul.addr %s3114, 64
          %s3116 = scalar_lea.hbm %s8, %s3115
          %s3117 = sshll.u32 %s3107, 4
          %s3118 = int_to_ptr.vmem [resolvable:$true] %s3117
          %3123 = dma.vmem_to_hbm [thread:$0]  %s3118, 2048, %s3116, %s3104, 64, 64, 4
        $region76: #{tpu_custom_call.1} parent=51 // pred_fallthru
          _
      $region52: #{tpu_custom_call.1} parent=5 // pred_fallthru
        _
      %p3124 = scmp.le.s32.totalorder 2, %s22
      // Predicated region
      $region77: #{tpu_custom_call.1} parent=5 // pred_check
        %p3125 = pneg %p3124
      $region78: #{tpu_custom_call.1} parent=5 // pred_check_branch
        %3127 = sbr.rel (%p3125) target = $region80
      $region79: #{tpu_custom_call.1} parent=5 // pred_region
        %s3128 = ssub.s32 %s22, 2
        // Predicated region
        $region81: #{tpu_custom_call.1} parent=79 // pred_check
          %p3129 = pneg %p224
        $region82: #{tpu_custom_call.1} parent=79 // pred_check_branch
          %3131 = sbr.rel (%p3129) target = $region84
        $region83: #{tpu_custom_call.1} parent=79 // pred_region
          %s3132 = sand.u32 %s209, 1
          %s3133 = scalar_lea.sflag [#allocation4], %s3132
          %s3134 = sand.u32 %s209, 1
          %s3135 = smul.addr %s3134, 128
          %s3136 = scalar_lea.vmem [#allocation11], %s3135
          %3137 = dma.done %s3133, 2048
        $region84: #{tpu_custom_call.1} parent=79 // pred_fallthru
          _
      $region80: #{tpu_custom_call.1} parent=5 // pred_fallthru
        _
    $region6: #{tpu_custom_call.1} parent=1 // loop_footer
      %s26 = sadd.s32 1, %s22
    $region7: #{tpu_custom_call.1} parent=1 // loop_footer_branch
      %21 = sbr.rel target = $region3
    $region8: #{tpu_custom_call.1} parent=1 // loop_exit
      _
    %3138 = vsyncpa [#allocation3], 1
    %s3139 = scalar_lea.sflag [#allocation3], 1
    %3140 = vsyncpa %s3139, 1
    %3141 = vsyncpa [#allocation6], 1
    %3142 = vsyncpa [#allocation9], 1
    %3143 = vsyncpa [#allocation4], 1
    %s3144 = scalar_lea.sflag [#allocation4], 1
    %3145 = vsyncpa %s3144, 1

</llo_original>
